<compile_context>
chip_gen: v7x
topology: tpu7x:2x2x1
jax: 0.10.0
libtpu: 0.0.40
codegen_flags: <defaults>
</compile_context>

<pallas_src>
import functools
import numpy as np
import jax
import jax.numpy as jnp
from jax.experimental import pallas as pl
from jax.experimental.pallas import tpu as pltpu

# ----- small config (scaled-down google/vit-base-patch16-224-in21k + heads) -----
BATCH = 2
CHANNELS = 3
IMG = 32
PATCH = 16
NUM_PATCHES = (IMG // PATCH) ** 2            # 4
SEQ = NUM_PATCHES + 1                        # +CLS token = 5
SEQ_PAD = 8                                  # padded to sublane multiple; extra keys masked
HIDDEN = 128                                 # (768 in the real model)
HEADS = 4
HEAD_DIM = HIDDEN // HEADS                   # 32
FFN = 4 * HIDDEN
LAYERS = 2                                   # (12 in the real model)
N_COARSE, N_MEDIUM, N_FINE = 256, 384, 512   # scaled from 2967 / 6505 / 11570
N_HEAD_OUT = N_COARSE + N_MEDIUM + N_FINE    # 1152 (multiple of 128 -> lane-dense)
LN_EPS = 1e-12                               # HF ViT layer_norm_eps


# ---------------------------- in-kernel helpers ----------------------------

def _ln(x, g, b, eps):
    mean = jnp.mean(x, axis=-1, keepdims=True)
    var = jnp.mean(jnp.square(x - mean), axis=-1, keepdims=True)
    return (x - mean) * jax.lax.rsqrt(var + eps) * g + b


# ---------------------------- patch embedding ----------------------------

def _patch_embed_kernel(x_ref, w_ref, b_ref, o_ref):
    acc = jnp.dot(x_ref[...], w_ref[...], preferred_element_type=jnp.float32)
    o_ref[...] = (acc + b_ref[...]).astype(o_ref.dtype)


def patch_embed(x, w, b):
    """Conv2d(kernel=stride=PATCH) folded into a single matmul (im2col outside)."""
    M, K = x.shape
    N = w.shape[1]
    return pl.pallas_call(
        _patch_embed_kernel,
        out_shape=jax.ShapeDtypeStruct((M, N), x.dtype),
        grid=(1,),
        in_specs=[pl.BlockSpec((M, K), lambda i: (0, 0)),
                  pl.BlockSpec((K, N), lambda i: (0, 0)),
                  pl.BlockSpec((1, N), lambda i: (0, 0))],
        out_specs=pl.BlockSpec((M, N), lambda i: (0, 0)),
    )(x, w, b)


# ---------------------------- fused encoder ----------------------------

def _encoder_kernel(x_in_ref,
                    ln1_g_ref, ln1_b_ref, wqkv_ref, bqkv_ref, wo_ref, bo_ref,
                    ln2_g_ref, ln2_b_ref, w1_ref, b1_ref, w2_ref, b2_ref,
                    x_ref, *, batch, eps):
    # Load embeddings into the resident output block once (layer 0); for l>0
    # x_ref still holds the previous layer's activations (same block index).
    @pl.when(pl.program_id(0) == 0)
    def _():
        x_ref[...] = x_in_ref[...]

    x = x_ref[...].astype(jnp.float32)                          # (B*SEQ_PAD, HIDDEN)

    # ---- LN1 + fused QKV projection (one 128x384 matmul) ----
    h = _ln(x, ln1_g_ref[0], ln1_b_ref[0], eps)
    qkv = jnp.dot(h, wqkv_ref[0], preferred_element_type=jnp.float32) + bqkv_ref[0]
    q = qkv[:, 0 * HIDDEN:1 * HIDDEN]
    k = qkv[:, 1 * HIDDEN:2 * HIDDEN]
    v = qkv[:, 2 * HIDDEN:3 * HIDDEN]

    # ---- multi-head self-attention; (batch, head) pairs unrolled (tiny) ----
    scale = 1.0 / np.sqrt(HEAD_DIM)
    key_valid = jax.lax.broadcasted_iota(jnp.int32, (SEQ_PAD, SEQ_PAD), 1) < SEQ
    ctx_parts = []
    for b in range(batch):
        r0 = b * SEQ_PAD
        qb = q[r0:r0 + SEQ_PAD, :]
        kb = k[r0:r0 + SEQ_PAD, :]
        vb = v[r0:r0 + SEQ_PAD, :]
        head_out = []
        for hd in range(HEADS):
            c0 = hd * HEAD_DIM
            qh = qb[:, c0:c0 + HEAD_DIM]
            kh = kb[:, c0:c0 + HEAD_DIM]
            vh = vb[:, c0:c0 + HEAD_DIM]
            s = jax.lax.dot_general(qh, kh, (((1,), (1,)), ((), ())),
                                    preferred_element_type=jnp.float32) * scale
            s = jnp.where(key_valid, s, -1e30)       # mask padded key tokens
            s = s - jnp.max(s, axis=-1, keepdims=True)
            p = jnp.exp(s)
            p = p * pl.reciprocal(jnp.sum(p, axis=-1, keepdims=True), approx=True)
            head_out.append(jnp.dot(p, vh, preferred_element_type=jnp.float32))
        ctx_parts.append(jnp.concatenate(head_out, axis=-1))    # (SEQ_PAD, HIDDEN)
    ctx = jnp.concatenate(ctx_parts, axis=0)                    # (B*SEQ_PAD, HIDDEN)

    attn_out = jnp.dot(ctx, wo_ref[0], preferred_element_type=jnp.float32) + bo_ref[0]
    x = x + attn_out                                            # residual 1

    # ---- LN2 + MLP ----
    h2 = _ln(x, ln2_g_ref[0], ln2_b_ref[0], eps)
    # TODO(synk): HF ViT uses exact (erf) GELU; tanh approximation used here.
    ff = jax.nn.gelu(jnp.dot(h2, w1_ref[0], preferred_element_type=jnp.float32)
                     + b1_ref[0], approximate=True)
    ff = jnp.dot(ff, w2_ref[0], preferred_element_type=jnp.float32) + b2_ref[0]
    x = x + ff                                                  # residual 2

    x_ref[...] = x.astype(x_ref.dtype)


def _stacked_spec(block_tail):
    """BlockSpec for a per-layer-stacked weight (L, *block_tail) indexed by layer."""
    n = len(block_tail)
    return pl.BlockSpec((1,) + tuple(block_tail), lambda l: (l,) + (0,) * n)


def encoder(x, p):
    M, H = x.shape
    batch = M // SEQ_PAD
    full = pl.BlockSpec((M, H), lambda l: (0, 0))
    return pl.pallas_call(
        functools.partial(_encoder_kernel, batch=batch, eps=LN_EPS),
        out_shape=jax.ShapeDtypeStruct((M, H), x.dtype),
        grid=(LAYERS,),
        in_specs=[
            full,                                 # embeddings (read at l == 0)
            _stacked_spec((1, HIDDEN)),           # ln1_g
            _stacked_spec((1, HIDDEN)),           # ln1_b
            _stacked_spec((HIDDEN, 3 * HIDDEN)),  # wqkv (fused Q/K/V)
            _stacked_spec((1, 3 * HIDDEN)),       # bqkv
            _stacked_spec((HIDDEN, HIDDEN)),      # wo
            _stacked_spec((1, HIDDEN)),           # bo
            _stacked_spec((1, HIDDEN)),           # ln2_g
            _stacked_spec((1, HIDDEN)),           # ln2_b
            _stacked_spec((HIDDEN, FFN)),         # w1
            _stacked_spec((1, FFN)),              # b1
            _stacked_spec((FFN, HIDDEN)),         # w2
            _stacked_spec((1, HIDDEN)),           # b2
        ],
        out_specs=full,   # same block for every layer -> resident VMEM carry
        compiler_params=pltpu.CompilerParams(dimension_semantics=("arbitrary",)),
    )(x, p["ln1_g"], p["ln1_b"], p["wqkv"], p["bqkv"], p["wo"], p["bo"],
      p["ln2_g"], p["ln2_b"], p["w1"], p["b1"], p["w2"], p["b2"])


# ------------------- final LayerNorm + fused classification heads -------------------

def _cls_head_kernel(x_ref, g_ref, b_ref, w_ref, bias_ref, o_ref, *, eps):
    y = _ln(x_ref[...].astype(jnp.float32), g_ref[...], b_ref[...], eps)
    o_ref[...] = (jnp.dot(y, w_ref[...], preferred_element_type=jnp.float32)
                  + bias_ref[...]).astype(o_ref.dtype)


def cls_heads(cls_tok, g, b, w, bias):
    M, K = cls_tok.shape
    N = w.shape[1]
    return pl.pallas_call(
        functools.partial(_cls_head_kernel, eps=LN_EPS),
        out_shape=jax.ShapeDtypeStruct((M, N), cls_tok.dtype),
        grid=(1,),
        in_specs=[pl.BlockSpec((M, K), lambda i: (0, 0)),
                  pl.BlockSpec((1, K), lambda i: (0, 0)),
                  pl.BlockSpec((1, K), lambda i: (0, 0)),
                  pl.BlockSpec((K, N), lambda i: (0, 0)),
                  pl.BlockSpec((1, N), lambda i: (0, 0))],
        out_specs=pl.BlockSpec((M, N), lambda i: (0, 0)),
    )(cls_tok, g, b, w, bias)


# ---------------------------- parameters ----------------------------

def init_params(key):
    keys = iter(jax.random.split(key, 64))

    def w(shape, scale=0.02):
        return scale * jax.random.normal(next(keys), shape, jnp.float32)

    L = LAYERS
    return {
        # Conv2d(C, HIDDEN, kernel=PATCH, stride=PATCH) folded into a matmul:
        # weight flattened in (C, P, P) order then transposed to (C*P*P, HIDDEN)
        "patch_w": w((CHANNELS * PATCH * PATCH, HIDDEN)),
        "patch_b": jnp.zeros((1, HIDDEN), jnp.float32),
        "cls": w((1, 1, HIDDEN)),
        "pos": w((1, SEQ, HIDDEN)),
        "final_ln_g": jnp.ones((1, HIDDEN), jnp.float32),
        "final_ln_b": jnp.zeros((1, HIDDEN), jnp.float32),
        # 3 classification heads fused into one (HIDDEN, 1152) projection
        "head_w": w((HIDDEN, N_HEAD_OUT)),
        "head_b": jnp.zeros((1, N_HEAD_OUT), jnp.float32),
        # per-layer encoder weights, stacked along a leading L axis
        "ln1_g": jnp.ones((L, 1, HIDDEN), jnp.float32),
        "ln1_b": jnp.zeros((L, 1, HIDDEN), jnp.float32),
        "wqkv": w((L, HIDDEN, 3 * HIDDEN)),
        "bqkv": jnp.zeros((L, 1, 3 * HIDDEN), jnp.float32),
        "wo": w((L, HIDDEN, HIDDEN)),
        "bo": jnp.zeros((L, 1, HIDDEN), jnp.float32),
        "ln2_g": jnp.ones((L, 1, HIDDEN), jnp.float32),
        "ln2_b": jnp.zeros((L, 1, HIDDEN), jnp.float32),
        "w1": w((L, HIDDEN, FFN)),
        "b1": jnp.zeros((L, 1, FFN), jnp.float32),
        "w2": w((L, FFN, HIDDEN)),
        "b2": jnp.zeros((L, 1, HIDDEN), jnp.float32),
    }


# ---------------------------- forward pass ----------------------------

def vit_forward(params, image):
    B = image.shape[0]

    # --- patch embedding (Conv2d kernel=stride=PATCH == im2col + matmul) ---
    x = image.reshape(B, CHANNELS, IMG // PATCH, PATCH, IMG // PATCH, PATCH)
    x = x.transpose(0, 2, 4, 1, 3, 5).reshape(B * NUM_PATCHES, CHANNELS * PATCH * PATCH)
    patches = patch_embed(x, params["patch_w"], params["patch_b"])
    patches = patches.reshape(B, NUM_PATCHES, HIDDEN)

    # --- prepend CLS token, add position embeddings, pad seq 5 -> 8 ---
    cls = jnp.broadcast_to(params["cls"], (B, 1, HIDDEN))
    tokens = jnp.concatenate([cls, patches], axis=1) + params["pos"]   # (B, SEQ, HIDDEN)
    tokens = jnp.pad(tokens, ((0, 0), (0, SEQ_PAD - SEQ), (0, 0)))     # (B, SEQ_PAD, HIDDEN)
    x = tokens.reshape(B * SEQ_PAD, HIDDEN)

    # --- transformer encoder: ONE pallas_call, grid over layers ---
    x = encoder(x, params)

    # --- final LN (per-token, so applying it to CLS only is equivalent) + heads ---
    cls_out = x.reshape(B, SEQ_PAD, HIDDEN)[:, 0, :]                   # (B, HIDDEN)
    logits = cls_heads(cls_out, params["final_ln_g"], params["final_ln_b"],
                       params["head_w"], params["head_b"])             # (B, 1152)
    coarse_out = logits[:, :N_COARSE]
    medium_out = logits[:, N_COARSE:N_COARSE + N_MEDIUM]
    fine_out = logits[:, N_COARSE + N_MEDIUM:]
    return coarse_out, medium_out, fine_out


if __name__ == "__main__":
    key = jax.random.PRNGKey(0)
    pkey, ikey = jax.random.split(key)
    params = init_params(pkey)
    image = jax.random.normal(ikey, (BATCH, CHANNELS, IMG, IMG), jnp.float32)

    fwd = jax.jit(vit_forward)
    coarse, medium, fine = fwd(params, image)
    jax.block_until_ready((coarse, medium, fine))

    assert coarse.shape == (BATCH, N_COARSE)
    assert medium.shape == (BATCH, N_MEDIUM)
    assert fine.shape == (BATCH, N_FINE)
    assert np.isfinite(np.asarray(coarse)).all()
    assert np.isfinite(np.asarray(medium)).all()
    assert np.isfinite(np.asarray(fine)).all()
    print("KERNEL_OK")
</pallas_src>

<mosaic_0001>
module attributes {stable_mosaic.version = 11 : i64} {
  func.func @_patch_embed_kernel(%arg0: i32, %arg1: memref<8x768xf32, #tpu.memory_space<vmem>>, %arg2: memref<768x128xf32, #tpu.memory_space<vmem>>, %arg3: memref<1x128xf32, #tpu.memory_space<vmem>>, %arg4: memref<8x128xf32, #tpu.memory_space<vmem>>) attributes {dimension_semantics = [#tpu.dimension_semantics<arbitrary>], iteration_bounds = array<i64: 1>, scalar_prefetch = 0 : i64, scratch_operands = 0 : i64, tpu.core_type = #tpu.core_type<tc>, window_params = [{pipeline_mode = #tpu.pipeline_mode<synchronous>, transform_indices = @transform_0, window_bounds = array<i64: 8, 768>}, {pipeline_mode = #tpu.pipeline_mode<synchronous>, transform_indices = @transform_1, window_bounds = array<i64: 768, 128>}, {pipeline_mode = #tpu.pipeline_mode<synchronous>, transform_indices = @transform_2, window_bounds = array<i64: 1, 128>}, {pipeline_mode = #tpu.pipeline_mode<synchronous>, transform_indices = @transform_3, window_bounds = array<i64: 8, 128>}]} {
    %c0 = arith.constant 0 : index
    %c0_0 = arith.constant 0 : index
    %0 = vector.load %arg1[%c0, %c0_0] : memref<8x768xf32, #tpu.memory_space<vmem>>, vector<8x768xf32>
    %c0_1 = arith.constant 0 : index
    %c0_2 = arith.constant 0 : index
    %1 = vector.load %arg2[%c0_1, %c0_2] : memref<768x128xf32, #tpu.memory_space<vmem>>, vector<768x128xf32>
    %cst = arith.constant dense<0.000000e+00> : vector<8x128xf32>
    %2 = tpu.matmul %0, %1, %cst {dimension_numbers = #tpu.dot_dimension_numbers<[1], [0], [0], [1], [0, 0, 1, 1], [], []>} : vector<8x768xf32>, vector<768x128xf32>, vector<8x128xf32> -> vector<8x128xf32>
    %c0_3 = arith.constant 0 : index
    %c0_4 = arith.constant 0 : index
    %3 = vector.load %arg3[%c0_3, %c0_4] : memref<1x128xf32, #tpu.memory_space<vmem>>, vector<1x128xf32>
    %4 = vector.broadcast %3 : vector<1x128xf32> to vector<8x128xf32>
    %5 = arith.addf %2, %4 : vector<8x128xf32>
    %c0_5 = arith.constant 0 : index
    %c0_6 = arith.constant 0 : index
    %6 = vector.load %arg4[%c0_5, %c0_6] : memref<8x128xf32, #tpu.memory_space<vmem>>, vector<8x128xf32>
    tpu.vector_store %arg4[%c0_5, %c0_6], %5 {strides = array<i32>} : memref<8x128xf32, #tpu.memory_space<vmem>>, vector<8x128xf32>,
    return
  }
  func.func @transform_0(%arg0: i32) -> (i32, i32) {
    %c0_i32 = arith.constant 0 : i32
    %c0_i32_0 = arith.constant 0 : i32
    %c0_i32_1 = arith.constant 0 : i32
    return %c0_i32, %c0_i32_0 : i32, i32
  }
  func.func @transform_1(%arg0: i32) -> (i32, i32) {
    %c0_i32 = arith.constant 0 : i32
    %c0_i32_0 = arith.constant 0 : i32
    %c0_i32_1 = arith.constant 0 : i32
    return %c0_i32, %c0_i32_0 : i32, i32
  }
  func.func @transform_2(%arg0: i32) -> (i32, i32) {
    %c0_i32 = arith.constant 0 : i32
    %c0_i32_0 = arith.constant 0 : i32
    %c0_i32_1 = arith.constant 0 : i32
    return %c0_i32, %c0_i32_0 : i32, i32
  }
  func.func @transform_3(%arg0: i32) -> (i32, i32) {
    %c0_i32 = arith.constant 0 : i32
    %c0_i32_0 = arith.constant 0 : i32
    %c0_i32_1 = arith.constant 0 : i32
    return %c0_i32, %c0_i32_0 : i32, i32
  }
}

module attributes {stable_mosaic.version = 11 : i64} {
  func.func @_cls_head_kernel(%arg0: i32, %arg1: memref<2x128xf32, #tpu.memory_space<vmem>>, %arg2: memref<1x128xf32, #tpu.memory_space<vmem>>, %arg3: memref<1x128xf32, #tpu.memory_space<vmem>>, %arg4: memref<128x1152xf32, #tpu.memory_space<vmem>>, %arg5: memref<1x1152xf32, #tpu.memory_space<vmem>>, %arg6: memref<2x1152xf32, #tpu.memory_space<vmem>>) attributes {dimension_semantics = [#tpu.dimension_semantics<arbitrary>], iteration_bounds = array<i64: 1>, scalar_prefetch = 0 : i64, scratch_operands = 0 : i64, tpu.core_type = #tpu.core_type<tc>, window_params = [{pipeline_mode = #tpu.pipeline_mode<synchronous>, transform_indices = @transform_0, window_bounds = array<i64: 2, 128>}, {pipeline_mode = #tpu.pipeline_mode<synchronous>, transform_indices = @transform_1, window_bounds = array<i64: 1, 128>}, {pipeline_mode = #tpu.pipeline_mode<synchronous>, transform_indices = @transform_2, window_bounds = array<i64: 1, 128>}, {pipeline_mode = #tpu.pipeline_mode<synchronous>, transform_indices = @transform_3, window_bounds = array<i64: 128, 1152>}, {pipeline_mode = #tpu.pipeline_mode<synchronous>, transform_indices = @transform_4, window_bounds = array<i64: 1, 1152>}, {pipeline_mode = #tpu.pipeline_mode<synchronous>, transform_indices = @transform_5, window_bounds = array<i64: 2, 1152>}]} {
    %c0 = arith.constant 0 : index
    %c0_0 = arith.constant 0 : index
    %0 = vector.load %arg1[%c0, %c0_0] : memref<2x128xf32, #tpu.memory_space<vmem>>, vector<2x128xf32>
    %c0_1 = arith.constant 0 : index
    %c0_2 = arith.constant 0 : index
    %1 = vector.load %arg2[%c0_1, %c0_2] : memref<1x128xf32, #tpu.memory_space<vmem>>, vector<1x128xf32>
    %c0_3 = arith.constant 0 : index
    %c0_4 = arith.constant 0 : index
    %2 = vector.load %arg3[%c0_3, %c0_4] : memref<1x128xf32, #tpu.memory_space<vmem>>, vector<1x128xf32>
    %cst = arith.constant dense<0.000000e+00> : vector<2xf32>
    %3 = vector.multi_reduction <add>, %0, %cst [1] : vector<2x128xf32> to vector<2xf32>
    %4 = vector.shape_cast %3 : vector<2xf32> to vector<2x1xf32>
    %cst_5 = arith.constant 1.280000e+02 : f32
    %5 = vector.broadcast %cst_5 : f32 to vector<2x1xf32>
    %6 = arith.divf %4, %5 : vector<2x1xf32>
    %7 = vector.broadcast %6 : vector<2x1xf32> to vector<2x128xf32>
    %8 = arith.subf %0, %7 : vector<2x128xf32>
    %9 = arith.mulf %8, %8 : vector<2x128xf32>
    %cst_6 = arith.constant dense<0.000000e+00> : vector<2xf32>
    %10 = vector.multi_reduction <add>, %9, %cst_6 [1] : vector<2x128xf32> to vector<2xf32>
    %11 = vector.shape_cast %10 : vector<2xf32> to vector<2x1xf32>
    %cst_7 = arith.constant 1.280000e+02 : f32
    %12 = vector.broadcast %cst_7 : f32 to vector<2x1xf32>
    %13 = arith.divf %11, %12 : vector<2x1xf32>
    %14 = vector.broadcast %6 : vector<2x1xf32> to vector<2x128xf32>
    %15 = arith.subf %0, %14 : vector<2x128xf32>
    %cst_8 = arith.constant 9.99999996E-13 : f32
    %16 = vector.broadcast %cst_8 : f32 to vector<2x1xf32>
    %17 = arith.addf %13, %16 : vector<2x1xf32>
    %18 = math.rsqrt %17 : vector<2x1xf32>
    %19 = vector.broadcast %18 : vector<2x1xf32> to vector<2x128xf32>
    %20 = arith.mulf %15, %19 : vector<2x128xf32>
    %21 = vector.broadcast %1 : vector<1x128xf32> to vector<2x128xf32>
    %22 = arith.mulf %20, %21 : vector<2x128xf32>
    %23 = vector.broadcast %2 : vector<1x128xf32> to vector<2x128xf32>
    %24 = arith.addf %22, %23 : vector<2x128xf32>
    %c0_9 = arith.constant 0 : index
    %c0_10 = arith.constant 0 : index
    %25 = vector.load %arg4[%c0_9, %c0_10] : memref<128x1152xf32, #tpu.memory_space<vmem>>, vector<128x1152xf32>
    %cst_11 = arith.constant dense<0.000000e+00> : vector<2x1152xf32>
    %26 = tpu.matmul %24, %25, %cst_11 {dimension_numbers = #tpu.dot_dimension_numbers<[1], [0], [0], [1], [0, 0, 1, 1], [], []>} : vector<2x128xf32>, vector<128x1152xf32>, vector<2x1152xf32> -> vector<2x1152xf32>
    %c0_12 = arith.constant 0 : index
    %c0_13 = arith.constant 0 : index
    %27 = vector.load %arg5[%c0_12, %c0_13] : memref<1x1152xf32, #tpu.memory_space<vmem>>, vector<1x1152xf32>
    %28 = vector.broadcast %27 : vector<1x1152xf32> to vector<2x1152xf32>
    %29 = arith.addf %26, %28 : vector<2x1152xf32>
    %c0_14 = arith.constant 0 : index
    %c0_15 = arith.constant 0 : index
    %30 = vector.load %arg6[%c0_14, %c0_15] : memref<2x1152xf32, #tpu.memory_space<vmem>>, vector<2x1152xf32>
    tpu.vector_store %arg6[%c0_14, %c0_15], %29 {strides = array<i32>} : memref<2x1152xf32, #tpu.memory_space<vmem>>, vector<2x1152xf32>,
    return
  }
  func.func @transform_0(%arg0: i32) -> (i32, i32) {
    %c0_i32 = arith.constant 0 : i32
    %c0_i32_0 = arith.constant 0 : i32
    %c0_i32_1 = arith.constant 0 : i32
    return %c0_i32, %c0_i32_0 : i32, i32
  }
  func.func @transform_1(%arg0: i32) -> (i32, i32) {
    %c0_i32 = arith.constant 0 : i32
    %c0_i32_0 = arith.constant 0 : i32
    %c0_i32_1 = arith.constant 0 : i32
    return %c0_i32, %c0_i32_0 : i32, i32
  }
  func.func @transform_2(%arg0: i32) -> (i32, i32) {
    %c0_i32 = arith.constant 0 : i32
    %c0_i32_0 = arith.constant 0 : i32
    %c0_i32_1 = arith.constant 0 : i32
    return %c0_i32, %c0_i32_0 : i32, i32
  }
  func.func @transform_3(%arg0: i32) -> (i32, i32) {
    %c0_i32 = arith.constant 0 : i32
    %c0_i32_0 = arith.constant 0 : i32
    %c0_i32_1 = arith.constant 0 : i32
    return %c0_i32, %c0_i32_0 : i32, i32
  }
  func.func @transform_4(%arg0: i32) -> (i32, i32) {
    %c0_i32 = arith.constant 0 : i32
    %c0_i32_0 = arith.constant 0 : i32
    %c0_i32_1 = arith.constant 0 : i32
    return %c0_i32, %c0_i32_0 : i32, i32
  }
  func.func @transform_5(%arg0: i32) -> (i32, i32) {
    %c0_i32 = arith.constant 0 : i32
    %c0_i32_0 = arith.constant 0 : i32
    %c0_i32_1 = arith.constant 0 : i32
    return %c0_i32, %c0_i32_0 : i32, i32
  }
}

module attributes {stable_mosaic.version = 11 : i64} {
  func.func @_encoder_kernel(%arg0: i32, %arg1: memref<16x128xf32, #tpu.memory_space<vmem>>, %arg2: memref<1x1x128xf32, #tpu.memory_space<vmem>>, %arg3: memref<1x1x128xf32, #tpu.memory_space<vmem>>, %arg4: memref<1x128x384xf32, #tpu.memory_space<vmem>>, %arg5: memref<1x1x384xf32, #tpu.memory_space<vmem>>, %arg6: memref<1x128x128xf32, #tpu.memory_space<vmem>>, %arg7: memref<1x1x128xf32, #tpu.memory_space<vmem>>, %arg8: memref<1x1x128xf32, #tpu.memory_space<vmem>>, %arg9: memref<1x1x128xf32, #tpu.memory_space<vmem>>, %arg10: memref<1x128x512xf32, #tpu.memory_space<vmem>>, %arg11: memref<1x1x512xf32, #tpu.memory_space<vmem>>, %arg12: memref<1x512x128xf32, #tpu.memory_space<vmem>>, %arg13: memref<1x1x128xf32, #tpu.memory_space<vmem>>, %arg14: memref<16x128xf32, #tpu.memory_space<vmem>>) attributes {dimension_semantics = [#tpu.dimension_semantics<arbitrary>], iteration_bounds = array<i64: 2>, scalar_prefetch = 0 : i64, scratch_operands = 0 : i64, tpu.core_type = #tpu.core_type<tc>, window_params = [{pipeline_mode = #tpu.pipeline_mode<synchronous>, transform_indices = @transform_0, window_bounds = array<i64: 16, 128>}, {transform_indices = @transform_1, window_bounds = array<i64: 1, 1, 128>}, {transform_indices = @transform_2, window_bounds = array<i64: 1, 1, 128>}, {transform_indices = @transform_3, window_bounds = array<i64: 1, 128, 384>}, {transform_indices = @transform_4, window_bounds = array<i64: 1, 1, 384>}, {transform_indices = @transform_5, window_bounds = array<i64: 1, 128, 128>}, {transform_indices = @transform_6, window_bounds = array<i64: 1, 1, 128>}, {transform_indices = @transform_7, window_bounds = array<i64: 1, 1, 128>}, {transform_indices = @transform_8, window_bounds = array<i64: 1, 1, 128>}, {transform_indices = @transform_9, window_bounds = array<i64: 1, 128, 512>}, {transform_indices = @transform_10, window_bounds = array<i64: 1, 1, 512>}, {transform_indices = @transform_11, window_bounds = array<i64: 1, 512, 128>}, {transform_indices = @transform_12, window_bounds = array<i64: 1, 1, 128>}, {pipeline_mode = #tpu.pipeline_mode<synchronous>, transform_indices = @transform_13, window_bounds = array<i64: 16, 128>}]} {
    %c0_i32 = arith.constant 0 : i32
    %0 = arith.cmpi eq, %arg0, %c0_i32 : i32
    %1 = arith.extui %0 : i1 to i32
    %c0_i32_0 = arith.constant 0 : i32
    %2 = arith.cmpi ne, %1, %c0_i32_0 : i32
    scf.if %2 {
      %c0_105 = arith.constant 0 : index
      %c0_106 = arith.constant 0 : index
      %267 = vector.load %arg1[%c0_105, %c0_106] : memref<16x128xf32, #tpu.memory_space<vmem>>, vector<16x128xf32>
      %c0_107 = arith.constant 0 : index
      %c0_108 = arith.constant 0 : index
      %268 = vector.load %arg14[%c0_107, %c0_108] : memref<16x128xf32, #tpu.memory_space<vmem>>, vector<16x128xf32>
      tpu.vector_store %arg14[%c0_107, %c0_108], %267 {strides = array<i32>} : memref<16x128xf32, #tpu.memory_space<vmem>>, vector<16x128xf32>,
    } else {
    }
    %c0 = arith.constant 0 : index
    %c0_1 = arith.constant 0 : index
    %3 = vector.load %arg14[%c0, %c0_1] : memref<16x128xf32, #tpu.memory_space<vmem>>, vector<16x128xf32>
    %c0_2 = arith.constant 0 : index
    %c0_3 = arith.constant 0 : index
    %c0_4 = arith.constant 0 : index
    %4 = vector.load %arg2[%c0_2, %c0_3, %c0_4] : memref<1x1x128xf32, #tpu.memory_space<vmem>>, vector<1x1x128xf32>
    %5 = vector.shape_cast %4 : vector<1x1x128xf32> to vector<1x128xf32>
    %c0_5 = arith.constant 0 : index
    %c0_6 = arith.constant 0 : index
    %c0_7 = arith.constant 0 : index
    %6 = vector.load %arg3[%c0_5, %c0_6, %c0_7] : memref<1x1x128xf32, #tpu.memory_space<vmem>>, vector<1x1x128xf32>
    %7 = vector.shape_cast %6 : vector<1x1x128xf32> to vector<1x128xf32>
    %cst = arith.constant dense<0.000000e+00> : vector<16xf32>
    %8 = vector.multi_reduction <add>, %3, %cst [1] : vector<16x128xf32> to vector<16xf32>
    %9 = vector.shape_cast %8 : vector<16xf32> to vector<16x1xf32>
    %cst_8 = arith.constant 1.280000e+02 : f32
    %10 = vector.broadcast %cst_8 : f32 to vector<16x1xf32>
    %11 = arith.divf %9, %10 : vector<16x1xf32>
    %12 = vector.broadcast %11 : vector<16x1xf32> to vector<16x128xf32>
    %13 = arith.subf %3, %12 : vector<16x128xf32>
    %14 = arith.mulf %13, %13 : vector<16x128xf32>
    %cst_9 = arith.constant dense<0.000000e+00> : vector<16xf32>
    %15 = vector.multi_reduction <add>, %14, %cst_9 [1] : vector<16x128xf32> to vector<16xf32>
    %16 = vector.shape_cast %15 : vector<16xf32> to vector<16x1xf32>
    %cst_10 = arith.constant 1.280000e+02 : f32
    %17 = vector.broadcast %cst_10 : f32 to vector<16x1xf32>
    %18 = arith.divf %16, %17 : vector<16x1xf32>
    %19 = vector.broadcast %11 : vector<16x1xf32> to vector<16x128xf32>
    %20 = arith.subf %3, %19 : vector<16x128xf32>
    %cst_11 = arith.constant 9.99999996E-13 : f32
    %21 = vector.broadcast %cst_11 : f32 to vector<16x1xf32>
    %22 = arith.addf %18, %21 : vector<16x1xf32>
    %23 = math.rsqrt %22 : vector<16x1xf32>
    %24 = vector.broadcast %23 : vector<16x1xf32> to vector<16x128xf32>
    %25 = arith.mulf %20, %24 : vector<16x128xf32>
    %26 = vector.broadcast %5 : vector<1x128xf32> to vector<16x128xf32>
    %27 = arith.mulf %25, %26 : vector<16x128xf32>
    %28 = vector.broadcast %7 : vector<1x128xf32> to vector<16x128xf32>
    %29 = arith.addf %27, %28 : vector<16x128xf32>
    %c0_12 = arith.constant 0 : index
    %c0_13 = arith.constant 0 : index
    %c0_14 = arith.constant 0 : index
    %30 = vector.load %arg4[%c0_12, %c0_13, %c0_14] : memref<1x128x384xf32, #tpu.memory_space<vmem>>, vector<1x128x384xf32>
    %31 = vector.shape_cast %30 : vector<1x128x384xf32> to vector<128x384xf32>
    %cst_15 = arith.constant dense<0.000000e+00> : vector<16x384xf32>
    %32 = tpu.matmul %29, %31, %cst_15 {dimension_numbers = #tpu.dot_dimension_numbers<[1], [0], [0], [1], [0, 0, 1, 1], [], []>} : vector<16x128xf32>, vector<128x384xf32>, vector<16x384xf32> -> vector<16x384xf32>
    %c0_16 = arith.constant 0 : index
    %c0_17 = arith.constant 0 : index
    %c0_18 = arith.constant 0 : index
    %33 = vector.load %arg5[%c0_16, %c0_17, %c0_18] : memref<1x1x384xf32, #tpu.memory_space<vmem>>, vector<1x1x384xf32>
    %34 = vector.shape_cast %33 : vector<1x1x384xf32> to vector<1x384xf32>
    %35 = vector.broadcast %34 : vector<1x384xf32> to vector<16x384xf32>
    %36 = arith.addf %32, %35 : vector<16x384xf32>
    %37 = vector.extract_strided_slice %36 {offsets = [0, 0], sizes = [16, 128], strides = [1, 1]} : vector<16x384xf32> to vector<16x128xf32>
    %38 = vector.extract_strided_slice %36 {offsets = [0, 128], sizes = [16, 128], strides = [1, 1]} : vector<16x384xf32> to vector<16x128xf32>
    %39 = vector.extract_strided_slice %36 {offsets = [0, 256], sizes = [16, 128], strides = [1, 1]} : vector<16x384xf32> to vector<16x128xf32>
    %40 = tpu.iota {dimensions = array<i32: 1>} : vector<8x8xi32>
    %c5_i32 = arith.constant 5 : i32
    %41 = vector.broadcast %c5_i32 : i32 to vector<8x8xi32>
    %42 = arith.cmpi slt, %40, %41 : vector<8x8xi32>
    %43 = vector.extract_strided_slice %37 {offsets = [0, 0], sizes = [8, 128], strides = [1, 1]} : vector<16x128xf32> to vector<8x128xf32>
    %44 = vector.extract_strided_slice %38 {offsets = [0, 0], sizes = [8, 128], strides = [1, 1]} : vector<16x128xf32> to vector<8x128xf32>
    %45 = vector.extract_strided_slice %39 {offsets = [0, 0], sizes = [8, 128], strides = [1, 1]} : vector<16x128xf32> to vector<8x128xf32>
    %46 = vector.extract_strided_slice %43 {offsets = [0, 0], sizes = [8, 32], strides = [1, 1]} : vector<8x128xf32> to vector<8x32xf32>
    %47 = vector.extract_strided_slice %44 {offsets = [0, 0], sizes = [8, 32], strides = [1, 1]} : vector<8x128xf32> to vector<8x32xf32>
    %48 = vector.extract_strided_slice %45 {offsets = [0, 0], sizes = [8, 32], strides = [1, 1]} : vector<8x128xf32> to vector<8x32xf32>
    %cst_19 = arith.constant dense<0.000000e+00> : vector<8x8xf32>
    %49 = tpu.matmul %46, %47, %cst_19 {dimension_numbers = #tpu.dot_dimension_numbers<[1], [1], [0], [0], [0, 0, 1, 0], [], []>} : vector<8x32xf32>, vector<8x32xf32>, vector<8x8xf32> -> vector<8x8xf32>
    %cst_20 = arith.constant 0.176776692 : f32
    %50 = vector.broadcast %cst_20 : f32 to vector<8x8xf32>
    %51 = arith.mulf %49, %50 : vector<8x8xf32>
    %cst_21 = arith.constant -1.000000e+30 : f32
    %52 = vector.broadcast %cst_21 : f32 to vector<8x8xf32>
    %53 = arith.select %42, %51, %52 : vector<8x8xi1>, vector<8x8xf32>
    %cst_22 = arith.constant dense<0xFF800000> : vector<8xf32>
    %54 = vector.multi_reduction <maximumf>, %53, %cst_22 [1] : vector<8x8xf32> to vector<8xf32>
    %55 = vector.shape_cast %54 : vector<8xf32> to vector<8x1xf32>
    %56 = vector.broadcast %55 : vector<8x1xf32> to vector<8x8xf32>
    %57 = arith.subf %53, %56 : vector<8x8xf32>
    %58 = math.exp %57 : vector<8x8xf32>
    %cst_23 = arith.constant dense<0.000000e+00> : vector<8xf32>
    %59 = vector.multi_reduction <add>, %58, %cst_23 [1] : vector<8x8xf32> to vector<8xf32>
    %60 = vector.shape_cast %59 : vector<8xf32> to vector<8x1xf32>
    %61 = tpu.reciprocal %60 {approx = true} : vector<8x1xf32> -> vector<8x1xf32>
    %62 = vector.broadcast %61 : vector<8x1xf32> to vector<8x8xf32>
    %63 = arith.mulf %58, %62 : vector<8x8xf32>
    %cst_24 = arith.constant dense<0.000000e+00> : vector<8x32xf32>
    %64 = tpu.matmul %63, %48, %cst_24 {dimension_numbers = #tpu.dot_dimension_numbers<[1], [0], [0], [1], [0, 0, 1, 1], [], []>} : vector<8x8xf32>, vector<8x32xf32>, vector<8x32xf32> -> vector<8x32xf32>
    %65 = vector.extract_strided_slice %43 {offsets = [0, 32], sizes = [8, 32], strides = [1, 1]} : vector<8x128xf32> to vector<8x32xf32>
    %66 = vector.extract_strided_slice %44 {offsets = [0, 32], sizes = [8, 32], strides = [1, 1]} : vector<8x128xf32> to vector<8x32xf32>
    %67 = vector.extract_strided_slice %45 {offsets = [0, 32], sizes = [8, 32], strides = [1, 1]} : vector<8x128xf32> to vector<8x32xf32>
    %cst_25 = arith.constant dense<0.000000e+00> : vector<8x8xf32>
    %68 = tpu.matmul %65, %66, %cst_25 {dimension_numbers = #tpu.dot_dimension_numbers<[1], [1], [0], [0], [0, 0, 1, 0], [], []>} : vector<8x32xf32>, vector<8x32xf32>, vector<8x8xf32> -> vector<8x8xf32>
    %cst_26 = arith.constant 0.176776692 : f32
    %69 = vector.broadcast %cst_26 : f32 to vector<8x8xf32>
    %70 = arith.mulf %68, %69 : vector<8x8xf32>
    %cst_27 = arith.constant -1.000000e+30 : f32
    %71 = vector.broadcast %cst_27 : f32 to vector<8x8xf32>
    %72 = arith.select %42, %70, %71 : vector<8x8xi1>, vector<8x8xf32>
    %cst_28 = arith.constant dense<0xFF800000> : vector<8xf32>
    %73 = vector.multi_reduction <maximumf>, %72, %cst_28 [1] : vector<8x8xf32> to vector<8xf32>
    %74 = vector.shape_cast %73 : vector<8xf32> to vector<8x1xf32>
    %75 = vector.broadcast %74 : vector<8x1xf32> to vector<8x8xf32>
    %76 = arith.subf %72, %75 : vector<8x8xf32>
    %77 = math.exp %76 : vector<8x8xf32>
    %cst_29 = arith.constant dense<0.000000e+00> : vector<8xf32>
    %78 = vector.multi_reduction <add>, %77, %cst_29 [1] : vector<8x8xf32> to vector<8xf32>
    %79 = vector.shape_cast %78 : vector<8xf32> to vector<8x1xf32>
    %80 = tpu.reciprocal %79 {approx = true} : vector<8x1xf32> -> vector<8x1xf32>
    %81 = vector.broadcast %80 : vector<8x1xf32> to vector<8x8xf32>
    %82 = arith.mulf %77, %81 : vector<8x8xf32>
    %cst_30 = arith.constant dense<0.000000e+00> : vector<8x32xf32>
    %83 = tpu.matmul %82, %67, %cst_30 {dimension_numbers = #tpu.dot_dimension_numbers<[1], [0], [0], [1], [0, 0, 1, 1], [], []>} : vector<8x8xf32>, vector<8x32xf32>, vector<8x32xf32> -> vector<8x32xf32>
    %84 = vector.extract_strided_slice %43 {offsets = [0, 64], sizes = [8, 32], strides = [1, 1]} : vector<8x128xf32> to vector<8x32xf32>
    %85 = vector.extract_strided_slice %44 {offsets = [0, 64], sizes = [8, 32], strides = [1, 1]} : vector<8x128xf32> to vector<8x32xf32>
    %86 = vector.extract_strided_slice %45 {offsets = [0, 64], sizes = [8, 32], strides = [1, 1]} : vector<8x128xf32> to vector<8x32xf32>
    %cst_31 = arith.constant dense<0.000000e+00> : vector<8x8xf32>
    %87 = tpu.matmul %84, %85, %cst_31 {dimension_numbers = #tpu.dot_dimension_numbers<[1], [1], [0], [0], [0, 0, 1, 0], [], []>} : vector<8x32xf32>, vector<8x32xf32>, vector<8x8xf32> -> vector<8x8xf32>
    %cst_32 = arith.constant 0.176776692 : f32
    %88 = vector.broadcast %cst_32 : f32 to vector<8x8xf32>
    %89 = arith.mulf %87, %88 : vector<8x8xf32>
    %cst_33 = arith.constant -1.000000e+30 : f32
    %90 = vector.broadcast %cst_33 : f32 to vector<8x8xf32>
    %91 = arith.select %42, %89, %90 : vector<8x8xi1>, vector<8x8xf32>
    %cst_34 = arith.constant dense<0xFF800000> : vector<8xf32>
    %92 = vector.multi_reduction <maximumf>, %91, %cst_34 [1] : vector<8x8xf32> to vector<8xf32>
    %93 = vector.shape_cast %92 : vector<8xf32> to vector<8x1xf32>
    %94 = vector.broadcast %93 : vector<8x1xf32> to vector<8x8xf32>
    %95 = arith.subf %91, %94 : vector<8x8xf32>
    %96 = math.exp %95 : vector<8x8xf32>
    %cst_35 = arith.constant dense<0.000000e+00> : vector<8xf32>
    %97 = vector.multi_reduction <add>, %96, %cst_35 [1] : vector<8x8xf32> to vector<8xf32>
    %98 = vector.shape_cast %97 : vector<8xf32> to vector<8x1xf32>
    %99 = tpu.reciprocal %98 {approx = true} : vector<8x1xf32> -> vector<8x1xf32>
    %100 = vector.broadcast %99 : vector<8x1xf32> to vector<8x8xf32>
    %101 = arith.mulf %96, %100 : vector<8x8xf32>
    %cst_36 = arith.constant dense<0.000000e+00> : vector<8x32xf32>
    %102 = tpu.matmul %101, %86, %cst_36 {dimension_numbers = #tpu.dot_dimension_numbers<[1], [0], [0], [1], [0, 0, 1, 1], [], []>} : vector<8x8xf32>, vector<8x32xf32>, vector<8x32xf32> -> vector<8x32xf32>
    %103 = vector.extract_strided_slice %43 {offsets = [0, 96], sizes = [8, 32], strides = [1, 1]} : vector<8x128xf32> to vector<8x32xf32>
    %104 = vector.extract_strided_slice %44 {offsets = [0, 96], sizes = [8, 32], strides = [1, 1]} : vector<8x128xf32> to vector<8x32xf32>
    %105 = vector.extract_strided_slice %45 {offsets = [0, 96], sizes = [8, 32], strides = [1, 1]} : vector<8x128xf32> to vector<8x32xf32>
    %cst_37 = arith.constant dense<0.000000e+00> : vector<8x8xf32>
    %106 = tpu.matmul %103, %104, %cst_37 {dimension_numbers = #tpu.dot_dimension_numbers<[1], [1], [0], [0], [0, 0, 1, 0], [], []>} : vector<8x32xf32>, vector<8x32xf32>, vector<8x8xf32> -> vector<8x8xf32>
    %cst_38 = arith.constant 0.176776692 : f32
    %107 = vector.broadcast %cst_38 : f32 to vector<8x8xf32>
    %108 = arith.mulf %106, %107 : vector<8x8xf32>
    %cst_39 = arith.constant -1.000000e+30 : f32
    %109 = vector.broadcast %cst_39 : f32 to vector<8x8xf32>
    %110 = arith.select %42, %108, %109 : vector<8x8xi1>, vector<8x8xf32>
    %cst_40 = arith.constant dense<0xFF800000> : vector<8xf32>
    %111 = vector.multi_reduction <maximumf>, %110, %cst_40 [1] : vector<8x8xf32> to vector<8xf32>
    %112 = vector.shape_cast %111 : vector<8xf32> to vector<8x1xf32>
    %113 = vector.broadcast %112 : vector<8x1xf32> to vector<8x8xf32>
    %114 = arith.subf %110, %113 : vector<8x8xf32>
    %115 = math.exp %114 : vector<8x8xf32>
    %cst_41 = arith.constant dense<0.000000e+00> : vector<8xf32>
    %116 = vector.multi_reduction <add>, %115, %cst_41 [1] : vector<8x8xf32> to vector<8xf32>
    %117 = vector.shape_cast %116 : vector<8xf32> to vector<8x1xf32>
    %118 = tpu.reciprocal %117 {approx = true} : vector<8x1xf32> -> vector<8x1xf32>
    %119 = vector.broadcast %118 : vector<8x1xf32> to vector<8x8xf32>
    %120 = arith.mulf %115, %119 : vector<8x8xf32>
    %cst_42 = arith.constant dense<0.000000e+00> : vector<8x32xf32>
    %121 = tpu.matmul %120, %105, %cst_42 {dimension_numbers = #tpu.dot_dimension_numbers<[1], [0], [0], [1], [0, 0, 1, 1], [], []>} : vector<8x8xf32>, vector<8x32xf32>, vector<8x32xf32> -> vector<8x32xf32>
    %122 = tpu.concatenate %64, %83, %102, %121 in 1 : vector<8x32xf32>, vector<8x32xf32>, vector<8x32xf32>, vector<8x32xf32> -> vector<8x128xf32>
    %123 = vector.extract_strided_slice %37 {offsets = [8, 0], sizes = [8, 128], strides = [1, 1]} : vector<16x128xf32> to vector<8x128xf32>
    %124 = vector.extract_strided_slice %38 {offsets = [8, 0], sizes = [8, 128], strides = [1, 1]} : vector<16x128xf32> to vector<8x128xf32>
    %125 = vector.extract_strided_slice %39 {offsets = [8, 0], sizes = [8, 128], strides = [1, 1]} : vector<16x128xf32> to vector<8x128xf32>
    %126 = vector.extract_strided_slice %123 {offsets = [0, 0], sizes = [8, 32], strides = [1, 1]} : vector<8x128xf32> to vector<8x32xf32>
    %127 = vector.extract_strided_slice %124 {offsets = [0, 0], sizes = [8, 32], strides = [1, 1]} : vector<8x128xf32> to vector<8x32xf32>
    %128 = vector.extract_strided_slice %125 {offsets = [0, 0], sizes = [8, 32], strides = [1, 1]} : vector<8x128xf32> to vector<8x32xf32>
    %cst_43 = arith.constant dense<0.000000e+00> : vector<8x8xf32>
    %129 = tpu.matmul %126, %127, %cst_43 {dimension_numbers = #tpu.dot_dimension_numbers<[1], [1], [0], [0], [0, 0, 1, 0], [], []>} : vector<8x32xf32>, vector<8x32xf32>, vector<8x8xf32> -> vector<8x8xf32>
    %cst_44 = arith.constant 0.176776692 : f32
    %130 = vector.broadcast %cst_44 : f32 to vector<8x8xf32>
    %131 = arith.mulf %129, %130 : vector<8x8xf32>
    %cst_45 = arith.constant -1.000000e+30 : f32
    %132 = vector.broadcast %cst_45 : f32 to vector<8x8xf32>
    %133 = arith.select %42, %131, %132 : vector<8x8xi1>, vector<8x8xf32>
    %cst_46 = arith.constant dense<0xFF800000> : vector<8xf32>
    %134 = vector.multi_reduction <maximumf>, %133, %cst_46 [1] : vector<8x8xf32> to vector<8xf32>
    %135 = vector.shape_cast %134 : vector<8xf32> to vector<8x1xf32>
    %136 = vector.broadcast %135 : vector<8x1xf32> to vector<8x8xf32>
    %137 = arith.subf %133, %136 : vector<8x8xf32>
    %138 = math.exp %137 : vector<8x8xf32>
    %cst_47 = arith.constant dense<0.000000e+00> : vector<8xf32>
    %139 = vector.multi_reduction <add>, %138, %cst_47 [1] : vector<8x8xf32> to vector<8xf32>
    %140 = vector.shape_cast %139 : vector<8xf32> to vector<8x1xf32>
    %141 = tpu.reciprocal %140 {approx = true} : vector<8x1xf32> -> vector<8x1xf32>
    %142 = vector.broadcast %141 : vector<8x1xf32> to vector<8x8xf32>
    %143 = arith.mulf %138, %142 : vector<8x8xf32>
    %cst_48 = arith.constant dense<0.000000e+00> : vector<8x32xf32>
    %144 = tpu.matmul %143, %128, %cst_48 {dimension_numbers = #tpu.dot_dimension_numbers<[1], [0], [0], [1], [0, 0, 1, 1], [], []>} : vector<8x8xf32>, vector<8x32xf32>, vector<8x32xf32> -> vector<8x32xf32>
    %145 = vector.extract_strided_slice %123 {offsets = [0, 32], sizes = [8, 32], strides = [1, 1]} : vector<8x128xf32> to vector<8x32xf32>
    %146 = vector.extract_strided_slice %124 {offsets = [0, 32], sizes = [8, 32], strides = [1, 1]} : vector<8x128xf32> to vector<8x32xf32>
    %147 = vector.extract_strided_slice %125 {offsets = [0, 32], sizes = [8, 32], strides = [1, 1]} : vector<8x128xf32> to vector<8x32xf32>
    %cst_49 = arith.constant dense<0.000000e+00> : vector<8x8xf32>
    %148 = tpu.matmul %145, %146, %cst_49 {dimension_numbers = #tpu.dot_dimension_numbers<[1], [1], [0], [0], [0, 0, 1, 0], [], []>} : vector<8x32xf32>, vector<8x32xf32>, vector<8x8xf32> -> vector<8x8xf32>
    %cst_50 = arith.constant 0.176776692 : f32
    %149 = vector.broadcast %cst_50 : f32 to vector<8x8xf32>
    %150 = arith.mulf %148, %149 : vector<8x8xf32>
    %cst_51 = arith.constant -1.000000e+30 : f32
    %151 = vector.broadcast %cst_51 : f32 to vector<8x8xf32>
    %152 = arith.select %42, %150, %151 : vector<8x8xi1>, vector<8x8xf32>
    %cst_52 = arith.constant dense<0xFF800000> : vector<8xf32>
    %153 = vector.multi_reduction <maximumf>, %152, %cst_52 [1] : vector<8x8xf32> to vector<8xf32>
    %154 = vector.shape_cast %153 : vector<8xf32> to vector<8x1xf32>
    %155 = vector.broadcast %154 : vector<8x1xf32> to vector<8x8xf32>
    %156 = arith.subf %152, %155 : vector<8x8xf32>
    %157 = math.exp %156 : vector<8x8xf32>
    %cst_53 = arith.constant dense<0.000000e+00> : vector<8xf32>
    %158 = vector.multi_reduction <add>, %157, %cst_53 [1] : vector<8x8xf32> to vector<8xf32>
    %159 = vector.shape_cast %158 : vector<8xf32> to vector<8x1xf32>
    %160 = tpu.reciprocal %159 {approx = true} : vector<8x1xf32> -> vector<8x1xf32>
    %161 = vector.broadcast %160 : vector<8x1xf32> to vector<8x8xf32>
    %162 = arith.mulf %157, %161 : vector<8x8xf32>
    %cst_54 = arith.constant dense<0.000000e+00> : vector<8x32xf32>
    %163 = tpu.matmul %162, %147, %cst_54 {dimension_numbers = #tpu.dot_dimension_numbers<[1], [0], [0], [1], [0, 0, 1, 1], [], []>} : vector<8x8xf32>, vector<8x32xf32>, vector<8x32xf32> -> vector<8x32xf32>
    %164 = vector.extract_strided_slice %123 {offsets = [0, 64], sizes = [8, 32], strides = [1, 1]} : vector<8x128xf32> to vector<8x32xf32>
    %165 = vector.extract_strided_slice %124 {offsets = [0, 64], sizes = [8, 32], strides = [1, 1]} : vector<8x128xf32> to vector<8x32xf32>
    %166 = vector.extract_strided_slice %125 {offsets = [0, 64], sizes = [8, 32], strides = [1, 1]} : vector<8x128xf32> to vector<8x32xf32>
    %cst_55 = arith.constant dense<0.000000e+00> : vector<8x8xf32>
    %167 = tpu.matmul %164, %165, %cst_55 {dimension_numbers = #tpu.dot_dimension_numbers<[1], [1], [0], [0], [0, 0, 1, 0], [], []>} : vector<8x32xf32>, vector<8x32xf32>, vector<8x8xf32> -> vector<8x8xf32>
    %cst_56 = arith.constant 0.176776692 : f32
    %168 = vector.broadcast %cst_56 : f32 to vector<8x8xf32>
    %169 = arith.mulf %167, %168 : vector<8x8xf32>
    %cst_57 = arith.constant -1.000000e+30 : f32
    %170 = vector.broadcast %cst_57 : f32 to vector<8x8xf32>
    %171 = arith.select %42, %169, %170 : vector<8x8xi1>, vector<8x8xf32>
    %cst_58 = arith.constant dense<0xFF800000> : vector<8xf32>
    %172 = vector.multi_reduction <maximumf>, %171, %cst_58 [1] : vector<8x8xf32> to vector<8xf32>
    %173 = vector.shape_cast %172 : vector<8xf32> to vector<8x1xf32>
    %174 = vector.broadcast %173 : vector<8x1xf32> to vector<8x8xf32>
    %175 = arith.subf %171, %174 : vector<8x8xf32>
    %176 = math.exp %175 : vector<8x8xf32>
    %cst_59 = arith.constant dense<0.000000e+00> : vector<8xf32>
    %177 = vector.multi_reduction <add>, %176, %cst_59 [1] : vector<8x8xf32> to vector<8xf32>
    %178 = vector.shape_cast %177 : vector<8xf32> to vector<8x1xf32>
    %179 = tpu.reciprocal %178 {approx = true} : vector<8x1xf32> -> vector<8x1xf32>
    %180 = vector.broadcast %179 : vector<8x1xf32> to vector<8x8xf32>
    %181 = arith.mulf %176, %180 : vector<8x8xf32>
    %cst_60 = arith.constant dense<0.000000e+00> : vector<8x32xf32>
    %182 = tpu.matmul %181, %166, %cst_60 {dimension_numbers = #tpu.dot_dimension_numbers<[1], [0], [0], [1], [0, 0, 1, 1], [], []>} : vector<8x8xf32>, vector<8x32xf32>, vector<8x32xf32> -> vector<8x32xf32>
    %183 = vector.extract_strided_slice %123 {offsets = [0, 96], sizes = [8, 32], strides = [1, 1]} : vector<8x128xf32> to vector<8x32xf32>
    %184 = vector.extract_strided_slice %124 {offsets = [0, 96], sizes = [8, 32], strides = [1, 1]} : vector<8x128xf32> to vector<8x32xf32>
    %185 = vector.extract_strided_slice %125 {offsets = [0, 96], sizes = [8, 32], strides = [1, 1]} : vector<8x128xf32> to vector<8x32xf32>
    %cst_61 = arith.constant dense<0.000000e+00> : vector<8x8xf32>
    %186 = tpu.matmul %183, %184, %cst_61 {dimension_numbers = #tpu.dot_dimension_numbers<[1], [1], [0], [0], [0, 0, 1, 0], [], []>} : vector<8x32xf32>, vector<8x32xf32>, vector<8x8xf32> -> vector<8x8xf32>
    %cst_62 = arith.constant 0.176776692 : f32
    %187 = vector.broadcast %cst_62 : f32 to vector<8x8xf32>
    %188 = arith.mulf %186, %187 : vector<8x8xf32>
    %cst_63 = arith.constant -1.000000e+30 : f32
    %189 = vector.broadcast %cst_63 : f32 to vector<8x8xf32>
    %190 = arith.select %42, %188, %189 : vector<8x8xi1>, vector<8x8xf32>
    %cst_64 = arith.constant dense<0xFF800000> : vector<8xf32>
    %191 = vector.multi_reduction <maximumf>, %190, %cst_64 [1] : vector<8x8xf32> to vector<8xf32>
    %192 = vector.shape_cast %191 : vector<8xf32> to vector<8x1xf32>
    %193 = vector.broadcast %192 : vector<8x1xf32> to vector<8x8xf32>
    %194 = arith.subf %190, %193 : vector<8x8xf32>
    %195 = math.exp %194 : vector<8x8xf32>
    %cst_65 = arith.constant dense<0.000000e+00> : vector<8xf32>
    %196 = vector.multi_reduction <add>, %195, %cst_65 [1] : vector<8x8xf32> to vector<8xf32>
    %197 = vector.shape_cast %196 : vector<8xf32> to vector<8x1xf32>
    %198 = tpu.reciprocal %197 {approx = true} : vector<8x1xf32> -> vector<8x1xf32>
    %199 = vector.broadcast %198 : vector<8x1xf32> to vector<8x8xf32>
    %200 = arith.mulf %195, %199 : vector<8x8xf32>
    %cst_66 = arith.constant dense<0.000000e+00> : vector<8x32xf32>
    %201 = tpu.matmul %200, %185, %cst_66 {dimension_numbers = #tpu.dot_dimension_numbers<[1], [0], [0], [1], [0, 0, 1, 1], [], []>} : vector<8x8xf32>, vector<8x32xf32>, vector<8x32xf32> -> vector<8x32xf32>
    %202 = tpu.concatenate %144, %163, %182, %201 in 1 : vector<8x32xf32>, vector<8x32xf32>, vector<8x32xf32>, vector<8x32xf32> -> vector<8x128xf32>
    %203 = tpu.concatenate %122, %202 in 0 : vector<8x128xf32>, vector<8x128xf32> -> vector<16x128xf32>
    %c0_67 = arith.constant 0 : index
    %c0_68 = arith.constant 0 : index
    %c0_69 = arith.constant 0 : index
    %204 = vector.load %arg6[%c0_67, %c0_68, %c0_69] : memref<1x128x128xf32, #tpu.memory_space<vmem>>, vector<1x128x128xf32>
    %205 = vector.shape_cast %204 : vector<1x128x128xf32> to vector<128x128xf32>
    %cst_70 = arith.constant dense<0.000000e+00> : vector<16x128xf32>
    %206 = tpu.matmul %203, %205, %cst_70 {dimension_numbers = #tpu.dot_dimension_numbers<[1], [0], [0], [1], [0, 0, 1, 1], [], []>} : vector<16x128xf32>, vector<128x128xf32>, vector<16x128xf32> -> vector<16x128xf32>
    %c0_71 = arith.constant 0 : index
    %c0_72 = arith.constant 0 : index
    %c0_73 = arith.constant 0 : index
    %207 = vector.load %arg7[%c0_71, %c0_72, %c0_73] : memref<1x1x128xf32, #tpu.memory_space<vmem>>, vector<1x1x128xf32>
    %208 = vector.shape_cast %207 : vector<1x1x128xf32> to vector<1x128xf32>
    %209 = vector.broadcast %208 : vector<1x128xf32> to vector<16x128xf32>
    %210 = arith.addf %206, %209 : vector<16x128xf32>
    %211 = arith.addf %3, %210 : vector<16x128xf32>
    %c0_74 = arith.constant 0 : index
    %c0_75 = arith.constant 0 : index
    %c0_76 = arith.constant 0 : index
    %212 = vector.load %arg8[%c0_74, %c0_75, %c0_76] : memref<1x1x128xf32, #tpu.memory_space<vmem>>, vector<1x1x128xf32>
    %213 = vector.shape_cast %212 : vector<1x1x128xf32> to vector<1x128xf32>
    %c0_77 = arith.constant 0 : index
    %c0_78 = arith.constant 0 : index
    %c0_79 = arith.constant 0 : index
    %214 = vector.load %arg9[%c0_77, %c0_78, %c0_79] : memref<1x1x128xf32, #tpu.memory_space<vmem>>, vector<1x1x128xf32>
    %215 = vector.shape_cast %214 : vector<1x1x128xf32> to vector<1x128xf32>
    %cst_80 = arith.constant dense<0.000000e+00> : vector<16xf32>
    %216 = vector.multi_reduction <add>, %211, %cst_80 [1] : vector<16x128xf32> to vector<16xf32>
    %217 = vector.shape_cast %216 : vector<16xf32> to vector<16x1xf32>
    %cst_81 = arith.constant 1.280000e+02 : f32
    %218 = vector.broadcast %cst_81 : f32 to vector<16x1xf32>
    %219 = arith.divf %217, %218 : vector<16x1xf32>
    %220 = vector.broadcast %219 : vector<16x1xf32> to vector<16x128xf32>
    %221 = arith.subf %211, %220 : vector<16x128xf32>
    %222 = arith.mulf %221, %221 : vector<16x128xf32>
    %cst_82 = arith.constant dense<0.000000e+00> : vector<16xf32>
    %223 = vector.multi_reduction <add>, %222, %cst_82 [1] : vector<16x128xf32> to vector<16xf32>
    %224 = vector.shape_cast %223 : vector<16xf32> to vector<16x1xf32>
    %cst_83 = arith.constant 1.280000e+02 : f32
    %225 = vector.broadcast %cst_83 : f32 to vector<16x1xf32>
    %226 = arith.divf %224, %225 : vector<16x1xf32>
    %227 = vector.broadcast %219 : vector<16x1xf32> to vector<16x128xf32>
    %228 = arith.subf %211, %227 : vector<16x128xf32>
    %cst_84 = arith.constant 9.99999996E-13 : f32
    %229 = vector.broadcast %cst_84 : f32 to vector<16x1xf32>
    %230 = arith.addf %226, %229 : vector<16x1xf32>
    %231 = math.rsqrt %230 : vector<16x1xf32>
    %232 = vector.broadcast %231 : vector<16x1xf32> to vector<16x128xf32>
    %233 = arith.mulf %228, %232 : vector<16x128xf32>
    %234 = vector.broadcast %213 : vector<1x128xf32> to vector<16x128xf32>
    %235 = arith.mulf %233, %234 : vector<16x128xf32>
    %236 = vector.broadcast %215 : vector<1x128xf32> to vector<16x128xf32>
    %237 = arith.addf %235, %236 : vector<16x128xf32>
    %c0_85 = arith.constant 0 : index
    %c0_86 = arith.constant 0 : index
    %c0_87 = arith.constant 0 : index
    %238 = vector.load %arg10[%c0_85, %c0_86, %c0_87] : memref<1x128x512xf32, #tpu.memory_space<vmem>>, vector<1x128x512xf32>
    %239 = vector.shape_cast %238 : vector<1x128x512xf32> to vector<128x512xf32>
    %cst_88 = arith.constant dense<0.000000e+00> : vector<16x512xf32>
    %240 = tpu.matmul %237, %239, %cst_88 {dimension_numbers = #tpu.dot_dimension_numbers<[1], [0], [0], [1], [0, 0, 1, 1], [], []>} : vector<16x128xf32>, vector<128x512xf32>, vector<16x512xf32> -> vector<16x512xf32>
    %c0_89 = arith.constant 0 : index
    %c0_90 = arith.constant 0 : index
    %c0_91 = arith.constant 0 : index
    %241 = vector.load %arg11[%c0_89, %c0_90, %c0_91] : memref<1x1x512xf32, #tpu.memory_space<vmem>>, vector<1x1x512xf32>
    %242 = vector.shape_cast %241 : vector<1x1x512xf32> to vector<1x512xf32>
    %243 = vector.broadcast %242 : vector<1x512xf32> to vector<16x512xf32>
    %244 = arith.addf %240, %243 : vector<16x512xf32>
    %245 = arith.mulf %244, %244 : vector<16x512xf32>
    %246 = arith.mulf %244, %245 : vector<16x512xf32>
    %cst_92 = arith.constant 4.471500e-02 : f32
    %247 = vector.broadcast %cst_92 : f32 to vector<16x512xf32>
    %248 = arith.mulf %247, %246 : vector<16x512xf32>
    %249 = arith.addf %244, %248 : vector<16x512xf32>
    %cst_93 = arith.constant 0.797884583 : f32
    %250 = vector.broadcast %cst_93 : f32 to vector<16x512xf32>
    %251 = arith.mulf %250, %249 : vector<16x512xf32>
    %252 = math.tanh %251 : vector<16x512xf32>
    %cst_94 = arith.constant 1.000000e+00 : f32
    %253 = vector.broadcast %cst_94 : f32 to vector<16x512xf32>
    %254 = arith.addf %253, %252 : vector<16x512xf32>
    %cst_95 = arith.constant 5.000000e-01 : f32
    %255 = vector.broadcast %cst_95 : f32 to vector<16x512xf32>
    %256 = arith.mulf %255, %254 : vector<16x512xf32>
    %257 = arith.mulf %244, %256 : vector<16x512xf32>
    %c0_96 = arith.constant 0 : index
    %c0_97 = arith.constant 0 : index
    %c0_98 = arith.constant 0 : index
    %258 = vector.load %arg12[%c0_96, %c0_97, %c0_98] : memref<1x512x128xf32, #tpu.memory_space<vmem>>, vector<1x512x128xf32>
    %259 = vector.shape_cast %258 : vector<1x512x128xf32> to vector<512x128xf32>
    %cst_99 = arith.constant dense<0.000000e+00> : vector<16x128xf32>
    %260 = tpu.matmul %257, %259, %cst_99 {dimension_numbers = #tpu.dot_dimension_numbers<[1], [0], [0], [1], [0, 0, 1, 1], [], []>} : vector<16x512xf32>, vector<512x128xf32>, vector<16x128xf32> -> vector<16x128xf32>
    %c0_100 = arith.constant 0 : index
    %c0_101 = arith.constant 0 : index
    %c0_102 = arith.constant 0 : index
    %261 = vector.load %arg13[%c0_100, %c0_101, %c0_102] : memref<1x1x128xf32, #tpu.memory_space<vmem>>, vector<1x1x128xf32>
    %262 = vector.shape_cast %261 : vector<1x1x128xf32> to vector<1x128xf32>
    %263 = vector.broadcast %262 : vector<1x128xf32> to vector<16x128xf32>
    %264 = arith.addf %260, %263 : vector<16x128xf32>
    %265 = arith.addf %211, %264 : vector<16x128xf32>
    %c0_103 = arith.constant 0 : index
    %c0_104 = arith.constant 0 : index
    %266 = vector.load %arg14[%c0_103, %c0_104] : memref<16x128xf32, #tpu.memory_space<vmem>>, vector<16x128xf32>
    tpu.vector_store %arg14[%c0_103, %c0_104], %265 {strides = array<i32>} : memref<16x128xf32, #tpu.memory_space<vmem>>, vector<16x128xf32>,
    return
  }
  func.func @transform_0(%arg0: i32) -> (i32, i32) {
    %c0_i32 = arith.constant 0 : i32
    %c0_i32_0 = arith.constant 0 : i32
    %c0_i32_1 = arith.constant 0 : i32
    return %c0_i32, %c0_i32_0 : i32, i32
  }
  func.func @transform_1(%arg0: i32) -> (i32, i32, i32) {
    %c0_i32 = arith.constant 0 : i32
    %c0_i32_0 = arith.constant 0 : i32
    %c0_i32_1 = arith.constant 0 : i32
    return %arg0, %c0_i32, %c0_i32_0 : i32, i32, i32
  }
  func.func @transform_2(%arg0: i32) -> (i32, i32, i32) {
    %c0_i32 = arith.constant 0 : i32
    %c0_i32_0 = arith.constant 0 : i32
    %c0_i32_1 = arith.constant 0 : i32
    return %arg0, %c0_i32, %c0_i32_0 : i32, i32, i32
  }
  func.func @transform_3(%arg0: i32) -> (i32, i32, i32) {
    %c0_i32 = arith.constant 0 : i32
    %c0_i32_0 = arith.constant 0 : i32
    %c0_i32_1 = arith.constant 0 : i32
    return %arg0, %c0_i32, %c0_i32_0 : i32, i32, i32
  }
  func.func @transform_4(%arg0: i32) -> (i32, i32, i32) {
    %c0_i32 = arith.constant 0 : i32
    %c0_i32_0 = arith.constant 0 : i32
    %c0_i32_1 = arith.constant 0 : i32
    return %arg0, %c0_i32, %c0_i32_0 : i32, i32, i32
  }
  func.func @transform_5(%arg0: i32) -> (i32, i32, i32) {
    %c0_i32 = arith.constant 0 : i32
    %c0_i32_0 = arith.constant 0 : i32
    %c0_i32_1 = arith.constant 0 : i32
    return %arg0, %c0_i32, %c0_i32_0 : i32, i32, i32
  }
  func.func @transform_6(%arg0: i32) -> (i32, i32, i32) {
    %c0_i32 = arith.constant 0 : i32
    %c0_i32_0 = arith.constant 0 : i32
    %c0_i32_1 = arith.constant 0 : i32
    return %arg0, %c0_i32, %c0_i32_0 : i32, i32, i32
  }
  func.func @transform_7(%arg0: i32) -> (i32, i32, i32) {
    %c0_i32 = arith.constant 0 : i32
    %c0_i32_0 = arith.constant 0 : i32
    %c0_i32_1 = arith.constant 0 : i32
    return %arg0, %c0_i32, %c0_i32_0 : i32, i32, i32
  }
  func.func @transform_8(%arg0: i32) -> (i32, i32, i32) {
    %c0_i32 = arith.constant 0 : i32
    %c0_i32_0 = arith.constant 0 : i32
    %c0_i32_1 = arith.constant 0 : i32
    return %arg0, %c0_i32, %c0_i32_0 : i32, i32, i32
  }
  func.func @transform_9(%arg0: i32) -> (i32, i32, i32) {
    %c0_i32 = arith.constant 0 : i32
    %c0_i32_0 = arith.constant 0 : i32
    %c0_i32_1 = arith.constant 0 : i32
    return %arg0, %c0_i32, %c0_i32_0 : i32, i32, i32
  }
  func.func @transform_10(%arg0: i32) -> (i32, i32, i32) {
    %c0_i32 = arith.constant 0 : i32
    %c0_i32_0 = arith.constant 0 : i32
    %c0_i32_1 = arith.constant 0 : i32
    return %arg0, %c0_i32, %c0_i32_0 : i32, i32, i32
  }
  func.func @transform_11(%arg0: i32) -> (i32, i32, i32) {
    %c0_i32 = arith.constant 0 : i32
    %c0_i32_0 = arith.constant 0 : i32
    %c0_i32_1 = arith.constant 0 : i32
    return %arg0, %c0_i32, %c0_i32_0 : i32, i32, i32
  }
  func.func @transform_12(%arg0: i32) -> (i32, i32, i32) {
    %c0_i32 = arith.constant 0 : i32
    %c0_i32_0 = arith.constant 0 : i32
    %c0_i32_1 = arith.constant 0 : i32
    return %arg0, %c0_i32, %c0_i32_0 : i32, i32, i32
  }
  func.func @transform_13(%arg0: i32) -> (i32, i32) {
    %c0_i32 = arith.constant 0 : i32
    %c0_i32_0 = arith.constant 0 : i32
    %c0_i32_1 = arith.constant 0 : i32
    return %c0_i32, %c0_i32_0 : i32, i32
  }
}

</mosaic_0001>

<llo_original>
// kernel: vit_forward.3
$region0: #{vit_forward.3}
  #allocation0 [shape = 'u32[]', space=smem, size = 0x4, offset = 0x4, fixed_abs, tag = 'smem constant byte address 0x4 - core index']
  #allocation1 [shape = 'u32[144,128]{1,0:T(1,128)}', space=vmem, size = 0x12000, scoped, tag = 'internal scratch']
  %s0 = inlined_call_operand.vmem [shape: f32[8,768], index: 0, kind: input, shape index: {}]
  %s1 = inlined_call_operand.hbm [shape: f32[768,128], index: 1, kind: input, shape index: {}]
  %s2 = inlined_call_operand.vmem [shape: f32[1,128], index: 2, kind: input, shape index: {}]
  %s3 = inlined_call_operand.vmem [shape: f32[8,128], index: 3, kind: output, shape index: {}]
  %s4 = sld [smem:[#allocation0]]
  $region26: #{vit_forward.3} parent=0
    _
  %s6 = ssub.s32 1, %s4
  %s7 = scalar_select 0, %s6, %s4
  $region1: #{vit_forward.3} parent=0
    #allocation2 [shape = 'u8[393216]{0}', space=vmem, size = 0x60000, scoped, tag = 'input window, operand 1, single buffered']
    #allocation3 [shape = 's32[1]{0}', space=sflag, size = 0x4, scoped, tag = 'scoped memory for vit_forward.3']
    %8 = vsyncpa [#allocation3], 0
    // Predicated region
    $region2: #{vit_forward.3} parent=1 // pred_check
      _
    $region3: #{vit_forward.3} parent=1 // pred_check_branch
      %10 = sbr.rel (0) target = $region5
    $region4: #{vit_forward.3} parent=1 // pred_region
      _
    $region5: #{vit_forward.3} parent=1 // pred_fallthru
      _
    // Predicated region
    $region6: #{vit_forward.3} parent=1 // pred_check
      _
    $region7: #{vit_forward.3} parent=1 // pred_check_branch
      %12 = sbr.rel (0) target = $region9
    $region8: #{vit_forward.3} parent=1 // pred_region
      %s14 = ssub.s32 12288, 12288
      %15 = vsyncadd [#allocation3], %s14
      %s16 = sshll.u32 [#allocation2], 4
      %s17 = int_to_ptr.vmem [resolvable:$true] %s16
      %22 = dma.hbm_to_vmem [thread:$0]  %s1, 12288, %s17, [#allocation3], 128, 128, 8
    $region9: #{vit_forward.3} parent=1 // pred_fallthru
      _
    // Predicated region
    $region10: #{vit_forward.3} parent=1 // pred_check
      _
    $region11: #{vit_forward.3} parent=1 // pred_check_branch
      %24 = sbr.rel (0) target = $region13
    $region12: #{vit_forward.3} parent=1 // pred_region
      _
    $region13: #{vit_forward.3} parent=1 // pred_fallthru
      _
    // Predicated region
    $region14: #{vit_forward.3} parent=1 // pred_check
      _
    $region15: #{vit_forward.3} parent=1 // pred_check_branch
      %26 = sbr.rel (0) target = $region17
    $region16: #{vit_forward.3} parent=1 // pred_region
      %27 = dma.done [#allocation3], 12288
    $region17: #{vit_forward.3} parent=1 // pred_fallthru
      _
    %v28 = vld [vmem:[%s0] sm:$0xff]
    %v29 = vld [vmem:[%s0 + $0x8] sm:$0xff]
    %v30 = vld [vmem:[%s0 + $0x10] sm:$0xff]
    %v31 = vld [vmem:[%s0 + $0x18] sm:$0xff]
    %v32 = vld [vmem:[%s0 + $0x20] sm:$0xff]
    %v33 = vld [vmem:[%s0 + $0x28] sm:$0xff]
    %v34 = vld [vmem:[#allocation2] sm:$0xff]
    %v35 = vld [vmem:[#allocation2 + $0x8] sm:$0xff]
    %v36 = vld [vmem:[#allocation2 + $0x10] sm:$0xff]
    %v37 = vld [vmem:[#allocation2 + $0x18] sm:$0xff]
    %v38 = vld [vmem:[#allocation2 + $0x20] sm:$0xff]
    %v39 = vld [vmem:[#allocation2 + $0x28] sm:$0xff]
    %v40 = vld [vmem:[#allocation2 + $0x30] sm:$0xff]
    %v41 = vld [vmem:[#allocation2 + $0x38] sm:$0xff]
    %v42 = vld [vmem:[#allocation2 + $0x40] sm:$0xff]
    %v43 = vld [vmem:[#allocation2 + $0x48] sm:$0xff]
    %v44 = vld [vmem:[#allocation2 + $0x50] sm:$0xff]
    %v45 = vld [vmem:[#allocation2 + $0x58] sm:$0xff]
    %v46 = vld [vmem:[#allocation2 + $0x60] sm:$0xff]
    %v47 = vld [vmem:[#allocation2 + $0x68] sm:$0xff]
    %v48 = vld [vmem:[#allocation2 + $0x70] sm:$0xff]
    %v49 = vld [vmem:[#allocation2 + $0x78] sm:$0xff]
    %v50 = vld [vmem:[#allocation2 + $0x80] sm:$0xff]
    %v51 = vld [vmem:[#allocation2 + $0x88] sm:$0xff]
    %v52 = vld [vmem:[#allocation2 + $0x90] sm:$0xff]
    %v53 = vld [vmem:[#allocation2 + $0x98] sm:$0xff]
    %v54 = vld [vmem:[#allocation2 + $0xa0] sm:$0xff]
    %v55 = vld [vmem:[#allocation2 + $0xa8] sm:$0xff]
    %v56 = vld [vmem:[#allocation2 + $0xb0] sm:$0xff]
    %v57 = vld [vmem:[#allocation2 + $0xb8] sm:$0xff]
    %v58 = vld [vmem:[#allocation2 + $0xc0] sm:$0xff]
    %v59 = vld [vmem:[#allocation2 + $0xc8] sm:$0xff]
    %v60 = vld [vmem:[#allocation2 + $0xd0] sm:$0xff]
    %v61 = vld [vmem:[#allocation2 + $0xd8] sm:$0xff]
    %v62 = vld [vmem:[#allocation2 + $0xe0] sm:$0xff]
    %v63 = vld [vmem:[#allocation2 + $0xe8] sm:$0xff]
    %v64 = vld [vmem:[#allocation2 + $0xf0] sm:$0xff]
    %v65 = vld [vmem:[#allocation2 + $0xf8] sm:$0xff]
    %v66 = vld [vmem:[#allocation2 + $0x100] sm:$0xff]
    %v67 = vld [vmem:[#allocation2 + $0x108] sm:$0xff]
    %v68 = vld [vmem:[#allocation2 + $0x110] sm:$0xff]
    %v69 = vld [vmem:[#allocation2 + $0x118] sm:$0xff]
    %v70 = vld [vmem:[#allocation2 + $0x120] sm:$0xff]
    %v71 = vld [vmem:[#allocation2 + $0x128] sm:$0xff]
    %v72 = vld [vmem:[#allocation2 + $0x130] sm:$0xff]
    %v73 = vld [vmem:[#allocation2 + $0x138] sm:$0xff]
    %v74 = vld [vmem:[#allocation2 + $0x140] sm:$0xff]
    %v75 = vld [vmem:[#allocation2 + $0x148] sm:$0xff]
    %v76 = vld [vmem:[#allocation2 + $0x150] sm:$0xff]
    %v77 = vld [vmem:[#allocation2 + $0x158] sm:$0xff]
    %v78 = vld [vmem:[#allocation2 + $0x160] sm:$0xff]
    %v79 = vld [vmem:[#allocation2 + $0x168] sm:$0xff]
    %v80 = vld [vmem:[#allocation2 + $0x170] sm:$0xff]
    %v81 = vld [vmem:[#allocation2 + $0x178] sm:$0xff]
    %v82 = vld [vmem:[#allocation2 + $0x180] sm:$0xff]
    %v83 = vld [vmem:[#allocation2 + $0x188] sm:$0xff]
    %v84 = vld [vmem:[#allocation2 + $0x190] sm:$0xff]
    %v85 = vld [vmem:[#allocation2 + $0x198] sm:$0xff]
    %v86 = vld [vmem:[#allocation2 + $0x1a0] sm:$0xff]
    %v87 = vld [vmem:[#allocation2 + $0x1a8] sm:$0xff]
    %v88 = vld [vmem:[#allocation2 + $0x1b0] sm:$0xff]
    %v89 = vld [vmem:[#allocation2 + $0x1b8] sm:$0xff]
    %v90 = vld [vmem:[#allocation2 + $0x1c0] sm:$0xff]
    %v91 = vld [vmem:[#allocation2 + $0x1c8] sm:$0xff]
    %v92 = vld [vmem:[#allocation2 + $0x1d0] sm:$0xff]
    %v93 = vld [vmem:[#allocation2 + $0x1d8] sm:$0xff]
    %v94 = vld [vmem:[#allocation2 + $0x1e0] sm:$0xff]
    %v95 = vld [vmem:[#allocation2 + $0x1e8] sm:$0xff]
    %v96 = vld [vmem:[#allocation2 + $0x1f0] sm:$0xff]
    %v97 = vld [vmem:[#allocation2 + $0x1f8] sm:$0xff]
    %v98 = vld [vmem:[#allocation2 + $0x200] sm:$0xff]
    %v99 = vld [vmem:[#allocation2 + $0x208] sm:$0xff]
    %v100 = vld [vmem:[#allocation2 + $0x210] sm:$0xff]
    %v101 = vld [vmem:[#allocation2 + $0x218] sm:$0xff]
    %v102 = vld [vmem:[#allocation2 + $0x220] sm:$0xff]
    %v103 = vld [vmem:[#allocation2 + $0x228] sm:$0xff]
    %v104 = vld [vmem:[#allocation2 + $0x230] sm:$0xff]
    %v105 = vld [vmem:[#allocation2 + $0x238] sm:$0xff]
    %v106 = vld [vmem:[#allocation2 + $0x240] sm:$0xff]
    %v107 = vld [vmem:[#allocation2 + $0x248] sm:$0xff]
    %v108 = vld [vmem:[#allocation2 + $0x250] sm:$0xff]
    %v109 = vld [vmem:[#allocation2 + $0x258] sm:$0xff]
    %v110 = vld [vmem:[#allocation2 + $0x260] sm:$0xff]
    %v111 = vld [vmem:[#allocation2 + $0x268] sm:$0xff]
    %v112 = vld [vmem:[#allocation2 + $0x270] sm:$0xff]
    %v113 = vld [vmem:[#allocation2 + $0x278] sm:$0xff]
    %v114 = vld [vmem:[#allocation2 + $0x280] sm:$0xff]
    %v115 = vld [vmem:[#allocation2 + $0x288] sm:$0xff]
    %v116 = vld [vmem:[#allocation2 + $0x290] sm:$0xff]
    %v117 = vld [vmem:[#allocation2 + $0x298] sm:$0xff]
    %v118 = vld [vmem:[#allocation2 + $0x2a0] sm:$0xff]
    %v119 = vld [vmem:[#allocation2 + $0x2a8] sm:$0xff]
    %v120 = vld [vmem:[#allocation2 + $0x2b0] sm:$0xff]
    %v121 = vld [vmem:[#allocation2 + $0x2b8] sm:$0xff]
    %v122 = vld [vmem:[#allocation2 + $0x2c0] sm:$0xff]
    %v123 = vld [vmem:[#allocation2 + $0x2c8] sm:$0xff]
    %v124 = vld [vmem:[#allocation2 + $0x2d0] sm:$0xff]
    %v125 = vld [vmem:[#allocation2 + $0x2d8] sm:$0xff]
    %v126 = vld [vmem:[#allocation2 + $0x2e0] sm:$0xff]
    %v127 = vld [vmem:[#allocation2 + $0x2e8] sm:$0xff]
    %v128 = vld [vmem:[#allocation2 + $0x2f0] sm:$0xff]
    %v129 = vld [vmem:[#allocation2 + $0x2f8] sm:$0xff]
    %v130 = vld [vmem:[%s2] sm:$0x1]
    %v132 = vlaneseq
    %v133 = vshrl.u32 %v132, 7
    %v134 = vsub.s32 0, %v133
    %v135 = vrot.slane %v130, %v134
    %137 = vmatprep.subr.mxu0 0.0
    %138 = vmatpush1.msra.mxu0 %v34
    %139 = vmatprep.subr.mxu0 0.0
    %140 = vmatpush1.msra.mxu0 %v35
    %141 = vmatprep.subr.mxu0 0.0
    %142 = vmatpush1.msra.mxu0 %v36
    %143 = vmatprep.subr.mxu0 0.0
    %144 = vmatpush1.msra.mxu0 %v37
    %145 = vmatprep.subr.mxu0 0.0
    %146 = vmatpush1.msra.mxu0 %v38
    %147 = vmatprep.subr.mxu0 0.0
    %148 = vmatpush1.msra.mxu0 %v39
    %149 = vmatprep.subr.mxu0 0.0
    %150 = vmatpush1.msra.mxu0 %v40
    %151 = vmatprep.subr.mxu0 0.0
    %152 = vmatpush1.msra.mxu0 %v41
    %153 = vmatprep.subr.mxu0 0.0
    %154 = vmatpush1.msra.mxu0 %v42
    %155 = vmatprep.subr.mxu0 0.0
    %156 = vmatpush1.msra.mxu0 %v43
    %157 = vmatprep.subr.mxu0 0.0
    %158 = vmatpush1.msra.mxu0 %v44
    %159 = vmatprep.subr.mxu0 0.0
    %160 = vmatpush1.msra.mxu0 %v45
    %161 = vmatprep.subr.mxu0 0.0
    %162 = vmatpush1.msra.mxu0 %v46
    %163 = vmatprep.subr.mxu0 0.0
    %164 = vmatpush1.msra.mxu0 %v47
    %165 = vmatprep.subr.mxu0 0.0
    %166 = vmatpush1.msra.mxu0 %v48
    %167 = vmatprep.subr.mxu0 0.0
    %168 = vmatpush1.msra.mxu0 %v49
    %169 = vmatprep.subr.mxu0 0.0
    %170 = vmatpush1.msra.mxu0 %v50
    %171 = vmatprep.subr.mxu0 0.0
    %172 = vmatpush1.msra.mxu0 %v51
    %173 = vmatprep.subr.mxu0 0.0
    %174 = vmatpush1.msra.mxu0 %v52
    %175 = vmatprep.subr.mxu0 0.0
    %176 = vmatpush1.msra.mxu0 %v53
    %177 = vmatprep.subr.mxu0 0.0
    %178 = vmatpush1.msra.mxu0 %v54
    %179 = vmatprep.subr.mxu0 0.0
    %180 = vmatpush1.msra.mxu0 %v55
    %181 = vmatprep.subr.mxu0 0.0
    %182 = vmatpush1.msra.mxu0 %v56
    %183 = vmatprep.subr.mxu0 0.0
    %184 = vmatpush1.msra.mxu0 %v57
    %185 = vmatprep.subr.mxu0 0.0
    %186 = vmatpush1.msra.mxu0 %v58
    %187 = vmatprep.subr.mxu0 0.0
    %188 = vmatpush1.msra.mxu0 %v59
    %189 = vmatprep.subr.mxu0 0.0
    %190 = vmatpush1.msra.mxu0 %v60
    %191 = vmatprep.subr.mxu0 0.0
    %192 = vmatpush1.msra.mxu0 %v61
    %193 = vmatprep.subr.mxu0 0.0
    %194 = vmatpush1.msra.mxu0 %v62
    %195 = vmatprep.subr.mxu0 0.0
    %196 = vmatpush1.msra.mxu0 %v63
    %197 = vmatprep.subr.mxu0 0.0
    %198 = vmatpush1.msra.mxu0 %v64
    %199 = vmatprep.subr.mxu0 0.0
    %200 = vmatpush1.msra.mxu0 %v65
    %201 = vmatprep.mubr.f32.mxu0 %v29
    %202 = vmatmul.mubr.f32.gmra.mrb[0].mxu0 %v28
    %v203 = vpop.f32.mrb[0].mxu0
    %v204 = vadd.f32 %v135, %v203
    %v205 = vpop.f32.mrb[0].mxu0
    %206 = vdwg.mxu0
    %207 = vmatprep.subr.mxu0 0.0
    %208 = vmatpush1.msra.mxu0 %v66
    %209 = vmatprep.subr.mxu0 0.0
    %210 = vmatpush1.msra.mxu0 %v67
    %211 = vmatprep.subr.mxu0 0.0
    %212 = vmatpush1.msra.mxu0 %v68
    %213 = vmatprep.subr.mxu0 0.0
    %214 = vmatpush1.msra.mxu0 %v69
    %215 = vmatprep.subr.mxu0 0.0
    %216 = vmatpush1.msra.mxu0 %v70
    %217 = vmatprep.subr.mxu0 0.0
    %218 = vmatpush1.msra.mxu0 %v71
    %219 = vmatprep.subr.mxu0 0.0
    %220 = vmatpush1.msra.mxu0 %v72
    %221 = vmatprep.subr.mxu0 0.0
    %222 = vmatpush1.msra.mxu0 %v73
    %223 = vmatprep.subr.mxu0 0.0
    %224 = vmatpush1.msra.mxu0 %v74
    %225 = vmatprep.subr.mxu0 0.0
    %226 = vmatpush1.msra.mxu0 %v75
    %227 = vmatprep.subr.mxu0 0.0
    %228 = vmatpush1.msra.mxu0 %v76
    %229 = vmatprep.subr.mxu0 0.0
    %230 = vmatpush1.msra.mxu0 %v77
    %231 = vmatprep.subr.mxu0 0.0
    %232 = vmatpush1.msra.mxu0 %v78
    %233 = vmatprep.subr.mxu0 0.0
    %234 = vmatpush1.msra.mxu0 %v79
    %235 = vmatprep.subr.mxu0 0.0
    %236 = vmatpush1.msra.mxu0 %v80
    %237 = vmatprep.subr.mxu0 0.0
    %238 = vmatpush1.msra.mxu0 %v81
    %239 = vmatprep.subr.mxu0 0.0
    %240 = vmatpush1.msra.mxu0 %v82
    %241 = vmatprep.subr.mxu0 0.0
    %242 = vmatpush1.msra.mxu0 %v83
    %243 = vmatprep.subr.mxu0 0.0
    %244 = vmatpush1.msra.mxu0 %v84
    %245 = vmatprep.subr.mxu0 0.0
    %246 = vmatpush1.msra.mxu0 %v85
    %247 = vmatprep.subr.mxu0 0.0
    %248 = vmatpush1.msra.mxu0 %v86
    %249 = vmatprep.subr.mxu0 0.0
    %250 = vmatpush1.msra.mxu0 %v87
    %251 = vmatprep.subr.mxu0 0.0
    %252 = vmatpush1.msra.mxu0 %v88
    %253 = vmatprep.subr.mxu0 0.0
    %254 = vmatpush1.msra.mxu0 %v89
    %255 = vmatprep.subr.mxu0 0.0
    %256 = vmatpush1.msra.mxu0 %v90
    %257 = vmatprep.subr.mxu0 0.0
    %258 = vmatpush1.msra.mxu0 %v91
    %259 = vmatprep.subr.mxu0 0.0
    %260 = vmatpush1.msra.mxu0 %v92
    %261 = vmatprep.subr.mxu0 0.0
    %262 = vmatpush1.msra.mxu0 %v93
    %263 = vmatprep.subr.mxu0 0.0
    %264 = vmatpush1.msra.mxu0 %v94
    %265 = vmatprep.subr.mxu0 0.0
    %266 = vmatpush1.msra.mxu0 %v95
    %267 = vmatprep.subr.mxu0 0.0
    %268 = vmatpush1.msra.mxu0 %v96
    %269 = vmatprep.subr.mxu0 0.0
    %270 = vmatpush1.msra.mxu0 %v97
    %271 = vmatprep.mubr.f32.mxu0 %v31
    %272 = vmatmul.mubr.f32.gmra.mrb[0].mxu0 %v30
    %v273 = vpop.f32.mrb[0].mxu0
    %v274 = vadd.f32 %v204, %v273
    %v275 = vpop.f32.mrb[0].mxu0
    %276 = vdwg.mxu0
    %277 = vmatprep.subr.mxu0 0.0
    %278 = vmatpush1.msra.mxu0 %v98
    %279 = vmatprep.subr.mxu0 0.0
    %280 = vmatpush1.msra.mxu0 %v99
    %281 = vmatprep.subr.mxu0 0.0
    %282 = vmatpush1.msra.mxu0 %v100
    %283 = vmatprep.subr.mxu0 0.0
    %284 = vmatpush1.msra.mxu0 %v101
    %285 = vmatprep.subr.mxu0 0.0
    %286 = vmatpush1.msra.mxu0 %v102
    %287 = vmatprep.subr.mxu0 0.0
    %288 = vmatpush1.msra.mxu0 %v103
    %289 = vmatprep.subr.mxu0 0.0
    %290 = vmatpush1.msra.mxu0 %v104
    %291 = vmatprep.subr.mxu0 0.0
    %292 = vmatpush1.msra.mxu0 %v105
    %293 = vmatprep.subr.mxu0 0.0
    %294 = vmatpush1.msra.mxu0 %v106
    %295 = vmatprep.subr.mxu0 0.0
    %296 = vmatpush1.msra.mxu0 %v107
    %297 = vmatprep.subr.mxu0 0.0
    %298 = vmatpush1.msra.mxu0 %v108
    %299 = vmatprep.subr.mxu0 0.0
    %300 = vmatpush1.msra.mxu0 %v109
    %301 = vmatprep.subr.mxu0 0.0
    %302 = vmatpush1.msra.mxu0 %v110
    %303 = vmatprep.subr.mxu0 0.0
    %304 = vmatpush1.msra.mxu0 %v111
    %305 = vmatprep.subr.mxu0 0.0
    %306 = vmatpush1.msra.mxu0 %v112
    %307 = vmatprep.subr.mxu0 0.0
    %308 = vmatpush1.msra.mxu0 %v113
    %309 = vmatprep.subr.mxu0 0.0
    %310 = vmatpush1.msra.mxu0 %v114
    %311 = vmatprep.subr.mxu0 0.0
    %312 = vmatpush1.msra.mxu0 %v115
    %313 = vmatprep.subr.mxu0 0.0
    %314 = vmatpush1.msra.mxu0 %v116
    %315 = vmatprep.subr.mxu0 0.0
    %316 = vmatpush1.msra.mxu0 %v117
    %317 = vmatprep.subr.mxu0 0.0
    %318 = vmatpush1.msra.mxu0 %v118
    %319 = vmatprep.subr.mxu0 0.0
    %320 = vmatpush1.msra.mxu0 %v119
    %321 = vmatprep.subr.mxu0 0.0
    %322 = vmatpush1.msra.mxu0 %v120
    %323 = vmatprep.subr.mxu0 0.0
    %324 = vmatpush1.msra.mxu0 %v121
    %325 = vmatprep.subr.mxu0 0.0
    %326 = vmatpush1.msra.mxu0 %v122
    %327 = vmatprep.subr.mxu0 0.0
    %328 = vmatpush1.msra.mxu0 %v123
    %329 = vmatprep.subr.mxu0 0.0
    %330 = vmatpush1.msra.mxu0 %v124
    %331 = vmatprep.subr.mxu0 0.0
    %332 = vmatpush1.msra.mxu0 %v125
    %333 = vmatprep.subr.mxu0 0.0
    %334 = vmatpush1.msra.mxu0 %v126
    %335 = vmatprep.subr.mxu0 0.0
    %336 = vmatpush1.msra.mxu0 %v127
    %337 = vmatprep.subr.mxu0 0.0
    %338 = vmatpush1.msra.mxu0 %v128
    %339 = vmatprep.subr.mxu0 0.0
    %340 = vmatpush1.msra.mxu0 %v129
    %341 = vmatprep.mubr.f32.mxu0 %v33
    %342 = vmatmul.mubr.f32.gmra.mrb[0].mxu0 %v32
    %v343 = vpop.f32.mrb[0].mxu0
    %v344 = vadd.f32 %v274, %v343
    %v345 = vpop.f32.mrb[0].mxu0
    %346 = vdwg.mxu0
    %347 = vst [vmem:[%s3] sm:$0xff] %v344
    // Predicated region
    $region18: #{vit_forward.3} parent=1 // pred_check
      _
    $region19: #{vit_forward.3} parent=1 // pred_check_branch
      %349 = sbr.rel (0) target = $region21
    $region20: #{vit_forward.3} parent=1 // pred_region
      _
    $region21: #{vit_forward.3} parent=1 // pred_fallthru
      _
    // Predicated region
    $region22: #{vit_forward.3} parent=1 // pred_check
      _
    $region23: #{vit_forward.3} parent=1 // pred_check_branch
      %351 = sbr.rel (0) target = $region25
    $region24: #{vit_forward.3} parent=1 // pred_region
      _
    $region25: #{vit_forward.3} parent=1 // pred_fallthru
      _
    %352 = vsyncpa [#allocation3], 1

// kernel: vit_forward.5
$region0: #{vit_forward.5}
  #allocation0 [shape = 'u32[]', space=smem, size = 0x4, offset = 0x4, fixed_abs, tag = 'smem constant byte address 0x4 - core index']
  #allocation1 [shape = 'u32[144,128]{1,0:T(1,128)}', space=vmem, size = 0x12000, scoped, tag = 'internal scratch']
  %s0 = inlined_call_operand.vmem [shape: f32[2,128], index: 0, kind: input, shape index: {}]
  %s1 = inlined_call_operand.vmem [shape: f32[1,128], index: 1, kind: input, shape index: {}]
  %s2 = inlined_call_operand.vmem [shape: f32[1,128], index: 2, kind: input, shape index: {}]
  %s3 = inlined_call_operand.vmem [shape: f32[128,1152], index: 3, kind: input, shape index: {}]
  %s4 = inlined_call_operand.vmem [shape: f32[1,1152], index: 4, kind: input, shape index: {}]
  %s5 = inlined_call_operand.vmem [shape: f32[2,1152], index: 5, kind: output, shape index: {}]
  %s6 = sld [smem:[#allocation0]]
  $region30: #{vit_forward.5} parent=0
    _
  %s8 = ssub.s32 1, %s6
  %s9 = scalar_select 0, %s8, %s6
  // Predicated region
  $region2: #{vit_forward.5} parent=0 // pred_check
    _
  $region3: #{vit_forward.5} parent=0 // pred_check_branch
    %11 = sbr.rel (0) target = $region5
  $region4: #{vit_forward.5} parent=0 // pred_region
    _
  $region5: #{vit_forward.5} parent=0 // pred_fallthru
    _
  // Predicated region
  $region6: #{vit_forward.5} parent=0 // pred_check
    _
  $region7: #{vit_forward.5} parent=0 // pred_check_branch
    %13 = sbr.rel (0) target = $region9
  $region8: #{vit_forward.5} parent=0 // pred_region
    _
  $region9: #{vit_forward.5} parent=0 // pred_fallthru
    _
  // Predicated region
  $region10: #{vit_forward.5} parent=0 // pred_check
    _
  $region11: #{vit_forward.5} parent=0 // pred_check_branch
    %15 = sbr.rel (0) target = $region13
  $region12: #{vit_forward.5} parent=0 // pred_region
    _
  $region13: #{vit_forward.5} parent=0 // pred_fallthru
    _
  // Predicated region
  $region14: #{vit_forward.5} parent=0 // pred_check
    _
  $region15: #{vit_forward.5} parent=0 // pred_check_branch
    %17 = sbr.rel (0) target = $region17
  $region16: #{vit_forward.5} parent=0 // pred_region
    _
  $region17: #{vit_forward.5} parent=0 // pred_fallthru
    _
  // Predicated region
  $region18: #{vit_forward.5} parent=0 // pred_check
    _
  $region19: #{vit_forward.5} parent=0 // pred_check_branch
    %19 = sbr.rel (0) target = $region21
  $region20: #{vit_forward.5} parent=0 // pred_region
    _
  $region21: #{vit_forward.5} parent=0 // pred_fallthru
    _
  %v20 = vld [vmem:[%s0] sm:$0x3]
  %v21 = vld [vmem:[%s1] sm:$0x1]
  %v22 = vld [vmem:[%s2] sm:$0x1]
  %vm23 = vcmask 1041408
  %v24 = vsel %vm23, %v20, 0.0
  %25 = vadd.xlane.f32.xlu0 %v24
  %v26 = vpop.xlane.xlu0 %25
  %v27 = vrcp.pop 128.0
  %v28 = vmul.f32 %v26, %v27
  %v29 = vsub.f32 %v20, %v28
  %v30 = vmul.f32 %v29, %v29
  %v31 = vsel %vm23, %v30, 0.0
  %32 = vadd.xlane.f32.xlu0 %v31
  %v33 = vpop.xlane.xlu0 %32
  %v34 = vmul.f32 %v33, %v27
  %v35 = vadd.f32 %v34, 1e-12
  %v36 = vrsqrt.pop %v35
  %v37 = vmul.f32 %v29, %v36
  %v39 = vlaneseq
  %v40 = vshrl.u32 %v39, 7
  %v41 = vsub.s32 0, %v40
  %v42 = vrot.slane %v21, %v41
  %v44 = vmul.f32 %v37, %v42
  %v46 = vlaneseq
  %v47 = vshrl.u32 %v46, 7
  %v48 = vsub.s32 0, %v47
  %v49 = vrot.slane %v22, %v48
  %v51 = vadd.f32 %v44, %v49
  %v52 = vld [vmem:[%s3] sm:$0xff]
  %v53 = vld [vmem:[%s3 + $0x8] sm:$0xff]
  %v54 = vld [vmem:[%s3 + $0x10] sm:$0xff]
  %v55 = vld [vmem:[%s3 + $0x18] sm:$0xff]
  %v56 = vld [vmem:[%s3 + $0x20] sm:$0xff]
  %v57 = vld [vmem:[%s3 + $0x28] sm:$0xff]
  %v58 = vld [vmem:[%s3 + $0x30] sm:$0xff]
  %v59 = vld [vmem:[%s3 + $0x38] sm:$0xff]
  %v60 = vld [vmem:[%s3 + $0x40] sm:$0xff]
  %v61 = vld [vmem:[%s3 + $0x48] sm:$0xff]
  %v62 = vld [vmem:[%s3 + $0x50] sm:$0xff]
  %v63 = vld [vmem:[%s3 + $0x58] sm:$0xff]
  %v64 = vld [vmem:[%s3 + $0x60] sm:$0xff]
  %v65 = vld [vmem:[%s3 + $0x68] sm:$0xff]
  %v66 = vld [vmem:[%s3 + $0x70] sm:$0xff]
  %v67 = vld [vmem:[%s3 + $0x78] sm:$0xff]
  %v68 = vld [vmem:[%s3 + $0x80] sm:$0xff]
  %v69 = vld [vmem:[%s3 + $0x88] sm:$0xff]
  %v70 = vld [vmem:[%s3 + $0x90] sm:$0xff]
  %v71 = vld [vmem:[%s3 + $0x98] sm:$0xff]
  %v72 = vld [vmem:[%s3 + $0xa0] sm:$0xff]
  %v73 = vld [vmem:[%s3 + $0xa8] sm:$0xff]
  %v74 = vld [vmem:[%s3 + $0xb0] sm:$0xff]
  %v75 = vld [vmem:[%s3 + $0xb8] sm:$0xff]
  %v76 = vld [vmem:[%s3 + $0xc0] sm:$0xff]
  %v77 = vld [vmem:[%s3 + $0xc8] sm:$0xff]
  %v78 = vld [vmem:[%s3 + $0xd0] sm:$0xff]
  %v79 = vld [vmem:[%s3 + $0xd8] sm:$0xff]
  %v80 = vld [vmem:[%s3 + $0xe0] sm:$0xff]
  %v81 = vld [vmem:[%s3 + $0xe8] sm:$0xff]
  %v82 = vld [vmem:[%s3 + $0xf0] sm:$0xff]
  %v83 = vld [vmem:[%s3 + $0xf8] sm:$0xff]
  %v84 = vld [vmem:[%s3 + $0x100] sm:$0xff]
  %v85 = vld [vmem:[%s3 + $0x108] sm:$0xff]
  %v86 = vld [vmem:[%s3 + $0x110] sm:$0xff]
  %v87 = vld [vmem:[%s3 + $0x118] sm:$0xff]
  %v88 = vld [vmem:[%s3 + $0x120] sm:$0xff]
  %v89 = vld [vmem:[%s3 + $0x128] sm:$0xff]
  %v90 = vld [vmem:[%s3 + $0x130] sm:$0xff]
  %v91 = vld [vmem:[%s3 + $0x138] sm:$0xff]
  %v92 = vld [vmem:[%s3 + $0x140] sm:$0xff]
  %v93 = vld [vmem:[%s3 + $0x148] sm:$0xff]
  %v94 = vld [vmem:[%s3 + $0x150] sm:$0xff]
  %v95 = vld [vmem:[%s3 + $0x158] sm:$0xff]
  %v96 = vld [vmem:[%s3 + $0x160] sm:$0xff]
  %v97 = vld [vmem:[%s3 + $0x168] sm:$0xff]
  %v98 = vld [vmem:[%s3 + $0x170] sm:$0xff]
  %v99 = vld [vmem:[%s3 + $0x178] sm:$0xff]
  %v100 = vld [vmem:[%s3 + $0x180] sm:$0xff]
  %v101 = vld [vmem:[%s3 + $0x188] sm:$0xff]
  %v102 = vld [vmem:[%s3 + $0x190] sm:$0xff]
  %v103 = vld [vmem:[%s3 + $0x198] sm:$0xff]
  %v104 = vld [vmem:[%s3 + $0x1a0] sm:$0xff]
  %v105 = vld [vmem:[%s3 + $0x1a8] sm:$0xff]
  %v106 = vld [vmem:[%s3 + $0x1b0] sm:$0xff]
  %v107 = vld [vmem:[%s3 + $0x1b8] sm:$0xff]
  %v108 = vld [vmem:[%s3 + $0x1c0] sm:$0xff]
  %v109 = vld [vmem:[%s3 + $0x1c8] sm:$0xff]
  %v110 = vld [vmem:[%s3 + $0x1d0] sm:$0xff]
  %v111 = vld [vmem:[%s3 + $0x1d8] sm:$0xff]
  %v112 = vld [vmem:[%s3 + $0x1e0] sm:$0xff]
  %v113 = vld [vmem:[%s3 + $0x1e8] sm:$0xff]
  %v114 = vld [vmem:[%s3 + $0x1f0] sm:$0xff]
  %v115 = vld [vmem:[%s3 + $0x1f8] sm:$0xff]
  %v116 = vld [vmem:[%s3 + $0x200] sm:$0xff]
  %v117 = vld [vmem:[%s3 + $0x208] sm:$0xff]
  %v118 = vld [vmem:[%s3 + $0x210] sm:$0xff]
  %v119 = vld [vmem:[%s3 + $0x218] sm:$0xff]
  %v120 = vld [vmem:[%s3 + $0x220] sm:$0xff]
  %v121 = vld [vmem:[%s3 + $0x228] sm:$0xff]
  %v122 = vld [vmem:[%s3 + $0x230] sm:$0xff]
  %v123 = vld [vmem:[%s3 + $0x238] sm:$0xff]
  %v124 = vld [vmem:[%s3 + $0x240] sm:$0xff]
  %v125 = vld [vmem:[%s3 + $0x248] sm:$0xff]
  %v126 = vld [vmem:[%s3 + $0x250] sm:$0xff]
  %v127 = vld [vmem:[%s3 + $0x258] sm:$0xff]
  %v128 = vld [vmem:[%s3 + $0x260] sm:$0xff]
  %v129 = vld [vmem:[%s3 + $0x268] sm:$0xff]
  %v130 = vld [vmem:[%s3 + $0x270] sm:$0xff]
  %v131 = vld [vmem:[%s3 + $0x278] sm:$0xff]
  %v132 = vld [vmem:[%s3 + $0x280] sm:$0xff]
  %v133 = vld [vmem:[%s3 + $0x288] sm:$0xff]
  %v134 = vld [vmem:[%s3 + $0x290] sm:$0xff]
  %v135 = vld [vmem:[%s3 + $0x298] sm:$0xff]
  %v136 = vld [vmem:[%s3 + $0x2a0] sm:$0xff]
  %v137 = vld [vmem:[%s3 + $0x2a8] sm:$0xff]
  %v138 = vld [vmem:[%s3 + $0x2b0] sm:$0xff]
  %v139 = vld [vmem:[%s3 + $0x2b8] sm:$0xff]
  %v140 = vld [vmem:[%s3 + $0x2c0] sm:$0xff]
  %v141 = vld [vmem:[%s3 + $0x2c8] sm:$0xff]
  %v142 = vld [vmem:[%s3 + $0x2d0] sm:$0xff]
  %v143 = vld [vmem:[%s3 + $0x2d8] sm:$0xff]
  %v144 = vld [vmem:[%s3 + $0x2e0] sm:$0xff]
  %v145 = vld [vmem:[%s3 + $0x2e8] sm:$0xff]
  %v146 = vld [vmem:[%s3 + $0x2f0] sm:$0xff]
  %v147 = vld [vmem:[%s3 + $0x2f8] sm:$0xff]
  %v148 = vld [vmem:[%s3 + $0x300] sm:$0xff]
  %v149 = vld [vmem:[%s3 + $0x308] sm:$0xff]
  %v150 = vld [vmem:[%s3 + $0x310] sm:$0xff]
  %v151 = vld [vmem:[%s3 + $0x318] sm:$0xff]
  %v152 = vld [vmem:[%s3 + $0x320] sm:$0xff]
  %v153 = vld [vmem:[%s3 + $0x328] sm:$0xff]
  %v154 = vld [vmem:[%s3 + $0x330] sm:$0xff]
  %v155 = vld [vmem:[%s3 + $0x338] sm:$0xff]
  %v156 = vld [vmem:[%s3 + $0x340] sm:$0xff]
  %v157 = vld [vmem:[%s3 + $0x348] sm:$0xff]
  %v158 = vld [vmem:[%s3 + $0x350] sm:$0xff]
  %v159 = vld [vmem:[%s3 + $0x358] sm:$0xff]
  %v160 = vld [vmem:[%s3 + $0x360] sm:$0xff]
  %v161 = vld [vmem:[%s3 + $0x368] sm:$0xff]
  %v162 = vld [vmem:[%s3 + $0x370] sm:$0xff]
  %v163 = vld [vmem:[%s3 + $0x378] sm:$0xff]
  %v164 = vld [vmem:[%s3 + $0x380] sm:$0xff]
  %v165 = vld [vmem:[%s3 + $0x388] sm:$0xff]
  %v166 = vld [vmem:[%s3 + $0x390] sm:$0xff]
  %v167 = vld [vmem:[%s3 + $0x398] sm:$0xff]
  %v168 = vld [vmem:[%s3 + $0x3a0] sm:$0xff]
  %v169 = vld [vmem:[%s3 + $0x3a8] sm:$0xff]
  %v170 = vld [vmem:[%s3 + $0x3b0] sm:$0xff]
  %v171 = vld [vmem:[%s3 + $0x3b8] sm:$0xff]
  %v172 = vld [vmem:[%s3 + $0x3c0] sm:$0xff]
  %v173 = vld [vmem:[%s3 + $0x3c8] sm:$0xff]
  %v174 = vld [vmem:[%s3 + $0x3d0] sm:$0xff]
  %v175 = vld [vmem:[%s3 + $0x3d8] sm:$0xff]
  %v176 = vld [vmem:[%s3 + $0x3e0] sm:$0xff]
  %v177 = vld [vmem:[%s3 + $0x3e8] sm:$0xff]
  %v178 = vld [vmem:[%s3 + $0x3f0] sm:$0xff]
  %v179 = vld [vmem:[%s3 + $0x3f8] sm:$0xff]
  %v180 = vld [vmem:[%s3 + $0x400] sm:$0xff]
  %v181 = vld [vmem:[%s3 + $0x408] sm:$0xff]
  %v182 = vld [vmem:[%s3 + $0x410] sm:$0xff]
  %v183 = vld [vmem:[%s3 + $0x418] sm:$0xff]
  %v184 = vld [vmem:[%s3 + $0x420] sm:$0xff]
  %v185 = vld [vmem:[%s3 + $0x428] sm:$0xff]
  %v186 = vld [vmem:[%s3 + $0x430] sm:$0xff]
  %v187 = vld [vmem:[%s3 + $0x438] sm:$0xff]
  %v188 = vld [vmem:[%s3 + $0x440] sm:$0xff]
  %v189 = vld [vmem:[%s3 + $0x448] sm:$0xff]
  %v190 = vld [vmem:[%s3 + $0x450] sm:$0xff]
  %v191 = vld [vmem:[%s3 + $0x458] sm:$0xff]
  %v192 = vld [vmem:[%s3 + $0x460] sm:$0xff]
  %v193 = vld [vmem:[%s3 + $0x468] sm:$0xff]
  %v194 = vld [vmem:[%s3 + $0x470] sm:$0xff]
  %v195 = vld [vmem:[%s3 + $0x478] sm:$0xff]
  %v196 = vld [vmem:[%s4] sm:$0xff]
  %v197 = vld [vmem:[%s4 + $0x8] sm:$0x1]
  %v200 = vlaneseq
  %v201 = vshrl.u32 %v200, 7
  %v202 = vsub.s32 0, %v201
  %v203 = vrot.slane %v196, %v202
  %v204 = vlaneseq
  %v205 = vshrl.u32 %v204, 7
  %v206 = vsub.s32 1, %v205
  %v207 = vrot.slane %v196, %v206
  %v208 = vlaneseq
  %v209 = vshrl.u32 %v208, 7
  %v210 = vsub.s32 2, %v209
  %v211 = vrot.slane %v196, %v210
  %v212 = vlaneseq
  %v213 = vshrl.u32 %v212, 7
  %v214 = vsub.s32 3, %v213
  %v215 = vrot.slane %v196, %v214
  %v216 = vlaneseq
  %v217 = vshrl.u32 %v216, 7
  %v218 = vsub.s32 4, %v217
  %v219 = vrot.slane %v196, %v218
  %v220 = vlaneseq
  %v221 = vshrl.u32 %v220, 7
  %v222 = vsub.s32 5, %v221
  %v223 = vrot.slane %v196, %v222
  %v224 = vlaneseq
  %v225 = vshrl.u32 %v224, 7
  %v226 = vsub.s32 6, %v225
  %v227 = vrot.slane %v196, %v226
  %v228 = vlaneseq
  %v229 = vshrl.u32 %v228, 7
  %v230 = vsub.s32 7, %v229
  %v231 = vrot.slane %v196, %v230
  %v232 = vlaneseq
  %v233 = vshrl.u32 %v232, 7
  %v234 = vsub.s32 0, %v233
  %v235 = vrot.slane %v197, %v234
  %245 = vmatprep.subr.mxu0 %v53
  %246 = vmatpush1.msra.mxu0 %v52
  %247 = vmatprep.subr.mxu0 %v62
  %248 = vmatpush1.msra.mxu0 %v61
  %249 = vmatprep.subr.mxu0 %v71
  %250 = vmatpush1.msra.mxu0 %v70
  %251 = vmatprep.subr.mxu0 %v80
  %252 = vmatpush1.msra.mxu0 %v79
  %253 = vmatprep.subr.mxu0 %v89
  %254 = vmatpush1.msra.mxu0 %v88
  %255 = vmatprep.subr.mxu0 %v98
  %256 = vmatpush1.msra.mxu0 %v97
  %257 = vmatprep.subr.mxu0 %v107
  %258 = vmatpush1.msra.mxu0 %v106
  %259 = vmatprep.subr.mxu0 %v116
  %260 = vmatpush1.msra.mxu0 %v115
  %261 = vmatprep.subr.mxu0 %v125
  %262 = vmatpush1.msra.mxu0 %v124
  %263 = vmatprep.subr.mxu0 %v134
  %264 = vmatpush1.msra.mxu0 %v133
  %265 = vmatprep.subr.mxu0 %v143
  %266 = vmatpush1.msra.mxu0 %v142
  %267 = vmatprep.subr.mxu0 %v152
  %268 = vmatpush1.msra.mxu0 %v151
  %269 = vmatprep.subr.mxu0 %v161
  %270 = vmatpush1.msra.mxu0 %v160
  %271 = vmatprep.subr.mxu0 %v170
  %272 = vmatpush1.msra.mxu0 %v169
  %273 = vmatprep.subr.mxu0 %v179
  %274 = vmatpush1.msra.mxu0 %v178
  %275 = vmatprep.subr.mxu0 %v188
  %276 = vmatpush1.msra.mxu0 %v187
  %277 = vmatprep.subr.mxu0 0.0
  %278 = vmatpush1.msra.mxu0 0.0
  %279 = vmatprep.subr.mxu0 0.0
  %280 = vmatpush1.msra.mxu0 0.0
  %281 = vmatprep.subr.mxu0 0.0
  %282 = vmatpush1.msra.mxu0 0.0
  %283 = vmatprep.subr.mxu0 0.0
  %284 = vmatpush1.msra.mxu0 0.0
  %285 = vmatprep.subr.mxu0 0.0
  %286 = vmatpush1.msra.mxu0 0.0
  %287 = vmatprep.subr.mxu0 0.0
  %288 = vmatpush1.msra.mxu0 0.0
  %289 = vmatprep.subr.mxu0 0.0
  %290 = vmatpush1.msra.mxu0 0.0
  %291 = vmatprep.subr.mxu0 0.0
  %292 = vmatpush1.msra.mxu0 0.0
  %293 = vmatprep.subr.mxu0 0.0
  %294 = vmatpush1.msra.mxu0 0.0
  %295 = vmatprep.subr.mxu0 0.0
  %296 = vmatpush1.msra.mxu0 0.0
  %297 = vmatprep.subr.mxu0 0.0
  %298 = vmatpush1.msra.mxu0 0.0
  %299 = vmatprep.subr.mxu0 0.0
  %300 = vmatpush1.msra.mxu0 0.0
  %301 = vmatprep.subr.mxu0 0.0
  %302 = vmatpush1.msra.mxu0 0.0
  %303 = vmatprep.subr.mxu0 0.0
  %304 = vmatpush1.msra.mxu0 0.0
  %305 = vmatprep.subr.mxu0 0.0
  %306 = vmatpush1.msra.mxu0 0.0
  %307 = vmatprep.subr.mxu0 0.0
  %308 = vmatpush1.msra.mxu0 0.0
  %309 = vmatprep.mubr.f32.mxu0 0.0
  %310 = vmatmul.mubr.f32.gmra.mrb[0].mxu0 %v51
  %v311 = vpop.f32.mrb[0].mxu0
  %v312 = vadd.f32 %v203, %v311
  %v313 = vpop.f32.mrb[0].mxu0
  %v314 = vadd.f32 %v207, %v313
  %315 = vdwg.mxu0
  %316 = vmatprep.subr.mxu0 %v55
  %317 = vmatpush1.msra.mxu0 %v54
  %318 = vmatprep.subr.mxu0 %v64
  %319 = vmatpush1.msra.mxu0 %v63
  %320 = vmatprep.subr.mxu0 %v73
  %321 = vmatpush1.msra.mxu0 %v72
  %322 = vmatprep.subr.mxu0 %v82
  %323 = vmatpush1.msra.mxu0 %v81
  %324 = vmatprep.subr.mxu0 %v91
  %325 = vmatpush1.msra.mxu0 %v90
  %326 = vmatprep.subr.mxu0 %v100
  %327 = vmatpush1.msra.mxu0 %v99
  %328 = vmatprep.subr.mxu0 %v109
  %329 = vmatpush1.msra.mxu0 %v108
  %330 = vmatprep.subr.mxu0 %v118
  %331 = vmatpush1.msra.mxu0 %v117
  %332 = vmatprep.subr.mxu0 %v127
  %333 = vmatpush1.msra.mxu0 %v126
  %334 = vmatprep.subr.mxu0 %v136
  %335 = vmatpush1.msra.mxu0 %v135
  %336 = vmatprep.subr.mxu0 %v145
  %337 = vmatpush1.msra.mxu0 %v144
  %338 = vmatprep.subr.mxu0 %v154
  %339 = vmatpush1.msra.mxu0 %v153
  %340 = vmatprep.subr.mxu0 %v163
  %341 = vmatpush1.msra.mxu0 %v162
  %342 = vmatprep.subr.mxu0 %v172
  %343 = vmatpush1.msra.mxu0 %v171
  %344 = vmatprep.subr.mxu0 %v181
  %345 = vmatpush1.msra.mxu0 %v180
  %346 = vmatprep.subr.mxu0 %v190
  %347 = vmatpush1.msra.mxu0 %v189
  %348 = vmatprep.subr.mxu0 0.0
  %349 = vmatpush1.msra.mxu0 0.0
  %350 = vmatprep.subr.mxu0 0.0
  %351 = vmatpush1.msra.mxu0 0.0
  %352 = vmatprep.subr.mxu0 0.0
  %353 = vmatpush1.msra.mxu0 0.0
  %354 = vmatprep.subr.mxu0 0.0
  %355 = vmatpush1.msra.mxu0 0.0
  %356 = vmatprep.subr.mxu0 0.0
  %357 = vmatpush1.msra.mxu0 0.0
  %358 = vmatprep.subr.mxu0 0.0
  %359 = vmatpush1.msra.mxu0 0.0
  %360 = vmatprep.subr.mxu0 0.0
  %361 = vmatpush1.msra.mxu0 0.0
  %362 = vmatprep.subr.mxu0 0.0
  %363 = vmatpush1.msra.mxu0 0.0
  %364 = vmatprep.subr.mxu0 0.0
  %365 = vmatpush1.msra.mxu0 0.0
  %366 = vmatprep.subr.mxu0 0.0
  %367 = vmatpush1.msra.mxu0 0.0
  %368 = vmatprep.subr.mxu0 0.0
  %369 = vmatpush1.msra.mxu0 0.0
  %370 = vmatprep.subr.mxu0 0.0
  %371 = vmatpush1.msra.mxu0 0.0
  %372 = vmatprep.subr.mxu0 0.0
  %373 = vmatpush1.msra.mxu0 0.0
  %374 = vmatprep.subr.mxu0 0.0
  %375 = vmatpush1.msra.mxu0 0.0
  %376 = vmatprep.subr.mxu0 0.0
  %377 = vmatpush1.msra.mxu0 0.0
  %378 = vmatprep.subr.mxu0 0.0
  %379 = vmatpush1.msra.mxu0 0.0
  %380 = vmatprep.mubr.f32.mxu0 0.0
  %381 = vmatmul.mubr.f32.gmra.mrb[0].mxu0 %v51
  %v382 = vpop.f32.mrb[0].mxu0
  %v383 = vadd.f32 %v211, %v382
  %v384 = vpop.f32.mrb[0].mxu0
  %v385 = vadd.f32 %v215, %v384
  %386 = vdwg.mxu0
  %387 = vmatprep.subr.mxu0 %v57
  %388 = vmatpush1.msra.mxu0 %v56
  %389 = vmatprep.subr.mxu0 %v66
  %390 = vmatpush1.msra.mxu0 %v65
  %391 = vmatprep.subr.mxu0 %v75
  %392 = vmatpush1.msra.mxu0 %v74
  %393 = vmatprep.subr.mxu0 %v84
  %394 = vmatpush1.msra.mxu0 %v83
  %395 = vmatprep.subr.mxu0 %v93
  %396 = vmatpush1.msra.mxu0 %v92
  %397 = vmatprep.subr.mxu0 %v102
  %398 = vmatpush1.msra.mxu0 %v101
  %399 = vmatprep.subr.mxu0 %v111
  %400 = vmatpush1.msra.mxu0 %v110
  %401 = vmatprep.subr.mxu0 %v120
  %402 = vmatpush1.msra.mxu0 %v119
  %403 = vmatprep.subr.mxu0 %v129
  %404 = vmatpush1.msra.mxu0 %v128
  %405 = vmatprep.subr.mxu0 %v138
  %406 = vmatpush1.msra.mxu0 %v137
  %407 = vmatprep.subr.mxu0 %v147
  %408 = vmatpush1.msra.mxu0 %v146
  %409 = vmatprep.subr.mxu0 %v156
  %410 = vmatpush1.msra.mxu0 %v155
  %411 = vmatprep.subr.mxu0 %v165
  %412 = vmatpush1.msra.mxu0 %v164
  %413 = vmatprep.subr.mxu0 %v174
  %414 = vmatpush1.msra.mxu0 %v173
  %415 = vmatprep.subr.mxu0 %v183
  %416 = vmatpush1.msra.mxu0 %v182
  %417 = vmatprep.subr.mxu0 %v192
  %418 = vmatpush1.msra.mxu0 %v191
  %419 = vmatprep.subr.mxu0 0.0
  %420 = vmatpush1.msra.mxu0 0.0
  %421 = vmatprep.subr.mxu0 0.0
  %422 = vmatpush1.msra.mxu0 0.0
  %423 = vmatprep.subr.mxu0 0.0
  %424 = vmatpush1.msra.mxu0 0.0
  %425 = vmatprep.subr.mxu0 0.0
  %426 = vmatpush1.msra.mxu0 0.0
  %427 = vmatprep.subr.mxu0 0.0
  %428 = vmatpush1.msra.mxu0 0.0
  %429 = vmatprep.subr.mxu0 0.0
  %430 = vmatpush1.msra.mxu0 0.0
  %431 = vmatprep.subr.mxu0 0.0
  %432 = vmatpush1.msra.mxu0 0.0
  %433 = vmatprep.subr.mxu0 0.0
  %434 = vmatpush1.msra.mxu0 0.0
  %435 = vmatprep.subr.mxu0 0.0
  %436 = vmatpush1.msra.mxu0 0.0
  %437 = vmatprep.subr.mxu0 0.0
  %438 = vmatpush1.msra.mxu0 0.0
  %439 = vmatprep.subr.mxu0 0.0
  %440 = vmatpush1.msra.mxu0 0.0
  %441 = vmatprep.subr.mxu0 0.0
  %442 = vmatpush1.msra.mxu0 0.0
  %443 = vmatprep.subr.mxu0 0.0
  %444 = vmatpush1.msra.mxu0 0.0
  %445 = vmatprep.subr.mxu0 0.0
  %446 = vmatpush1.msra.mxu0 0.0
  %447 = vmatprep.subr.mxu0 0.0
  %448 = vmatpush1.msra.mxu0 0.0
  %449 = vmatprep.subr.mxu0 0.0
  %450 = vmatpush1.msra.mxu0 0.0
  %451 = vmatprep.mubr.f32.mxu0 0.0
  %452 = vmatmul.mubr.f32.gmra.mrb[0].mxu0 %v51
  %v453 = vpop.f32.mrb[0].mxu0
  %v454 = vadd.f32 %v219, %v453
  %v455 = vpop.f32.mrb[0].mxu0
  %v456 = vadd.f32 %v223, %v455
  %457 = vdwg.mxu0
  %458 = vmatprep.subr.mxu0 %v59
  %459 = vmatpush1.msra.mxu0 %v58
  %460 = vmatprep.subr.mxu0 %v68
  %461 = vmatpush1.msra.mxu0 %v67
  %462 = vmatprep.subr.mxu0 %v77
  %463 = vmatpush1.msra.mxu0 %v76
  %464 = vmatprep.subr.mxu0 %v86
  %465 = vmatpush1.msra.mxu0 %v85
  %466 = vmatprep.subr.mxu0 %v95
  %467 = vmatpush1.msra.mxu0 %v94
  %468 = vmatprep.subr.mxu0 %v104
  %469 = vmatpush1.msra.mxu0 %v103
  %470 = vmatprep.subr.mxu0 %v113
  %471 = vmatpush1.msra.mxu0 %v112
  %472 = vmatprep.subr.mxu0 %v122
  %473 = vmatpush1.msra.mxu0 %v121
  %474 = vmatprep.subr.mxu0 %v131
  %475 = vmatpush1.msra.mxu0 %v130
  %476 = vmatprep.subr.mxu0 %v140
  %477 = vmatpush1.msra.mxu0 %v139
  %478 = vmatprep.subr.mxu0 %v149
  %479 = vmatpush1.msra.mxu0 %v148
  %480 = vmatprep.subr.mxu0 %v158
  %481 = vmatpush1.msra.mxu0 %v157
  %482 = vmatprep.subr.mxu0 %v167
  %483 = vmatpush1.msra.mxu0 %v166
  %484 = vmatprep.subr.mxu0 %v176
  %485 = vmatpush1.msra.mxu0 %v175
  %486 = vmatprep.subr.mxu0 %v185
  %487 = vmatpush1.msra.mxu0 %v184
  %488 = vmatprep.subr.mxu0 %v194
  %489 = vmatpush1.msra.mxu0 %v193
  %490 = vmatprep.subr.mxu0 0.0
  %491 = vmatpush1.msra.mxu0 0.0
  %492 = vmatprep.subr.mxu0 0.0
  %493 = vmatpush1.msra.mxu0 0.0
  %494 = vmatprep.subr.mxu0 0.0
  %495 = vmatpush1.msra.mxu0 0.0
  %496 = vmatprep.subr.mxu0 0.0
  %497 = vmatpush1.msra.mxu0 0.0
  %498 = vmatprep.subr.mxu0 0.0
  %499 = vmatpush1.msra.mxu0 0.0
  %500 = vmatprep.subr.mxu0 0.0
  %501 = vmatpush1.msra.mxu0 0.0
  %502 = vmatprep.subr.mxu0 0.0
  %503 = vmatpush1.msra.mxu0 0.0
  %504 = vmatprep.subr.mxu0 0.0
  %505 = vmatpush1.msra.mxu0 0.0
  %506 = vmatprep.subr.mxu0 0.0
  %507 = vmatpush1.msra.mxu0 0.0
  %508 = vmatprep.subr.mxu0 0.0
  %509 = vmatpush1.msra.mxu0 0.0
  %510 = vmatprep.subr.mxu0 0.0
  %511 = vmatpush1.msra.mxu0 0.0
  %512 = vmatprep.subr.mxu0 0.0
  %513 = vmatpush1.msra.mxu0 0.0
  %514 = vmatprep.subr.mxu0 0.0
  %515 = vmatpush1.msra.mxu0 0.0
  %516 = vmatprep.subr.mxu0 0.0
  %517 = vmatpush1.msra.mxu0 0.0
  %518 = vmatprep.subr.mxu0 0.0
  %519 = vmatpush1.msra.mxu0 0.0
  %520 = vmatprep.subr.mxu0 0.0
  %521 = vmatpush1.msra.mxu0 0.0
  %522 = vmatprep.mubr.f32.mxu0 0.0
  %523 = vmatmul.mubr.f32.gmra.mrb[0].mxu0 %v51
  %v524 = vpop.f32.mrb[0].mxu0
  %v525 = vadd.f32 %v227, %v524
  %v526 = vpop.f32.mrb[0].mxu0
  %v527 = vadd.f32 %v231, %v526
  %528 = vdwg.mxu0
  %529 = vmatprep.subr.mxu0 0.0
  %530 = vmatpush1.msra.mxu0 %v60
  %531 = vmatprep.subr.mxu0 0.0
  %532 = vmatpush1.msra.mxu0 %v69
  %533 = vmatprep.subr.mxu0 0.0
  %534 = vmatpush1.msra.mxu0 %v78
  %535 = vmatprep.subr.mxu0 0.0
  %536 = vmatpush1.msra.mxu0 %v87
  %537 = vmatprep.subr.mxu0 0.0
  %538 = vmatpush1.msra.mxu0 %v96
  %539 = vmatprep.subr.mxu0 0.0
  %540 = vmatpush1.msra.mxu0 %v105
  %541 = vmatprep.subr.mxu0 0.0
  %542 = vmatpush1.msra.mxu0 %v114
  %543 = vmatprep.subr.mxu0 0.0
  %544 = vmatpush1.msra.mxu0 %v123
  %545 = vmatprep.subr.mxu0 0.0
  %546 = vmatpush1.msra.mxu0 %v132
  %547 = vmatprep.subr.mxu0 0.0
  %548 = vmatpush1.msra.mxu0 %v141
  %549 = vmatprep.subr.mxu0 0.0
  %550 = vmatpush1.msra.mxu0 %v150
  %551 = vmatprep.subr.mxu0 0.0
  %552 = vmatpush1.msra.mxu0 %v159
  %553 = vmatprep.subr.mxu0 0.0
  %554 = vmatpush1.msra.mxu0 %v168
  %555 = vmatprep.subr.mxu0 0.0
  %556 = vmatpush1.msra.mxu0 %v177
  %557 = vmatprep.subr.mxu0 0.0
  %558 = vmatpush1.msra.mxu0 %v186
  %559 = vmatprep.subr.mxu0 0.0
  %560 = vmatpush1.msra.mxu0 %v195
  %561 = vmatprep.subr.mxu0 0.0
  %562 = vmatpush1.msra.mxu0 0.0
  %563 = vmatprep.subr.mxu0 0.0
  %564 = vmatpush1.msra.mxu0 0.0
  %565 = vmatprep.subr.mxu0 0.0
  %566 = vmatpush1.msra.mxu0 0.0
  %567 = vmatprep.subr.mxu0 0.0
  %568 = vmatpush1.msra.mxu0 0.0
  %569 = vmatprep.subr.mxu0 0.0
  %570 = vmatpush1.msra.mxu0 0.0
  %571 = vmatprep.subr.mxu0 0.0
  %572 = vmatpush1.msra.mxu0 0.0
  %573 = vmatprep.subr.mxu0 0.0
  %574 = vmatpush1.msra.mxu0 0.0
  %575 = vmatprep.subr.mxu0 0.0
  %576 = vmatpush1.msra.mxu0 0.0
  %577 = vmatprep.subr.mxu0 0.0
  %578 = vmatpush1.msra.mxu0 0.0
  %579 = vmatprep.subr.mxu0 0.0
  %580 = vmatpush1.msra.mxu0 0.0
  %581 = vmatprep.subr.mxu0 0.0
  %582 = vmatpush1.msra.mxu0 0.0
  %583 = vmatprep.subr.mxu0 0.0
  %584 = vmatpush1.msra.mxu0 0.0
  %585 = vmatprep.subr.mxu0 0.0
  %586 = vmatpush1.msra.mxu0 0.0
  %587 = vmatprep.subr.mxu0 0.0
  %588 = vmatpush1.msra.mxu0 0.0
  %589 = vmatprep.subr.mxu0 0.0
  %590 = vmatpush1.msra.mxu0 0.0
  %591 = vmatprep.subr.mxu0 0.0
  %592 = vmatpush1.msra.mxu0 0.0
  %593 = vmatprep.mubr.f32.mxu0 0.0
  %594 = vmatmul.mubr.f32.gmra.mrb[0].mxu0 %v51
  %v595 = vpop.f32.mrb[0].mxu0
  %v596 = vadd.f32 %v235, %v595
  %v597 = vpop.f32.mrb[0].mxu0
  %598 = vdwg.mxu0
  %v608 = vcombine.low %v312, %v314
  %v609 = vcombine.low %v383, %v385
  %v611 = vunpack.c.l.s4 1983009808
  %v612 = vunpack.c.0.s8 %v611
  %v613 = vlaneseq
  %v614 = vshrl.u32 %v613, 7
  %v615 = vsub.s32 %v612, %v614
  %v616 = vrot.slane %v608, %v615
  %v618 = vunpack.c.l.s4 1983009808
  %v619 = vunpack.c.0.s8 %v618
  %v620 = vlaneseq
  %v621 = vshrl.u32 %v620, 7
  %v622 = vsub.s32 %v619, %v621
  %v623 = vrot.slane %v609, %v622
  %v624 = vcombine.low %v616, %v623
  %v625 = vcombine.low %v454, %v456
  %v626 = vcombine.low %v525, %v527
  %v628 = vunpack.c.l.s4 1983009808
  %v629 = vunpack.c.0.s8 %v628
  %v630 = vlaneseq
  %v631 = vshrl.u32 %v630, 7
  %v632 = vsub.s32 %v629, %v631
  %v633 = vrot.slane %v625, %v632
  %v635 = vunpack.c.l.s4 1983009808
  %v636 = vunpack.c.0.s8 %v635
  %v637 = vlaneseq
  %v638 = vshrl.u32 %v637, 7
  %v639 = vsub.s32 %v636, %v638
  %v640 = vrot.slane %v626, %v639
  %v641 = vcombine.low %v633, %v640
  %v643 = vunpack.c.l.s4 1983009808
  %v644 = vunpack.c.0.s8 %v643
  %v645 = vlaneseq
  %v646 = vshrl.u32 %v645, 7
  %v647 = vsub.s32 %v644, %v646
  %v648 = vrot.slane %v596, %v647
  %652 = vst [vmem:[%s5] sm:$0xff] %v624
  %653 = vst [vmem:[%s5 + $0x8] sm:$0xff] %v641
  %654 = vst [vmem:[%s5 + $0x10] sm:$0x3] %v648
  // Predicated region
  $region22: #{vit_forward.5} parent=0 // pred_check
    _
  $region23: #{vit_forward.5} parent=0 // pred_check_branch
    %656 = sbr.rel (0) target = $region25
  $region24: #{vit_forward.5} parent=0 // pred_region
    _
  $region25: #{vit_forward.5} parent=0 // pred_fallthru
    _
  // Predicated region
  $region26: #{vit_forward.5} parent=0 // pred_check
    _
  $region27: #{vit_forward.5} parent=0 // pred_check_branch
    %658 = sbr.rel (0) target = $region29
  $region28: #{vit_forward.5} parent=0 // pred_region
    _
  $region29: #{vit_forward.5} parent=0 // pred_fallthru
    _

// kernel: vit_forward.4
$region0: #{vit_forward.4}
  #allocation0 [shape = 'u32[]', space=smem, size = 0x4, offset = 0x4, fixed_abs, tag = 'smem constant byte address 0x4 - core index']
  #allocation1 [shape = 'u32[144,128]{1,0:T(1,128)}', space=vmem, size = 0x12000, scoped, tag = 'internal scratch']
  %s0 = inlined_call_operand.vmem [shape: f32[16,128], index: 0, kind: input, shape index: {}]
  %s1 = inlined_call_operand.vmem [shape: f32[2,1,128], index: 1, kind: input, shape index: {}]
  %s2 = inlined_call_operand.vmem [shape: f32[2,1,128], index: 2, kind: input, shape index: {}]
  %s3 = inlined_call_operand.hbm [shape: f32[2,128,384], index: 3, kind: input, shape index: {}]
  %s4 = inlined_call_operand.vmem [shape: f32[2,1,384], index: 4, kind: input, shape index: {}]
  %s5 = inlined_call_operand.vmem [shape: f32[2,128,128], index: 5, kind: input, shape index: {}]
  %s6 = inlined_call_operand.vmem [shape: f32[2,1,128], index: 6, kind: input, shape index: {}]
  %s7 = inlined_call_operand.vmem [shape: f32[2,1,128], index: 7, kind: input, shape index: {}]
  %s8 = inlined_call_operand.vmem [shape: f32[2,1,128], index: 8, kind: input, shape index: {}]
  %s9 = inlined_call_operand.vmem [shape: f32[2,128,512], index: 9, kind: input, shape index: {}]
  %s10 = inlined_call_operand.vmem [shape: f32[2,1,512], index: 10, kind: input, shape index: {}]
  %s11 = inlined_call_operand.vmem [shape: f32[2,512,128], index: 11, kind: input, shape index: {}]
  %s12 = inlined_call_operand.vmem [shape: f32[2,1,128], index: 12, kind: input, shape index: {}]
  %s13 = inlined_call_operand.vmem [shape: f32[16,128], index: 13, kind: output, shape index: {}]
  %s14 = sld [smem:[#allocation0]]
  $region93: #{vit_forward.4} parent=0
    _
  %s16 = ssub.s32 1, %s14
  %s17 = scalar_select 0, %s16, %s14
  $region1: #{vit_forward.4} parent=0
    #allocation2 [shape = 'u8[393216]{0}', space=vmem, size = 0x60000, scoped, tag = 'input window, operand 3']
    #allocation3 [shape = 's32[2]{0}', space=sflag, size = 0x8, scoped, tag = 'scoped memory for vit_forward.4']
    %18 = vsyncpa [#allocation3], 0
    %s19 = scalar_lea.sflag [#allocation3], 1
    %20 = vsyncpa %s19, 0
    loop: start=0, step=1, limit=4
    $region2: #{vit_forward.4} parent=1 // loop_pre_header
      _
    $region3: #{vit_forward.4} parent=1 // loop_header
      %s22 = sphi 0, %s26
      %p23 = scmp.ge.s32.totalorder %s22, 4
      %s30 = sphi 0, %s30
      %s32 = sphi 0, %s30
      %s33 = sphi 0, %s32
      %s47 = sphi 0, %s33
      %s53 = sphi 0, %s55
      %s56 = sphi 0, %s53
      %s57 = sphi 0, %s56
      %s73 = sphi 0, %s57
      %s79 = sphi 0, %s81
      %s82 = sphi 0, %s79
      %s83 = sphi 0, %s82
      %s99 = sphi 0, %s83
      %s105 = sphi 0, %s107
      %s108 = sphi 0, %s105
      %s109 = sphi 0, %s108
      %s125 = sphi 0, %s109
      %s131 = sphi 0, %s133
      %s134 = sphi 0, %s131
      %s135 = sphi 0, %s134
      %s151 = sphi 0, %s135
      %s157 = sphi 0, %s159
      %s160 = sphi 0, %s157
      %s161 = sphi 0, %s160
      %s177 = sphi 0, %s161
      %s183 = sphi 0, %s185
      %s186 = sphi 0, %s183
      %s187 = sphi 0, %s186
      %s203 = sphi 0, %s187
      %s209 = sphi 0, %s211
      %s212 = sphi 0, %s209
      %s213 = sphi 0, %s212
      %s229 = sphi 0, %s213
      %s235 = sphi 0, %s237
      %s238 = sphi 0, %s235
      %s239 = sphi 0, %s238
      %s255 = sphi 0, %s239
      %s261 = sphi 0, %s263
      %s264 = sphi 0, %s261
      %s265 = sphi 0, %s264
      %s281 = sphi 0, %s265
      %s287 = sphi 0, %s289
      %s290 = sphi 0, %s287
      %s291 = sphi 0, %s290
      %s307 = sphi 0, %s291
      %s313 = sphi 0, %s315
      %s316 = sphi 0, %s313
      %s317 = sphi 0, %s316
      %s333 = sphi 0, %s317
      %s339 = sphi 0, %s341
      %s342 = sphi 0, %s339
      %s343 = sphi 0, %s342
      %s359 = sphi 0, %s343
      %s363 = sphi 0, %s363
      %s365 = sphi 0, %s363
      %s366 = sphi 0, %s365
      %s380 = sphi 0, %s366
    $region4: #{vit_forward.4} parent=1 // loop_header_branch
      %25 = sbr.rel (%p23) target = $region8
    $region5: #{vit_forward.4} parent=1 // loop_body
      %s27 = ssub.s32 %s22, 1
      %s28 = ssub.s32 %s22, 2
      %s29 = sadd.s32 %s22, 1
      %s31 = sadd.s32 %s30, 1
      %p34 = scmp.eq.s32.totalorder %s22, 1
      %p35 = scmp.ne.s32.totalorder %s30, %s32
      %p36 = scmp.eq.s32.totalorder %s22, 0
      %p37 = por %p35, %p36
      %p38 = scmp.ne.s32.totalorder %s30, %s32
      %p39 = scmp.eq.s32.totalorder %s27, 1
      %p40 = por %p38, %p39
      %p41 = scmp.ne.s32.totalorder %s32, %s33
      %p42 = scmp.eq.s32.totalorder %s27, 0
      %p43 = por %p41, %p42
      %p44 = scmp.ne.s32.totalorder %s32, %s33
      %p45 = scmp.eq.s32.totalorder %s28, 1
      %p46 = por %p44, %p45
      %p48 = scmp.ne.s32.totalorder %s33, %s47
      %p49 = scmp.eq.s32.totalorder %s28, 0
      %p50 = por %p48, %p49
      %s51 = ssub.s32 %s22, %s29
      %p52 = scmp.eq.s32.totalorder %s51, 0
      %s54 = sadd.s32 %s53, 1
      %s55 = scalar_select %p52, %s53, %s54
      %p58 = pneg %p52
      %p59 = scmp.eq.s32.totalorder %s22, 1
      %p60 = por %p58, %p59
      %p61 = scmp.ne.s32.totalorder %s53, %s56
      %p62 = scmp.eq.s32.totalorder %s22, 0
      %p63 = por %p61, %p62
      %p64 = scmp.ne.s32.totalorder %s53, %s56
      %p65 = scmp.eq.s32.totalorder %s27, 1
      %p66 = por %p64, %p65
      %p67 = scmp.ne.s32.totalorder %s56, %s57
      %p68 = scmp.eq.s32.totalorder %s27, 0
      %p69 = por %p67, %p68
      %p70 = scmp.ne.s32.totalorder %s56, %s57
      %p71 = scmp.eq.s32.totalorder %s28, 1
      %p72 = por %p70, %p71
      %p74 = scmp.ne.s32.totalorder %s57, %s73
      %p75 = scmp.eq.s32.totalorder %s28, 0
      %p76 = por %p74, %p75
      %s77 = ssub.s32 %s22, %s29
      %p78 = scmp.eq.s32.totalorder %s77, 0
      %s80 = sadd.s32 %s79, 1
      %s81 = scalar_select %p78, %s79, %s80
      %p84 = pneg %p78
      %p85 = scmp.eq.s32.totalorder %s22, 1
      %p86 = por %p84, %p85
      %p87 = scmp.ne.s32.totalorder %s79, %s82
      %p88 = scmp.eq.s32.totalorder %s22, 0
      %p89 = por %p87, %p88
      %p90 = scmp.ne.s32.totalorder %s79, %s82
      %p91 = scmp.eq.s32.totalorder %s27, 1
      %p92 = por %p90, %p91
      %p93 = scmp.ne.s32.totalorder %s82, %s83
      %p94 = scmp.eq.s32.totalorder %s27, 0
      %p95 = por %p93, %p94
      %p96 = scmp.ne.s32.totalorder %s82, %s83
      %p97 = scmp.eq.s32.totalorder %s28, 1
      %p98 = por %p96, %p97
      %p100 = scmp.ne.s32.totalorder %s83, %s99
      %p101 = scmp.eq.s32.totalorder %s28, 0
      %p102 = por %p100, %p101
      %s103 = ssub.s32 %s22, %s29
      %p104 = scmp.eq.s32.totalorder %s103, 0
      %s106 = sadd.s32 %s105, 1
      %s107 = scalar_select %p104, %s105, %s106
      %p110 = pneg %p104
      %p111 = scmp.eq.s32.totalorder %s22, 1
      %p112 = por %p110, %p111
      %p113 = scmp.ne.s32.totalorder %s105, %s108
      %p114 = scmp.eq.s32.totalorder %s22, 0
      %p115 = por %p113, %p114
      %p116 = scmp.ne.s32.totalorder %s105, %s108
      %p117 = scmp.eq.s32.totalorder %s27, 1
      %p118 = por %p116, %p117
      %p119 = scmp.ne.s32.totalorder %s108, %s109
      %p120 = scmp.eq.s32.totalorder %s27, 0
      %p121 = por %p119, %p120
      %p122 = scmp.ne.s32.totalorder %s108, %s109
      %p123 = scmp.eq.s32.totalorder %s28, 1
      %p124 = por %p122, %p123
      %p126 = scmp.ne.s32.totalorder %s109, %s125
      %p127 = scmp.eq.s32.totalorder %s28, 0
      %p128 = por %p126, %p127
      %s129 = ssub.s32 %s22, %s29
      %p130 = scmp.eq.s32.totalorder %s129, 0
      %s132 = sadd.s32 %s131, 1
      %s133 = scalar_select %p130, %s131, %s132
      %p136 = pneg %p130
      %p137 = scmp.eq.s32.totalorder %s22, 1
      %p138 = por %p136, %p137
      %p139 = scmp.ne.s32.totalorder %s131, %s134
      %p140 = scmp.eq.s32.totalorder %s22, 0
      %p141 = por %p139, %p140
      %p142 = scmp.ne.s32.totalorder %s131, %s134
      %p143 = scmp.eq.s32.totalorder %s27, 1
      %p144 = por %p142, %p143
      %p145 = scmp.ne.s32.totalorder %s134, %s135
      %p146 = scmp.eq.s32.totalorder %s27, 0
      %p147 = por %p145, %p146
      %p148 = scmp.ne.s32.totalorder %s134, %s135
      %p149 = scmp.eq.s32.totalorder %s28, 1
      %p150 = por %p148, %p149
      %p152 = scmp.ne.s32.totalorder %s135, %s151
      %p153 = scmp.eq.s32.totalorder %s28, 0
      %p154 = por %p152, %p153
      %s155 = ssub.s32 %s22, %s29
      %p156 = scmp.eq.s32.totalorder %s155, 0
      %s158 = sadd.s32 %s157, 1
      %s159 = scalar_select %p156, %s157, %s158
      %p162 = pneg %p156
      %p163 = scmp.eq.s32.totalorder %s22, 1
      %p164 = por %p162, %p163
      %p165 = scmp.ne.s32.totalorder %s157, %s160
      %p166 = scmp.eq.s32.totalorder %s22, 0
      %p167 = por %p165, %p166
      %p168 = scmp.ne.s32.totalorder %s157, %s160
      %p169 = scmp.eq.s32.totalorder %s27, 1
      %p170 = por %p168, %p169
      %p171 = scmp.ne.s32.totalorder %s160, %s161
      %p172 = scmp.eq.s32.totalorder %s27, 0
      %p173 = por %p171, %p172
      %p174 = scmp.ne.s32.totalorder %s160, %s161
      %p175 = scmp.eq.s32.totalorder %s28, 1
      %p176 = por %p174, %p175
      %p178 = scmp.ne.s32.totalorder %s161, %s177
      %p179 = scmp.eq.s32.totalorder %s28, 0
      %p180 = por %p178, %p179
      %s181 = ssub.s32 %s22, %s29
      %p182 = scmp.eq.s32.totalorder %s181, 0
      %s184 = sadd.s32 %s183, 1
      %s185 = scalar_select %p182, %s183, %s184
      %p188 = pneg %p182
      %p189 = scmp.eq.s32.totalorder %s22, 1
      %p190 = por %p188, %p189
      %p191 = scmp.ne.s32.totalorder %s183, %s186
      %p192 = scmp.eq.s32.totalorder %s22, 0
      %p193 = por %p191, %p192
      %p194 = scmp.ne.s32.totalorder %s183, %s186
      %p195 = scmp.eq.s32.totalorder %s27, 1
      %p196 = por %p194, %p195
      %p197 = scmp.ne.s32.totalorder %s186, %s187
      %p198 = scmp.eq.s32.totalorder %s27, 0
      %p199 = por %p197, %p198
      %p200 = scmp.ne.s32.totalorder %s186, %s187
      %p201 = scmp.eq.s32.totalorder %s28, 1
      %p202 = por %p200, %p201
      %p204 = scmp.ne.s32.totalorder %s187, %s203
      %p205 = scmp.eq.s32.totalorder %s28, 0
      %p206 = por %p204, %p205
      %s207 = ssub.s32 %s22, %s29
      %p208 = scmp.eq.s32.totalorder %s207, 0
      %s210 = sadd.s32 %s209, 1
      %s211 = scalar_select %p208, %s209, %s210
      %p214 = pneg %p208
      %p215 = scmp.eq.s32.totalorder %s22, 1
      %p216 = por %p214, %p215
      %p217 = scmp.ne.s32.totalorder %s209, %s212
      %p218 = scmp.eq.s32.totalorder %s22, 0
      %p219 = por %p217, %p218
      %p220 = scmp.ne.s32.totalorder %s209, %s212
      %p221 = scmp.eq.s32.totalorder %s27, 1
      %p222 = por %p220, %p221
      %p223 = scmp.ne.s32.totalorder %s212, %s213
      %p224 = scmp.eq.s32.totalorder %s27, 0
      %p225 = por %p223, %p224
      %p226 = scmp.ne.s32.totalorder %s212, %s213
      %p227 = scmp.eq.s32.totalorder %s28, 1
      %p228 = por %p226, %p227
      %p230 = scmp.ne.s32.totalorder %s213, %s229
      %p231 = scmp.eq.s32.totalorder %s28, 0
      %p232 = por %p230, %p231
      %s233 = ssub.s32 %s22, %s29
      %p234 = scmp.eq.s32.totalorder %s233, 0
      %s236 = sadd.s32 %s235, 1
      %s237 = scalar_select %p234, %s235, %s236
      %p240 = pneg %p234
      %p241 = scmp.eq.s32.totalorder %s22, 1
      %p242 = por %p240, %p241
      %p243 = scmp.ne.s32.totalorder %s235, %s238
      %p244 = scmp.eq.s32.totalorder %s22, 0
      %p245 = por %p243, %p244
      %p246 = scmp.ne.s32.totalorder %s235, %s238
      %p247 = scmp.eq.s32.totalorder %s27, 1
      %p248 = por %p246, %p247
      %p249 = scmp.ne.s32.totalorder %s238, %s239
      %p250 = scmp.eq.s32.totalorder %s27, 0
      %p251 = por %p249, %p250
      %p252 = scmp.ne.s32.totalorder %s238, %s239
      %p253 = scmp.eq.s32.totalorder %s28, 1
      %p254 = por %p252, %p253
      %p256 = scmp.ne.s32.totalorder %s239, %s255
      %p257 = scmp.eq.s32.totalorder %s28, 0
      %p258 = por %p256, %p257
      %s259 = ssub.s32 %s22, %s29
      %p260 = scmp.eq.s32.totalorder %s259, 0
      %s262 = sadd.s32 %s261, 1
      %s263 = scalar_select %p260, %s261, %s262
      %p266 = pneg %p260
      %p267 = scmp.eq.s32.totalorder %s22, 1
      %p268 = por %p266, %p267
      %p269 = scmp.ne.s32.totalorder %s261, %s264
      %p270 = scmp.eq.s32.totalorder %s22, 0
      %p271 = por %p269, %p270
      %p272 = scmp.ne.s32.totalorder %s261, %s264
      %p273 = scmp.eq.s32.totalorder %s27, 1
      %p274 = por %p272, %p273
      %p275 = scmp.ne.s32.totalorder %s264, %s265
      %p276 = scmp.eq.s32.totalorder %s27, 0
      %p277 = por %p275, %p276
      %p278 = scmp.ne.s32.totalorder %s264, %s265
      %p279 = scmp.eq.s32.totalorder %s28, 1
      %p280 = por %p278, %p279
      %p282 = scmp.ne.s32.totalorder %s265, %s281
      %p283 = scmp.eq.s32.totalorder %s28, 0
      %p284 = por %p282, %p283
      %s285 = ssub.s32 %s22, %s29
      %p286 = scmp.eq.s32.totalorder %s285, 0
      %s288 = sadd.s32 %s287, 1
      %s289 = scalar_select %p286, %s287, %s288
      %p292 = pneg %p286
      %p293 = scmp.eq.s32.totalorder %s22, 1
      %p294 = por %p292, %p293
      %p295 = scmp.ne.s32.totalorder %s287, %s290
      %p296 = scmp.eq.s32.totalorder %s22, 0
      %p297 = por %p295, %p296
      %p298 = scmp.ne.s32.totalorder %s287, %s290
      %p299 = scmp.eq.s32.totalorder %s27, 1
      %p300 = por %p298, %p299
      %p301 = scmp.ne.s32.totalorder %s290, %s291
      %p302 = scmp.eq.s32.totalorder %s27, 0
      %p303 = por %p301, %p302
      %p304 = scmp.ne.s32.totalorder %s290, %s291
      %p305 = scmp.eq.s32.totalorder %s28, 1
      %p306 = por %p304, %p305
      %p308 = scmp.ne.s32.totalorder %s291, %s307
      %p309 = scmp.eq.s32.totalorder %s28, 0
      %p310 = por %p308, %p309
      %s311 = ssub.s32 %s22, %s29
      %p312 = scmp.eq.s32.totalorder %s311, 0
      %s314 = sadd.s32 %s313, 1
      %s315 = scalar_select %p312, %s313, %s314
      %p318 = pneg %p312
      %p319 = scmp.eq.s32.totalorder %s22, 1
      %p320 = por %p318, %p319
      %p321 = scmp.ne.s32.totalorder %s313, %s316
      %p322 = scmp.eq.s32.totalorder %s22, 0
      %p323 = por %p321, %p322
      %p324 = scmp.ne.s32.totalorder %s313, %s316
      %p325 = scmp.eq.s32.totalorder %s27, 1
      %p326 = por %p324, %p325
      %p327 = scmp.ne.s32.totalorder %s316, %s317
      %p328 = scmp.eq.s32.totalorder %s27, 0
      %p329 = por %p327, %p328
      %p330 = scmp.ne.s32.totalorder %s316, %s317
      %p331 = scmp.eq.s32.totalorder %s28, 1
      %p332 = por %p330, %p331
      %p334 = scmp.ne.s32.totalorder %s317, %s333
      %p335 = scmp.eq.s32.totalorder %s28, 0
      %p336 = por %p334, %p335
      %s337 = ssub.s32 %s22, %s29
      %p338 = scmp.eq.s32.totalorder %s337, 0
      %s340 = sadd.s32 %s339, 1
      %s341 = scalar_select %p338, %s339, %s340
      %p344 = pneg %p338
      %p345 = scmp.eq.s32.totalorder %s22, 1
      %p346 = por %p344, %p345
      %p347 = scmp.ne.s32.totalorder %s339, %s342
      %p348 = scmp.eq.s32.totalorder %s22, 0
      %p349 = por %p347, %p348
      %p350 = scmp.ne.s32.totalorder %s339, %s342
      %p351 = scmp.eq.s32.totalorder %s27, 1
      %p352 = por %p350, %p351
      %p353 = scmp.ne.s32.totalorder %s342, %s343
      %p354 = scmp.eq.s32.totalorder %s27, 0
      %p355 = por %p353, %p354
      %p356 = scmp.ne.s32.totalorder %s342, %s343
      %p357 = scmp.eq.s32.totalorder %s28, 1
      %p358 = por %p356, %p357
      %p360 = scmp.ne.s32.totalorder %s343, %s359
      %p361 = scmp.eq.s32.totalorder %s28, 0
      %p362 = por %p360, %p361
      %s364 = sadd.s32 %s363, 1
      %p367 = scmp.eq.s32.totalorder %s22, 1
      %p368 = scmp.ne.s32.totalorder %s363, %s365
      %p369 = scmp.eq.s32.totalorder %s22, 0
      %p370 = por %p368, %p369
      %p371 = scmp.ne.s32.totalorder %s363, %s365
      %p372 = scmp.eq.s32.totalorder %s27, 1
      %p373 = por %p371, %p372
      %p374 = scmp.ne.s32.totalorder %s365, %s366
      %p375 = scmp.eq.s32.totalorder %s27, 0
      %p376 = por %p374, %p375
      %p377 = scmp.ne.s32.totalorder %s365, %s366
      %p378 = scmp.eq.s32.totalorder %s28, 1
      %p379 = por %p377, %p378
      %p381 = scmp.ne.s32.totalorder %s366, %s380
      %p382 = scmp.eq.s32.totalorder %s28, 0
      %p383 = por %p381, %p382
      %p384 = scmp.le.s32.totalorder 1, %s22
      %p385 = scmp.lt.s32.totalorder %s22, 3
      %p386 = pnand %p384, %p385
      %p387 = pneg %p386
      // Predicated region
      $region9: #{vit_forward.4} parent=5 // pred_check
        _
      $region10: #{vit_forward.4} parent=5 // pred_check_branch
        %389 = sbr.rel (%p386) target = $region12
      $region11: #{vit_forward.4} parent=5 // pred_region
        %s390 = ssub.s32 %s22, 1
        // Predicated region
        $region13: #{vit_forward.4} parent=11 // pred_check
          %p391 = pneg %p43
        $region14: #{vit_forward.4} parent=11 // pred_check_branch
          %393 = sbr.rel (%p391) target = $region16
        $region15: #{vit_forward.4} parent=11 // pred_region
          _
        $region16: #{vit_forward.4} parent=11 // pred_fallthru
          _
      $region12: #{vit_forward.4} parent=5 // pred_fallthru
        _
      %p394 = scmp.lt.s32.totalorder %s22, 2
      // Predicated region
      $region17: #{vit_forward.4} parent=5 // pred_check
        %p395 = pneg %p394
      $region18: #{vit_forward.4} parent=5 // pred_check_branch
        %397 = sbr.rel (%p395) target = $region20
      $region19: #{vit_forward.4} parent=5 // pred_region
        // Predicated region
        $region21: #{vit_forward.4} parent=19 // pred_check
          %p398 = pneg %p63
        $region22: #{vit_forward.4} parent=19 // pred_check_branch
          %400 = sbr.rel (%p398) target = $region24
        $region23: #{vit_forward.4} parent=19 // pred_region
          %p401 = scmp.lt.s32.totalorder %s22, 1
          %s402 = scalar_select %p401, %s22, 1
          %s403 = scalar_lea.vmem %s1, %s402
        $region24: #{vit_forward.4} parent=19 // pred_fallthru
          _
        // Predicated region
        $region25: #{vit_forward.4} parent=19 // pred_check
          %p404 = pneg %p89
        $region26: #{vit_forward.4} parent=19 // pred_check_branch
          %406 = sbr.rel (%p404) target = $region28
        $region27: #{vit_forward.4} parent=19 // pred_region
          %p407 = scmp.lt.s32.totalorder %s22, 1
          %s408 = scalar_select %p407, %s22, 1
          %s409 = scalar_lea.vmem %s2, %s408
        $region28: #{vit_forward.4} parent=19 // pred_fallthru
          _
        // Predicated region
        $region29: #{vit_forward.4} parent=19 // pred_check
          %p410 = pneg %p115
        $region30: #{vit_forward.4} parent=19 // pred_check_branch
          %412 = sbr.rel (%p410) target = $region32
        $region31: #{vit_forward.4} parent=19 // pred_region
          %s413 = sand.u32 %s105, 1
          %s414 = scalar_lea.sflag [#allocation3], %s413
          %s415 = sand.u32 %s105, 1
          %s416 = smul.addr %s415, 384
          %s417 = scalar_lea.vmem [#allocation2], %s416
          %s419 = ssub.s32 6144, 6144
          %420 = vsyncadd %s414, %s419
          %s421 = smul.addr %s22, 48
          %s422 = smul.addr %s421, 128
          %s423 = scalar_lea.hbm %s3, %s422
          %s424 = sshll.u32 %s417, 4
          %s425 = int_to_ptr.vmem [resolvable:$true] %s424
          %430 = dma.hbm_to_vmem [thread:$0]  %s423, 6144, %s425, %s414, 384, 384, 24
        $region32: #{vit_forward.4} parent=19 // pred_fallthru
          _
        // Predicated region
        $region33: #{vit_forward.4} parent=19 // pred_check
          %p431 = pneg %p141
        $region34: #{vit_forward.4} parent=19 // pred_check_branch
          %433 = sbr.rel (%p431) target = $region36
        $region35: #{vit_forward.4} parent=19 // pred_region
          %p434 = scmp.lt.s32.totalorder %s22, 1
          %s435 = scalar_select %p434, %s22, 1
          %s436 = smul.addr %s435, 3
          %s437 = scalar_lea.vmem %s4, %s436
        $region36: #{vit_forward.4} parent=19 // pred_fallthru
          _
        // Predicated region
        $region37: #{vit_forward.4} parent=19 // pred_check
          %p438 = pneg %p167
        $region38: #{vit_forward.4} parent=19 // pred_check_branch
          %440 = sbr.rel (%p438) target = $region40
        $region39: #{vit_forward.4} parent=19 // pred_region
          %p441 = scmp.lt.s32.totalorder %s22, 1
          %s442 = scalar_select %p441, %s22, 1
          %s443 = smul.addr %s442, 16
          %s444 = smul.addr %s443, 8
          %s445 = scalar_lea.vmem %s5, %s444
        $region40: #{vit_forward.4} parent=19 // pred_fallthru
          _
        // Predicated region
        $region41: #{vit_forward.4} parent=19 // pred_check
          %p446 = pneg %p193
        $region42: #{vit_forward.4} parent=19 // pred_check_branch
          %448 = sbr.rel (%p446) target = $region44
        $region43: #{vit_forward.4} parent=19 // pred_region
          %p449 = scmp.lt.s32.totalorder %s22, 1
          %s450 = scalar_select %p449, %s22, 1
          %s451 = scalar_lea.vmem %s6, %s450
        $region44: #{vit_forward.4} parent=19 // pred_fallthru
          _
        // Predicated region
        $region45: #{vit_forward.4} parent=19 // pred_check
          %p452 = pneg %p219
        $region46: #{vit_forward.4} parent=19 // pred_check_branch
          %454 = sbr.rel (%p452) target = $region48
        $region47: #{vit_forward.4} parent=19 // pred_region
          %p455 = scmp.lt.s32.totalorder %s22, 1
          %s456 = scalar_select %p455, %s22, 1
          %s457 = scalar_lea.vmem %s7, %s456
        $region48: #{vit_forward.4} parent=19 // pred_fallthru
          _
        // Predicated region
        $region49: #{vit_forward.4} parent=19 // pred_check
          %p458 = pneg %p245
        $region50: #{vit_forward.4} parent=19 // pred_check_branch
          %460 = sbr.rel (%p458) target = $region52
        $region51: #{vit_forward.4} parent=19 // pred_region
          %p461 = scmp.lt.s32.totalorder %s22, 1
          %s462 = scalar_select %p461, %s22, 1
          %s463 = scalar_lea.vmem %s8, %s462
        $region52: #{vit_forward.4} parent=19 // pred_fallthru
          _
        // Predicated region
        $region53: #{vit_forward.4} parent=19 // pred_check
          %p464 = pneg %p271
        $region54: #{vit_forward.4} parent=19 // pred_check_branch
          %466 = sbr.rel (%p464) target = $region56
        $region55: #{vit_forward.4} parent=19 // pred_region
          %p467 = scmp.lt.s32.totalorder %s22, 1
          %s468 = scalar_select %p467, %s22, 1
          %s469 = smul.addr %s468, 64
          %s470 = smul.addr %s469, 8
          %s471 = scalar_lea.vmem %s9, %s470
        $region56: #{vit_forward.4} parent=19 // pred_fallthru
          _
        // Predicated region
        $region57: #{vit_forward.4} parent=19 // pred_check
          %p472 = pneg %p297
        $region58: #{vit_forward.4} parent=19 // pred_check_branch
          %474 = sbr.rel (%p472) target = $region60
        $region59: #{vit_forward.4} parent=19 // pred_region
          %p475 = scmp.lt.s32.totalorder %s22, 1
          %s476 = scalar_select %p475, %s22, 1
          %s477 = smul.addr %s476, 4
          %s478 = scalar_lea.vmem %s10, %s477
        $region60: #{vit_forward.4} parent=19 // pred_fallthru
          _
        // Predicated region
        $region61: #{vit_forward.4} parent=19 // pred_check
          %p479 = pneg %p323
        $region62: #{vit_forward.4} parent=19 // pred_check_branch
          %481 = sbr.rel (%p479) target = $region64
        $region63: #{vit_forward.4} parent=19 // pred_region
          %p482 = scmp.lt.s32.totalorder %s22, 1
          %s483 = scalar_select %p482, %s22, 1
          %s484 = smul.addr %s483, 64
          %s485 = smul.addr %s484, 8
          %s486 = scalar_lea.vmem %s11, %s485
        $region64: #{vit_forward.4} parent=19 // pred_fallthru
          _
        // Predicated region
        $region65: #{vit_forward.4} parent=19 // pred_check
          %p487 = pneg %p349
        $region66: #{vit_forward.4} parent=19 // pred_check_branch
          %489 = sbr.rel (%p487) target = $region68
        $region67: #{vit_forward.4} parent=19 // pred_region
          %p490 = scmp.lt.s32.totalorder %s22, 1
          %s491 = scalar_select %p490, %s22, 1
          %s492 = scalar_lea.vmem %s12, %s491
        $region68: #{vit_forward.4} parent=19 // pred_fallthru
          _
      $region20: #{vit_forward.4} parent=5 // pred_fallthru
        _
      %p493 = scmp.le.s32.totalorder 1, %s22
      %p494 = scmp.lt.s32.totalorder %s22, 3
      %p495 = pnand %p493, %p494
      %p496 = pneg %p495
      // Predicated region
      $region69: #{vit_forward.4} parent=5 // pred_check
        _
      $region70: #{vit_forward.4} parent=5 // pred_check_branch
        %498 = sbr.rel (%p495) target = $region72
      $region71: #{vit_forward.4} parent=5 // pred_region
        %s499 = ssub.s32 %s22, 1
        %s500 = sand.u32 %s108, 1
        %s501 = scalar_lea.sflag [#allocation3], %s500
        %s502 = sand.u32 %s108, 1
        %s503 = smul.addr %s502, 384
        %s504 = scalar_lea.vmem [#allocation2], %s503
        // Predicated region
        $region73: #{vit_forward.4} parent=71 // pred_check
          %p505 = pneg %p121
        $region74: #{vit_forward.4} parent=71 // pred_check_branch
          %507 = sbr.rel (%p505) target = $region76
        $region75: #{vit_forward.4} parent=71 // pred_region
          %508 = dma.done %s501, 6144
        $region76: #{vit_forward.4} parent=71 // pred_fallthru
          _
        %p509 = pneg %p43
        %p510 = pneg %p40
        %p511 = scmp.lt.s32.totalorder %s27, 1
        %s512 = scalar_select %p511, %s27, 1
        %s513 = scalar_lea.vmem %s1, %s512
        %p514 = pneg %p69
        %p515 = pneg %p66
        %p516 = scmp.lt.s32.totalorder %s27, 1
        %s517 = scalar_select %p516, %s27, 1
        %s518 = scalar_lea.vmem %s2, %s517
        %p519 = pneg %p95
        %p520 = pneg %p92
        %s521 = sand.u32 %s108, 1
        %s522 = scalar_lea.sflag [#allocation3], %s521
        %s523 = sand.u32 %s108, 1
        %s524 = smul.addr %s523, 384
        %s525 = scalar_lea.vmem [#allocation2], %s524
        %p526 = pneg %p121
        %p527 = pneg %p118
        %p528 = scmp.lt.s32.totalorder %s27, 1
        %s529 = scalar_select %p528, %s27, 1
        %s530 = smul.addr %s529, 3
        %s531 = scalar_lea.vmem %s4, %s530
        %p532 = pneg %p147
        %p533 = pneg %p144
        %p534 = scmp.lt.s32.totalorder %s27, 1
        %s535 = scalar_select %p534, %s27, 1
        %s536 = smul.addr %s535, 16
        %s537 = smul.addr %s536, 8
        %s538 = scalar_lea.vmem %s5, %s537
        %p539 = pneg %p173
        %p540 = pneg %p170
        %p541 = scmp.lt.s32.totalorder %s27, 1
        %s542 = scalar_select %p541, %s27, 1
        %s543 = scalar_lea.vmem %s6, %s542
        %p544 = pneg %p199
        %p545 = pneg %p196
        %p546 = scmp.lt.s32.totalorder %s27, 1
        %s547 = scalar_select %p546, %s27, 1
        %s548 = scalar_lea.vmem %s7, %s547
        %p549 = pneg %p225
        %p550 = pneg %p222
        %p551 = scmp.lt.s32.totalorder %s27, 1
        %s552 = scalar_select %p551, %s27, 1
        %s553 = scalar_lea.vmem %s8, %s552
        %p554 = pneg %p251
        %p555 = pneg %p248
        %p556 = scmp.lt.s32.totalorder %s27, 1
        %s557 = scalar_select %p556, %s27, 1
        %s558 = smul.addr %s557, 64
        %s559 = smul.addr %s558, 8
        %s560 = scalar_lea.vmem %s9, %s559
        %p561 = pneg %p277
        %p562 = pneg %p274
        %p563 = scmp.lt.s32.totalorder %s27, 1
        %s564 = scalar_select %p563, %s27, 1
        %s565 = smul.addr %s564, 4
        %s566 = scalar_lea.vmem %s10, %s565
        %p567 = pneg %p303
        %p568 = pneg %p300
        %p569 = scmp.lt.s32.totalorder %s27, 1
        %s570 = scalar_select %p569, %s27, 1
        %s571 = smul.addr %s570, 64
        %s572 = smul.addr %s571, 8
        %s573 = scalar_lea.vmem %s11, %s572
        %p574 = pneg %p329
        %p575 = pneg %p326
        %p576 = scmp.lt.s32.totalorder %s27, 1
        %s577 = scalar_select %p576, %s27, 1
        %s578 = scalar_lea.vmem %s12, %s577
        %p579 = pneg %p355
        %p580 = pneg %p352
        %p581 = pneg %p376
        %p582 = pneg %p373
        %p583 = scmp.lt.s32.totalorder %s27, 1
        %s584 = scalar_select %p583, %s27, 1
        %s585 = scalar_lea.vmem %s1, %s584
        %p586 = scmp.lt.s32.totalorder %s27, 1
        %s587 = scalar_select %p586, %s27, 1
        %s588 = scalar_lea.vmem %s2, %s587
        %p589 = scmp.lt.s32.totalorder %s27, 1
        %s590 = scalar_select %p589, %s27, 1
        %s591 = smul.addr %s590, 3
        %s592 = scalar_lea.vmem %s4, %s591
        %p593 = scmp.lt.s32.totalorder %s27, 1
        %s594 = scalar_select %p593, %s27, 1
        %s595 = smul.addr %s594, 16
        %s596 = smul.addr %s595, 8
        %s597 = scalar_lea.vmem %s5, %s596
        %p598 = scmp.lt.s32.totalorder %s27, 1
        %s599 = scalar_select %p598, %s27, 1
        %s600 = scalar_lea.vmem %s6, %s599
        %p601 = scmp.lt.s32.totalorder %s27, 1
        %s602 = scalar_select %p601, %s27, 1
        %s603 = scalar_lea.vmem %s7, %s602
        %p604 = scmp.lt.s32.totalorder %s27, 1
        %s605 = scalar_select %p604, %s27, 1
        %s606 = scalar_lea.vmem %s8, %s605
        %p607 = scmp.lt.s32.totalorder %s27, 1
        %s608 = scalar_select %p607, %s27, 1
        %s609 = smul.addr %s608, 64
        %s610 = smul.addr %s609, 8
        %s611 = scalar_lea.vmem %s9, %s610
        %p612 = scmp.lt.s32.totalorder %s27, 1
        %s613 = scalar_select %p612, %s27, 1
        %s614 = smul.addr %s613, 4
        %s615 = scalar_lea.vmem %s10, %s614
        %p616 = scmp.lt.s32.totalorder %s27, 1
        %s617 = scalar_select %p616, %s27, 1
        %s618 = smul.addr %s617, 64
        %s619 = smul.addr %s618, 8
        %s620 = scalar_lea.vmem %s11, %s619
        %p621 = scmp.lt.s32.totalorder %s27, 1
        %s622 = scalar_select %p621, %s27, 1
        %s623 = scalar_lea.vmem %s12, %s622
        %p624 = scmp.eq.s32.totalorder %s27, 0
        // Predicated region
        $region77: #{vit_forward.4} parent=71 // pred_check
          %p625 = pneg %p624
        $region78: #{vit_forward.4} parent=71 // pred_check_branch
          %627 = sbr.rel (%p625) target = $region80
        $region79: #{vit_forward.4} parent=71 // pred_region
          %v628 = vld [vmem:[%s0] sm:$0xff]
          %v629 = vld [vmem:[%s0 + $0x8] sm:$0xff]
          %630 = vst [vmem:[%s13] sm:$0xff] %v628
          %631 = vst [vmem:[%s13 + $0x8] sm:$0xff] %v629
        $region80: #{vit_forward.4} parent=71 // pred_fallthru
          _
        %v632 = vld [vmem:[%s13] sm:$0xff]
        %v633 = vld [vmem:[%s13 + $0x8] sm:$0xff]
        %v634 = vld [vmem:[%s585] sm:$0x1]
        %v635 = vld [vmem:[%s588] sm:$0x1]
        %636 = vadd.xlane.f32.xlu0 %v632
        %v637 = vpop.xlane.xlu0 %636
        %638 = vadd.xlane.f32.xlu0 %v633
        %v639 = vpop.xlane.xlu0 %638
        %v640 = vrcp.pop 128.0
        %v641 = vmul.f32 %v637, %v640
        %v642 = vmul.f32 %v639, %v640
        %v643 = vsub.f32 %v632, %v641
        %v644 = vsub.f32 %v633, %v642
        %v645 = vmul.f32 %v643, %v643
        %v646 = vmul.f32 %v644, %v644
        %647 = vadd.xlane.f32.xlu0 %v645
        %v648 = vpop.xlane.xlu0 %647
        %649 = vadd.xlane.f32.xlu0 %v646
        %v650 = vpop.xlane.xlu0 %649
        %v651 = vmul.f32 %v648, %v640
        %v652 = vmul.f32 %v650, %v640
        %v653 = vadd.f32 %v651, 1e-12
        %v654 = vadd.f32 %v652, 1e-12
        %v655 = vrsqrt.pop %v653
        %v656 = vrsqrt.pop %v654
        %v657 = vmul.f32 %v643, %v655
        %v658 = vmul.f32 %v644, %v656
        %v660 = vlaneseq
        %v661 = vshrl.u32 %v660, 7
        %v662 = vsub.s32 0, %v661
        %v663 = vrot.slane %v634, %v662
        %v665 = vmul.f32 %v657, %v663
        %v666 = vmul.f32 %v658, %v663
        %v668 = vlaneseq
        %v669 = vshrl.u32 %v668, 7
        %v670 = vsub.s32 0, %v669
        %v671 = vrot.slane %v635, %v670
        %v673 = vadd.f32 %v665, %v671
        %v674 = vadd.f32 %v666, %v671
        %v675 = vld [vmem:[%s504] sm:$0xff]
        %v676 = vld [vmem:[%s504 + $0x8] sm:$0xff]
        %v677 = vld [vmem:[%s504 + $0x10] sm:$0xff]
        %v678 = vld [vmem:[%s504 + $0x18] sm:$0xff]
        %v679 = vld [vmem:[%s504 + $0x20] sm:$0xff]
        %v680 = vld [vmem:[%s504 + $0x28] sm:$0xff]
        %v681 = vld [vmem:[%s504 + $0x30] sm:$0xff]
        %v682 = vld [vmem:[%s504 + $0x38] sm:$0xff]
        %v683 = vld [vmem:[%s504 + $0x40] sm:$0xff]
        %v684 = vld [vmem:[%s504 + $0x48] sm:$0xff]
        %v685 = vld [vmem:[%s504 + $0x50] sm:$0xff]
        %v686 = vld [vmem:[%s504 + $0x58] sm:$0xff]
        %v687 = vld [vmem:[%s504 + $0x60] sm:$0xff]
        %v688 = vld [vmem:[%s504 + $0x68] sm:$0xff]
        %v689 = vld [vmem:[%s504 + $0x70] sm:$0xff]
        %v690 = vld [vmem:[%s504 + $0x78] sm:$0xff]
        %v691 = vld [vmem:[%s504 + $0x80] sm:$0xff]
        %v692 = vld [vmem:[%s504 + $0x88] sm:$0xff]
        %v693 = vld [vmem:[%s504 + $0x90] sm:$0xff]
        %v694 = vld [vmem:[%s504 + $0x98] sm:$0xff]
        %v695 = vld [vmem:[%s504 + $0xa0] sm:$0xff]
        %v696 = vld [vmem:[%s504 + $0xa8] sm:$0xff]
        %v697 = vld [vmem:[%s504 + $0xb0] sm:$0xff]
        %v698 = vld [vmem:[%s504 + $0xb8] sm:$0xff]
        %v699 = vld [vmem:[%s504 + $0xc0] sm:$0xff]
        %v700 = vld [vmem:[%s504 + $0xc8] sm:$0xff]
        %v701 = vld [vmem:[%s504 + $0xd0] sm:$0xff]
        %v702 = vld [vmem:[%s504 + $0xd8] sm:$0xff]
        %v703 = vld [vmem:[%s504 + $0xe0] sm:$0xff]
        %v704 = vld [vmem:[%s504 + $0xe8] sm:$0xff]
        %v705 = vld [vmem:[%s504 + $0xf0] sm:$0xff]
        %v706 = vld [vmem:[%s504 + $0xf8] sm:$0xff]
        %v707 = vld [vmem:[%s504 + $0x100] sm:$0xff]
        %v708 = vld [vmem:[%s504 + $0x108] sm:$0xff]
        %v709 = vld [vmem:[%s504 + $0x110] sm:$0xff]
        %v710 = vld [vmem:[%s504 + $0x118] sm:$0xff]
        %v711 = vld [vmem:[%s504 + $0x120] sm:$0xff]
        %v712 = vld [vmem:[%s504 + $0x128] sm:$0xff]
        %v713 = vld [vmem:[%s504 + $0x130] sm:$0xff]
        %v714 = vld [vmem:[%s504 + $0x138] sm:$0xff]
        %v715 = vld [vmem:[%s504 + $0x140] sm:$0xff]
        %v716 = vld [vmem:[%s504 + $0x148] sm:$0xff]
        %v717 = vld [vmem:[%s504 + $0x150] sm:$0xff]
        %v718 = vld [vmem:[%s504 + $0x158] sm:$0xff]
        %v719 = vld [vmem:[%s504 + $0x160] sm:$0xff]
        %v720 = vld [vmem:[%s504 + $0x168] sm:$0xff]
        %v721 = vld [vmem:[%s504 + $0x170] sm:$0xff]
        %v722 = vld [vmem:[%s504 + $0x178] sm:$0xff]
        %v723 = vld [vmem:[%s592] sm:$0x7]
        %v725 = vlaneseq
        %v726 = vshrl.u32 %v725, 7
        %v727 = vsub.s32 0, %v726
        %v728 = vrot.slane %v723, %v727
        %v729 = vlaneseq
        %v730 = vshrl.u32 %v729, 7
        %v731 = vsub.s32 1, %v730
        %v732 = vrot.slane %v723, %v731
        %v733 = vlaneseq
        %v734 = vshrl.u32 %v733, 7
        %v735 = vsub.s32 2, %v734
        %v736 = vrot.slane %v723, %v735
        %740 = vmatprep.subr.mxu0 %v676
        %741 = vmatpush1.msra.mxu0 %v675
        %742 = vmatprep.subr.mxu0 %v679
        %743 = vmatpush1.msra.mxu0 %v678
        %744 = vmatprep.subr.mxu0 %v682
        %745 = vmatpush1.msra.mxu0 %v681
        %746 = vmatprep.subr.mxu0 %v685
        %747 = vmatpush1.msra.mxu0 %v684
        %748 = vmatprep.subr.mxu0 %v688
        %749 = vmatpush1.msra.mxu0 %v687
        %750 = vmatprep.subr.mxu0 %v691
        %751 = vmatpush1.msra.mxu0 %v690
        %752 = vmatprep.subr.mxu0 %v694
        %753 = vmatpush1.msra.mxu0 %v693
        %754 = vmatprep.subr.mxu0 %v697
        %755 = vmatpush1.msra.mxu0 %v696
        %756 = vmatprep.subr.mxu0 %v700
        %757 = vmatpush1.msra.mxu0 %v699
        %758 = vmatprep.subr.mxu0 %v703
        %759 = vmatpush1.msra.mxu0 %v702
        %760 = vmatprep.subr.mxu0 %v706
        %761 = vmatpush1.msra.mxu0 %v705
        %762 = vmatprep.subr.mxu0 %v709
        %763 = vmatpush1.msra.mxu0 %v708
        %764 = vmatprep.subr.mxu0 %v712
        %765 = vmatpush1.msra.mxu0 %v711
        %766 = vmatprep.subr.mxu0 %v715
        %767 = vmatpush1.msra.mxu0 %v714
        %768 = vmatprep.subr.mxu0 %v718
        %769 = vmatpush1.msra.mxu0 %v717
        %770 = vmatprep.subr.mxu0 %v721
        %771 = vmatpush1.msra.mxu0 %v720
        %772 = vmatprep.subr.mxu0 0.0
        %773 = vmatpush1.msra.mxu0 0.0
        %774 = vmatprep.subr.mxu0 0.0
        %775 = vmatpush1.msra.mxu0 0.0
        %776 = vmatprep.subr.mxu0 0.0
        %777 = vmatpush1.msra.mxu0 0.0
        %778 = vmatprep.subr.mxu0 0.0
        %779 = vmatpush1.msra.mxu0 0.0
        %780 = vmatprep.subr.mxu0 0.0
        %781 = vmatpush1.msra.mxu0 0.0
        %782 = vmatprep.subr.mxu0 0.0
        %783 = vmatpush1.msra.mxu0 0.0
        %784 = vmatprep.subr.mxu0 0.0
        %785 = vmatpush1.msra.mxu0 0.0
        %786 = vmatprep.subr.mxu0 0.0
        %787 = vmatpush1.msra.mxu0 0.0
        %788 = vmatprep.subr.mxu0 0.0
        %789 = vmatpush1.msra.mxu0 0.0
        %790 = vmatprep.subr.mxu0 0.0
        %791 = vmatpush1.msra.mxu0 0.0
        %792 = vmatprep.subr.mxu0 0.0
        %793 = vmatpush1.msra.mxu0 0.0
        %794 = vmatprep.subr.mxu0 0.0
        %795 = vmatpush1.msra.mxu0 0.0
        %796 = vmatprep.subr.mxu0 0.0
        %797 = vmatpush1.msra.mxu0 0.0
        %798 = vmatprep.subr.mxu0 0.0
        %799 = vmatpush1.msra.mxu0 0.0
        %800 = vmatprep.subr.mxu0 0.0
        %801 = vmatpush1.msra.mxu0 0.0
        %802 = vmatprep.subr.mxu0 0.0
        %803 = vmatpush1.msra.mxu0 0.0
        %804 = vmatprep.mubr.f32.mxu0 0.0
        %805 = vmatmul.mubr.f32.gmra.mrb[0].mxu0 %v673
        %v806 = vpop.f32.mrb[0].mxu0
        %v807 = vadd.f32 %v728, %v806
        %v808 = vpop.f32.mrb[0].mxu0
        %v809 = vadd.f32 %v732, %v808
        %810 = vmatprep.mubr.f32.mxu0 0.0
        %811 = vmatmul.mubr.f32.gmra.mrb[0].mxu0 %v674
        %v812 = vpop.f32.mrb[0].mxu0
        %v813 = vadd.f32 %v728, %v812
        %v814 = vpop.f32.mrb[0].mxu0
        %v815 = vadd.f32 %v732, %v814
        %816 = vdwg.mxu0
        %817 = vmatprep.subr.mxu0 0.0
        %818 = vmatpush1.msra.mxu0 %v677
        %819 = vmatprep.subr.mxu0 0.0
        %820 = vmatpush1.msra.mxu0 %v680
        %821 = vmatprep.subr.mxu0 0.0
        %822 = vmatpush1.msra.mxu0 %v683
        %823 = vmatprep.subr.mxu0 0.0
        %824 = vmatpush1.msra.mxu0 %v686
        %825 = vmatprep.subr.mxu0 0.0
        %826 = vmatpush1.msra.mxu0 %v689
        %827 = vmatprep.subr.mxu0 0.0
        %828 = vmatpush1.msra.mxu0 %v692
        %829 = vmatprep.subr.mxu0 0.0
        %830 = vmatpush1.msra.mxu0 %v695
        %831 = vmatprep.subr.mxu0 0.0
        %832 = vmatpush1.msra.mxu0 %v698
        %833 = vmatprep.subr.mxu0 0.0
        %834 = vmatpush1.msra.mxu0 %v701
        %835 = vmatprep.subr.mxu0 0.0
        %836 = vmatpush1.msra.mxu0 %v704
        %837 = vmatprep.subr.mxu0 0.0
        %838 = vmatpush1.msra.mxu0 %v707
        %839 = vmatprep.subr.mxu0 0.0
        %840 = vmatpush1.msra.mxu0 %v710
        %841 = vmatprep.subr.mxu0 0.0
        %842 = vmatpush1.msra.mxu0 %v713
        %843 = vmatprep.subr.mxu0 0.0
        %844 = vmatpush1.msra.mxu0 %v716
        %845 = vmatprep.subr.mxu0 0.0
        %846 = vmatpush1.msra.mxu0 %v719
        %847 = vmatprep.subr.mxu0 0.0
        %848 = vmatpush1.msra.mxu0 %v722
        %849 = vmatprep.subr.mxu0 0.0
        %850 = vmatpush1.msra.mxu0 0.0
        %851 = vmatprep.subr.mxu0 0.0
        %852 = vmatpush1.msra.mxu0 0.0
        %853 = vmatprep.subr.mxu0 0.0
        %854 = vmatpush1.msra.mxu0 0.0
        %855 = vmatprep.subr.mxu0 0.0
        %856 = vmatpush1.msra.mxu0 0.0
        %857 = vmatprep.subr.mxu0 0.0
        %858 = vmatpush1.msra.mxu0 0.0
        %859 = vmatprep.subr.mxu0 0.0
        %860 = vmatpush1.msra.mxu0 0.0
        %861 = vmatprep.subr.mxu0 0.0
        %862 = vmatpush1.msra.mxu0 0.0
        %863 = vmatprep.subr.mxu0 0.0
        %864 = vmatpush1.msra.mxu0 0.0
        %865 = vmatprep.subr.mxu0 0.0
        %866 = vmatpush1.msra.mxu0 0.0
        %867 = vmatprep.subr.mxu0 0.0
        %868 = vmatpush1.msra.mxu0 0.0
        %869 = vmatprep.subr.mxu0 0.0
        %870 = vmatpush1.msra.mxu0 0.0
        %871 = vmatprep.subr.mxu0 0.0
        %872 = vmatpush1.msra.mxu0 0.0
        %873 = vmatprep.subr.mxu0 0.0
        %874 = vmatpush1.msra.mxu0 0.0
        %875 = vmatprep.subr.mxu0 0.0
        %876 = vmatpush1.msra.mxu0 0.0
        %877 = vmatprep.subr.mxu0 0.0
        %878 = vmatpush1.msra.mxu0 0.0
        %879 = vmatprep.subr.mxu0 0.0
        %880 = vmatpush1.msra.mxu0 0.0
        %881 = vmatprep.mubr.f32.mxu0 0.0
        %882 = vmatmul.mubr.f32.gmra.mrb[0].mxu0 %v673
        %v883 = vpop.f32.mrb[0].mxu0
        %v884 = vadd.f32 %v736, %v883
        %v885 = vpop.f32.mrb[0].mxu0
        %886 = vmatprep.mubr.f32.mxu0 0.0
        %887 = vmatmul.mubr.f32.gmra.mrb[0].mxu0 %v674
        %v888 = vpop.f32.mrb[0].mxu0
        %v889 = vadd.f32 %v736, %v888
        %v890 = vpop.f32.mrb[0].mxu0
        %891 = vdwg.mxu0
        %v892 = vlaneseq
        %v893 = vand.u32 %v892, 127
        %vm894 = vcmp.lt.s32.totalorder %v893, 5
        %vm895 = vcmask 261120
        %v897 = vsel %vm895, %v807, 0
        %v900 = vsel %vm895, %v809, 0
        %902 = vmatprep.subr.mxu0 0.0
        %903 = vmatpush1.xpose.msra.mxu0 %v900
        %904 = vmatprep.subr.mxu0 0.0
        %905 = vmatpush1.xpose.msra.mxu0 0.0
        %906 = vmatprep.subr.mxu0 0.0
        %907 = vmatpush1.xpose.msra.mxu0 0.0
        %908 = vmatprep.subr.mxu0 0.0
        %909 = vmatpush1.xpose.msra.mxu0 0.0
        %910 = vmatprep.subr.mxu0 0.0
        %911 = vmatpush1.xpose.msra.mxu0 0.0
        %912 = vmatprep.subr.mxu0 0.0
        %913 = vmatpush1.xpose.msra.mxu0 0.0
        %914 = vmatprep.subr.mxu0 0.0
        %915 = vmatpush1.xpose.msra.mxu0 0.0
        %916 = vmatprep.subr.mxu0 0.0
        %917 = vmatpush1.xpose.msra.mxu0 0.0
        %918 = vmatprep.subr.mxu0 0.0
        %919 = vmatpush1.xpose.msra.mxu0 0.0
        %920 = vmatprep.subr.mxu0 0.0
        %921 = vmatpush1.xpose.msra.mxu0 0.0
        %922 = vmatprep.subr.mxu0 0.0
        %923 = vmatpush1.xpose.msra.mxu0 0.0
        %924 = vmatprep.subr.mxu0 0.0
        %925 = vmatpush1.xpose.msra.mxu0 0.0
        %926 = vmatprep.subr.mxu0 0.0
        %927 = vmatpush1.xpose.msra.mxu0 0.0
        %928 = vmatprep.subr.mxu0 0.0
        %929 = vmatpush1.xpose.msra.mxu0 0.0
        %930 = vmatprep.subr.mxu0 0.0
        %931 = vmatpush1.xpose.msra.mxu0 0.0
        %932 = vmatprep.subr.mxu0 0.0
        %933 = vmatpush1.xpose.msra.mxu0 0.0
        %934 = vmatprep.subr.mxu0 0.0
        %935 = vmatpush1.xpose.msra.mxu0 0.0
        %936 = vmatprep.subr.mxu0 0.0
        %937 = vmatpush1.xpose.msra.mxu0 0.0
        %938 = vmatprep.subr.mxu0 0.0
        %939 = vmatpush1.xpose.msra.mxu0 0.0
        %940 = vmatprep.subr.mxu0 0.0
        %941 = vmatpush1.xpose.msra.mxu0 0.0
        %942 = vmatprep.subr.mxu0 0.0
        %943 = vmatpush1.xpose.msra.mxu0 0.0
        %944 = vmatprep.subr.mxu0 0.0
        %945 = vmatpush1.xpose.msra.mxu0 0.0
        %946 = vmatprep.subr.mxu0 0.0
        %947 = vmatpush1.xpose.msra.mxu0 0.0
        %948 = vmatprep.subr.mxu0 0.0
        %949 = vmatpush1.xpose.msra.mxu0 0.0
        %950 = vmatprep.subr.mxu0 0.0
        %951 = vmatpush1.xpose.msra.mxu0 0.0
        %952 = vmatprep.subr.mxu0 0.0
        %953 = vmatpush1.xpose.msra.mxu0 0.0
        %954 = vmatprep.subr.mxu0 0.0
        %955 = vmatpush1.xpose.msra.mxu0 0.0
        %956 = vmatprep.subr.mxu0 0.0
        %957 = vmatpush1.xpose.msra.mxu0 0.0
        %958 = vmatprep.subr.mxu0 0.0
        %959 = vmatpush1.xpose.msra.mxu0 0.0
        %960 = vmatprep.subr.mxu0 0.0
        %961 = vmatpush1.xpose.msra.mxu0 0.0
        %962 = vmatprep.subr.mxu0 0.0
        %963 = vmatpush1.xpose.msra.mxu0 0.0
        %964 = vmatprep.subr.mxu0 0.0
        %965 = vmatpush1.xpose.msra.mxu0 0.0
        %966 = vmatprep.mubr.f32.mxu0 0.0
        %967 = vmatmul.mubr.f32.gmra.mrb[0].mxu0 %v897
        %v968 = vpop.f32.mrb[0].mxu0
        %v969 = vadd.f32 0.0, %v968
        %v970 = vpop.f32.mrb[0].mxu0
        %971 = vdwg.mxu0
        %v972 = vmul.f32 %v969, 0.17677669
        %v973 = vsel %vm894, %v972, -1e+30
        %vm974 = vcmask 64512
        %v975 = vsel %vm974, %v973, -inf
        %976 = vmax.xlane.f32.xlu0 %v975
        %v977 = vpop.xlane.xlu0 %976
        %v978 = vsub.f32 %v973, %v977
        %v979 = vmul.f32 %v978, 1.442695
        %v980 = vpow.pop %v979
        %v981 = vsel %vm974, %v980, 0.0
        %982 = vadd.xlane.f32.xlu0 %v981
        %v983 = vpop.xlane.xlu0 %982
        %v984 = vrcp.pop %v983
        %v985 = vmul.f32 %v980, %v984
        %v987 = vsel %vm974, %v985, 0
        %989 = vmatprep.subr.mxu0 0.0
        %990 = vmatpush1.msra.mxu0 %v884
        %991 = vmatprep.subr.mxu0 0.0
        %992 = vmatpush1.msra.mxu0 0.0
        %993 = vmatprep.subr.mxu0 0.0
        %994 = vmatpush1.msra.mxu0 0.0
        %995 = vmatprep.subr.mxu0 0.0
        %996 = vmatpush1.msra.mxu0 0.0
        %997 = vmatprep.subr.mxu0 0.0
        %998 = vmatpush1.msra.mxu0 0.0
        %999 = vmatprep.subr.mxu0 0.0
        %1000 = vmatpush1.msra.mxu0 0.0
        %1001 = vmatprep.subr.mxu0 0.0
        %1002 = vmatpush1.msra.mxu0 0.0
        %1003 = vmatprep.subr.mxu0 0.0
        %1004 = vmatpush1.msra.mxu0 0.0
        %1005 = vmatprep.subr.mxu0 0.0
        %1006 = vmatpush1.msra.mxu0 0.0
        %1007 = vmatprep.subr.mxu0 0.0
        %1008 = vmatpush1.msra.mxu0 0.0
        %1009 = vmatprep.subr.mxu0 0.0
        %1010 = vmatpush1.msra.mxu0 0.0
        %1011 = vmatprep.subr.mxu0 0.0
        %1012 = vmatpush1.msra.mxu0 0.0
        %1013 = vmatprep.subr.mxu0 0.0
        %1014 = vmatpush1.msra.mxu0 0.0
        %1015 = vmatprep.subr.mxu0 0.0
        %1016 = vmatpush1.msra.mxu0 0.0
        %1017 = vmatprep.subr.mxu0 0.0
        %1018 = vmatpush1.msra.mxu0 0.0
        %1019 = vmatprep.subr.mxu0 0.0
        %1020 = vmatpush1.msra.mxu0 0.0
        %1021 = vmatprep.subr.mxu0 0.0
        %1022 = vmatpush1.msra.mxu0 0.0
        %1023 = vmatprep.subr.mxu0 0.0
        %1024 = vmatpush1.msra.mxu0 0.0
        %1025 = vmatprep.subr.mxu0 0.0
        %1026 = vmatpush1.msra.mxu0 0.0
        %1027 = vmatprep.subr.mxu0 0.0
        %1028 = vmatpush1.msra.mxu0 0.0
        %1029 = vmatprep.subr.mxu0 0.0
        %1030 = vmatpush1.msra.mxu0 0.0
        %1031 = vmatprep.subr.mxu0 0.0
        %1032 = vmatpush1.msra.mxu0 0.0
        %1033 = vmatprep.subr.mxu0 0.0
        %1034 = vmatpush1.msra.mxu0 0.0
        %1035 = vmatprep.subr.mxu0 0.0
        %1036 = vmatpush1.msra.mxu0 0.0
        %1037 = vmatprep.subr.mxu0 0.0
        %1038 = vmatpush1.msra.mxu0 0.0
        %1039 = vmatprep.subr.mxu0 0.0
        %1040 = vmatpush1.msra.mxu0 0.0
        %1041 = vmatprep.subr.mxu0 0.0
        %1042 = vmatpush1.msra.mxu0 0.0
        %1043 = vmatprep.subr.mxu0 0.0
        %1044 = vmatpush1.msra.mxu0 0.0
        %1045 = vmatprep.subr.mxu0 0.0
        %1046 = vmatpush1.msra.mxu0 0.0
        %1047 = vmatprep.subr.mxu0 0.0
        %1048 = vmatpush1.msra.mxu0 0.0
        %1049 = vmatprep.subr.mxu0 0.0
        %1050 = vmatpush1.msra.mxu0 0.0
        %1051 = vmatprep.subr.mxu0 0.0
        %1052 = vmatpush1.msra.mxu0 0.0
        %1053 = vmatprep.mubr.f32.mxu0 0.0
        %1054 = vmatmul.mubr.f32.gmra.mrb[0].mxu0 %v987
        %v1055 = vpop.f32.mrb[0].mxu0
        %v1056 = vadd.f32 0.0, %v1055
        %v1057 = vpop.f32.mrb[0].mxu0
        %1058 = vdwg.mxu0
        %1059 = vrot.lane.b32.xlu0 %v807, 96
        %v1060 = vpop.permute.xlu0 %1059
        %1061 = vrot.lane.b32.xlu0 %v809, 96
        %v1062 = vpop.permute.xlu0 %1061
        %v1063 = vsel %vm895, %v1060, 0
        %v1065 = vsel %vm895, %v1062, 0
        %1067 = vmatprep.subr.mxu0 0.0
        %1068 = vmatpush1.xpose.msra.mxu0 %v1065
        %1069 = vmatprep.subr.mxu0 0.0
        %1070 = vmatpush1.xpose.msra.mxu0 0.0
        %1071 = vmatprep.subr.mxu0 0.0
        %1072 = vmatpush1.xpose.msra.mxu0 0.0
        %1073 = vmatprep.subr.mxu0 0.0
        %1074 = vmatpush1.xpose.msra.mxu0 0.0
        %1075 = vmatprep.subr.mxu0 0.0
        %1076 = vmatpush1.xpose.msra.mxu0 0.0
        %1077 = vmatprep.subr.mxu0 0.0
        %1078 = vmatpush1.xpose.msra.mxu0 0.0
        %1079 = vmatprep.subr.mxu0 0.0
        %1080 = vmatpush1.xpose.msra.mxu0 0.0
        %1081 = vmatprep.subr.mxu0 0.0
        %1082 = vmatpush1.xpose.msra.mxu0 0.0
        %1083 = vmatprep.subr.mxu0 0.0
        %1084 = vmatpush1.xpose.msra.mxu0 0.0
        %1085 = vmatprep.subr.mxu0 0.0
        %1086 = vmatpush1.xpose.msra.mxu0 0.0
        %1087 = vmatprep.subr.mxu0 0.0
        %1088 = vmatpush1.xpose.msra.mxu0 0.0
        %1089 = vmatprep.subr.mxu0 0.0
        %1090 = vmatpush1.xpose.msra.mxu0 0.0
        %1091 = vmatprep.subr.mxu0 0.0
        %1092 = vmatpush1.xpose.msra.mxu0 0.0
        %1093 = vmatprep.subr.mxu0 0.0
        %1094 = vmatpush1.xpose.msra.mxu0 0.0
        %1095 = vmatprep.subr.mxu0 0.0
        %1096 = vmatpush1.xpose.msra.mxu0 0.0
        %1097 = vmatprep.subr.mxu0 0.0
        %1098 = vmatpush1.xpose.msra.mxu0 0.0
        %1099 = vmatprep.subr.mxu0 0.0
        %1100 = vmatpush1.xpose.msra.mxu0 0.0
        %1101 = vmatprep.subr.mxu0 0.0
        %1102 = vmatpush1.xpose.msra.mxu0 0.0
        %1103 = vmatprep.subr.mxu0 0.0
        %1104 = vmatpush1.xpose.msra.mxu0 0.0
        %1105 = vmatprep.subr.mxu0 0.0
        %1106 = vmatpush1.xpose.msra.mxu0 0.0
        %1107 = vmatprep.subr.mxu0 0.0
        %1108 = vmatpush1.xpose.msra.mxu0 0.0
        %1109 = vmatprep.subr.mxu0 0.0
        %1110 = vmatpush1.xpose.msra.mxu0 0.0
        %1111 = vmatprep.subr.mxu0 0.0
        %1112 = vmatpush1.xpose.msra.mxu0 0.0
        %1113 = vmatprep.subr.mxu0 0.0
        %1114 = vmatpush1.xpose.msra.mxu0 0.0
        %1115 = vmatprep.subr.mxu0 0.0
        %1116 = vmatpush1.xpose.msra.mxu0 0.0
        %1117 = vmatprep.subr.mxu0 0.0
        %1118 = vmatpush1.xpose.msra.mxu0 0.0
        %1119 = vmatprep.subr.mxu0 0.0
        %1120 = vmatpush1.xpose.msra.mxu0 0.0
        %1121 = vmatprep.subr.mxu0 0.0
        %1122 = vmatpush1.xpose.msra.mxu0 0.0
        %1123 = vmatprep.subr.mxu0 0.0
        %1124 = vmatpush1.xpose.msra.mxu0 0.0
        %1125 = vmatprep.subr.mxu0 0.0
        %1126 = vmatpush1.xpose.msra.mxu0 0.0
        %1127 = vmatprep.subr.mxu0 0.0
        %1128 = vmatpush1.xpose.msra.mxu0 0.0
        %1129 = vmatprep.subr.mxu0 0.0
        %1130 = vmatpush1.xpose.msra.mxu0 0.0
        %1131 = vmatprep.mubr.f32.mxu0 0.0
        %1132 = vmatmul.mubr.f32.gmra.mrb[0].mxu0 %v1063
        %v1133 = vpop.f32.mrb[0].mxu0
        %v1134 = vadd.f32 0.0, %v1133
        %v1135 = vpop.f32.mrb[0].mxu0
        %1136 = vdwg.mxu0
        %v1137 = vmul.f32 %v1134, 0.17677669
        %v1138 = vsel %vm894, %v1137, -1e+30
        %v1139 = vsel %vm974, %v1138, -inf
        %1140 = vmax.xlane.f32.xlu0 %v1139
        %v1141 = vpop.xlane.xlu0 %1140
        %v1142 = vsub.f32 %v1138, %v1141
        %v1143 = vmul.f32 %v1142, 1.442695
        %v1144 = vpow.pop %v1143
        %v1145 = vsel %vm974, %v1144, 0.0
        %1146 = vadd.xlane.f32.xlu0 %v1145
        %v1147 = vpop.xlane.xlu0 %1146
        %v1148 = vrcp.pop %v1147
        %v1149 = vmul.f32 %v1144, %v1148
        %1151 = vrot.lane.b32.xlu0 %v884, 96
        %v1152 = vpop.permute.xlu0 %1151
        %v1155 = vsel %vm974, %v1149, 0
        %1157 = vmatprep.subr.mxu0 0.0
        %1158 = vmatpush1.msra.mxu0 %v1152
        %1159 = vmatprep.subr.mxu0 0.0
        %1160 = vmatpush1.msra.mxu0 0.0
        %1161 = vmatprep.subr.mxu0 0.0
        %1162 = vmatpush1.msra.mxu0 0.0
        %1163 = vmatprep.subr.mxu0 0.0
        %1164 = vmatpush1.msra.mxu0 0.0
        %1165 = vmatprep.subr.mxu0 0.0
        %1166 = vmatpush1.msra.mxu0 0.0
        %1167 = vmatprep.subr.mxu0 0.0
        %1168 = vmatpush1.msra.mxu0 0.0
        %1169 = vmatprep.subr.mxu0 0.0
        %1170 = vmatpush1.msra.mxu0 0.0
        %1171 = vmatprep.subr.mxu0 0.0
        %1172 = vmatpush1.msra.mxu0 0.0
        %1173 = vmatprep.subr.mxu0 0.0
        %1174 = vmatpush1.msra.mxu0 0.0
        %1175 = vmatprep.subr.mxu0 0.0
        %1176 = vmatpush1.msra.mxu0 0.0
        %1177 = vmatprep.subr.mxu0 0.0
        %1178 = vmatpush1.msra.mxu0 0.0
        %1179 = vmatprep.subr.mxu0 0.0
        %1180 = vmatpush1.msra.mxu0 0.0
        %1181 = vmatprep.subr.mxu0 0.0
        %1182 = vmatpush1.msra.mxu0 0.0
        %1183 = vmatprep.subr.mxu0 0.0
        %1184 = vmatpush1.msra.mxu0 0.0
        %1185 = vmatprep.subr.mxu0 0.0
        %1186 = vmatpush1.msra.mxu0 0.0
        %1187 = vmatprep.subr.mxu0 0.0
        %1188 = vmatpush1.msra.mxu0 0.0
        %1189 = vmatprep.subr.mxu0 0.0
        %1190 = vmatpush1.msra.mxu0 0.0
        %1191 = vmatprep.subr.mxu0 0.0
        %1192 = vmatpush1.msra.mxu0 0.0
        %1193 = vmatprep.subr.mxu0 0.0
        %1194 = vmatpush1.msra.mxu0 0.0
        %1195 = vmatprep.subr.mxu0 0.0
        %1196 = vmatpush1.msra.mxu0 0.0
        %1197 = vmatprep.subr.mxu0 0.0
        %1198 = vmatpush1.msra.mxu0 0.0
        %1199 = vmatprep.subr.mxu0 0.0
        %1200 = vmatpush1.msra.mxu0 0.0
        %1201 = vmatprep.subr.mxu0 0.0
        %1202 = vmatpush1.msra.mxu0 0.0
        %1203 = vmatprep.subr.mxu0 0.0
        %1204 = vmatpush1.msra.mxu0 0.0
        %1205 = vmatprep.subr.mxu0 0.0
        %1206 = vmatpush1.msra.mxu0 0.0
        %1207 = vmatprep.subr.mxu0 0.0
        %1208 = vmatpush1.msra.mxu0 0.0
        %1209 = vmatprep.subr.mxu0 0.0
        %1210 = vmatpush1.msra.mxu0 0.0
        %1211 = vmatprep.subr.mxu0 0.0
        %1212 = vmatpush1.msra.mxu0 0.0
        %1213 = vmatprep.subr.mxu0 0.0
        %1214 = vmatpush1.msra.mxu0 0.0
        %1215 = vmatprep.subr.mxu0 0.0
        %1216 = vmatpush1.msra.mxu0 0.0
        %1217 = vmatprep.subr.mxu0 0.0
        %1218 = vmatpush1.msra.mxu0 0.0
        %1219 = vmatprep.subr.mxu0 0.0
        %1220 = vmatpush1.msra.mxu0 0.0
        %1221 = vmatprep.mubr.f32.mxu0 0.0
        %1222 = vmatmul.mubr.f32.gmra.mrb[0].mxu0 %v1155
        %v1223 = vpop.f32.mrb[0].mxu0
        %v1224 = vadd.f32 0.0, %v1223
        %v1225 = vpop.f32.mrb[0].mxu0
        %1226 = vdwg.mxu0
        %1227 = vrot.lane.b32.xlu0 %v807, 64
        %v1228 = vpop.permute.xlu0 %1227
        %1229 = vrot.lane.b32.xlu0 %v809, 64
        %v1230 = vpop.permute.xlu0 %1229
        %v1231 = vsel %vm895, %v1228, 0
        %v1233 = vsel %vm895, %v1230, 0
        %1235 = vmatprep.subr.mxu0 0.0
        %1236 = vmatpush1.xpose.msra.mxu0 %v1233
        %1237 = vmatprep.subr.mxu0 0.0
        %1238 = vmatpush1.xpose.msra.mxu0 0.0
        %1239 = vmatprep.subr.mxu0 0.0
        %1240 = vmatpush1.xpose.msra.mxu0 0.0
        %1241 = vmatprep.subr.mxu0 0.0
        %1242 = vmatpush1.xpose.msra.mxu0 0.0
        %1243 = vmatprep.subr.mxu0 0.0
        %1244 = vmatpush1.xpose.msra.mxu0 0.0
        %1245 = vmatprep.subr.mxu0 0.0
        %1246 = vmatpush1.xpose.msra.mxu0 0.0
        %1247 = vmatprep.subr.mxu0 0.0
        %1248 = vmatpush1.xpose.msra.mxu0 0.0
        %1249 = vmatprep.subr.mxu0 0.0
        %1250 = vmatpush1.xpose.msra.mxu0 0.0
        %1251 = vmatprep.subr.mxu0 0.0
        %1252 = vmatpush1.xpose.msra.mxu0 0.0
        %1253 = vmatprep.subr.mxu0 0.0
        %1254 = vmatpush1.xpose.msra.mxu0 0.0
        %1255 = vmatprep.subr.mxu0 0.0
        %1256 = vmatpush1.xpose.msra.mxu0 0.0
        %1257 = vmatprep.subr.mxu0 0.0
        %1258 = vmatpush1.xpose.msra.mxu0 0.0
        %1259 = vmatprep.subr.mxu0 0.0
        %1260 = vmatpush1.xpose.msra.mxu0 0.0
        %1261 = vmatprep.subr.mxu0 0.0
        %1262 = vmatpush1.xpose.msra.mxu0 0.0
        %1263 = vmatprep.subr.mxu0 0.0
        %1264 = vmatpush1.xpose.msra.mxu0 0.0
        %1265 = vmatprep.subr.mxu0 0.0
        %1266 = vmatpush1.xpose.msra.mxu0 0.0
        %1267 = vmatprep.subr.mxu0 0.0
        %1268 = vmatpush1.xpose.msra.mxu0 0.0
        %1269 = vmatprep.subr.mxu0 0.0
        %1270 = vmatpush1.xpose.msra.mxu0 0.0
        %1271 = vmatprep.subr.mxu0 0.0
        %1272 = vmatpush1.xpose.msra.mxu0 0.0
        %1273 = vmatprep.subr.mxu0 0.0
        %1274 = vmatpush1.xpose.msra.mxu0 0.0
        %1275 = vmatprep.subr.mxu0 0.0
        %1276 = vmatpush1.xpose.msra.mxu0 0.0
        %1277 = vmatprep.subr.mxu0 0.0
        %1278 = vmatpush1.xpose.msra.mxu0 0.0
        %1279 = vmatprep.subr.mxu0 0.0
        %1280 = vmatpush1.xpose.msra.mxu0 0.0
        %1281 = vmatprep.subr.mxu0 0.0
        %1282 = vmatpush1.xpose.msra.mxu0 0.0
        %1283 = vmatprep.subr.mxu0 0.0
        %1284 = vmatpush1.xpose.msra.mxu0 0.0
        %1285 = vmatprep.subr.mxu0 0.0
        %1286 = vmatpush1.xpose.msra.mxu0 0.0
        %1287 = vmatprep.subr.mxu0 0.0
        %1288 = vmatpush1.xpose.msra.mxu0 0.0
        %1289 = vmatprep.subr.mxu0 0.0
        %1290 = vmatpush1.xpose.msra.mxu0 0.0
        %1291 = vmatprep.subr.mxu0 0.0
        %1292 = vmatpush1.xpose.msra.mxu0 0.0
        %1293 = vmatprep.subr.mxu0 0.0
        %1294 = vmatpush1.xpose.msra.mxu0 0.0
        %1295 = vmatprep.subr.mxu0 0.0
        %1296 = vmatpush1.xpose.msra.mxu0 0.0
        %1297 = vmatprep.subr.mxu0 0.0
        %1298 = vmatpush1.xpose.msra.mxu0 0.0
        %1299 = vmatprep.mubr.f32.mxu0 0.0
        %1300 = vmatmul.mubr.f32.gmra.mrb[0].mxu0 %v1231
        %v1301 = vpop.f32.mrb[0].mxu0
        %v1302 = vadd.f32 0.0, %v1301
        %v1303 = vpop.f32.mrb[0].mxu0
        %1304 = vdwg.mxu0
        %v1305 = vmul.f32 %v1302, 0.17677669
        %v1306 = vsel %vm894, %v1305, -1e+30
        %v1307 = vsel %vm974, %v1306, -inf
        %1308 = vmax.xlane.f32.xlu0 %v1307
        %v1309 = vpop.xlane.xlu0 %1308
        %v1310 = vsub.f32 %v1306, %v1309
        %v1311 = vmul.f32 %v1310, 1.442695
        %v1312 = vpow.pop %v1311
        %v1313 = vsel %vm974, %v1312, 0.0
        %1314 = vadd.xlane.f32.xlu0 %v1313
        %v1315 = vpop.xlane.xlu0 %1314
        %v1316 = vrcp.pop %v1315
        %v1317 = vmul.f32 %v1312, %v1316
        %1318 = vrot.lane.b32.xlu0 %v884, 64
        %v1319 = vpop.permute.xlu0 %1318
        %v1322 = vsel %vm974, %v1317, 0
        %1324 = vmatprep.subr.mxu0 0.0
        %1325 = vmatpush1.msra.mxu0 %v1319
        %1326 = vmatprep.subr.mxu0 0.0
        %1327 = vmatpush1.msra.mxu0 0.0
        %1328 = vmatprep.subr.mxu0 0.0
        %1329 = vmatpush1.msra.mxu0 0.0
        %1330 = vmatprep.subr.mxu0 0.0
        %1331 = vmatpush1.msra.mxu0 0.0
        %1332 = vmatprep.subr.mxu0 0.0
        %1333 = vmatpush1.msra.mxu0 0.0
        %1334 = vmatprep.subr.mxu0 0.0
        %1335 = vmatpush1.msra.mxu0 0.0
        %1336 = vmatprep.subr.mxu0 0.0
        %1337 = vmatpush1.msra.mxu0 0.0
        %1338 = vmatprep.subr.mxu0 0.0
        %1339 = vmatpush1.msra.mxu0 0.0
        %1340 = vmatprep.subr.mxu0 0.0
        %1341 = vmatpush1.msra.mxu0 0.0
        %1342 = vmatprep.subr.mxu0 0.0
        %1343 = vmatpush1.msra.mxu0 0.0
        %1344 = vmatprep.subr.mxu0 0.0
        %1345 = vmatpush1.msra.mxu0 0.0
        %1346 = vmatprep.subr.mxu0 0.0
        %1347 = vmatpush1.msra.mxu0 0.0
        %1348 = vmatprep.subr.mxu0 0.0
        %1349 = vmatpush1.msra.mxu0 0.0
        %1350 = vmatprep.subr.mxu0 0.0
        %1351 = vmatpush1.msra.mxu0 0.0
        %1352 = vmatprep.subr.mxu0 0.0
        %1353 = vmatpush1.msra.mxu0 0.0
        %1354 = vmatprep.subr.mxu0 0.0
        %1355 = vmatpush1.msra.mxu0 0.0
        %1356 = vmatprep.subr.mxu0 0.0
        %1357 = vmatpush1.msra.mxu0 0.0
        %1358 = vmatprep.subr.mxu0 0.0
        %1359 = vmatpush1.msra.mxu0 0.0
        %1360 = vmatprep.subr.mxu0 0.0
        %1361 = vmatpush1.msra.mxu0 0.0
        %1362 = vmatprep.subr.mxu0 0.0
        %1363 = vmatpush1.msra.mxu0 0.0
        %1364 = vmatprep.subr.mxu0 0.0
        %1365 = vmatpush1.msra.mxu0 0.0
        %1366 = vmatprep.subr.mxu0 0.0
        %1367 = vmatpush1.msra.mxu0 0.0
        %1368 = vmatprep.subr.mxu0 0.0
        %1369 = vmatpush1.msra.mxu0 0.0
        %1370 = vmatprep.subr.mxu0 0.0
        %1371 = vmatpush1.msra.mxu0 0.0
        %1372 = vmatprep.subr.mxu0 0.0
        %1373 = vmatpush1.msra.mxu0 0.0
        %1374 = vmatprep.subr.mxu0 0.0
        %1375 = vmatpush1.msra.mxu0 0.0
        %1376 = vmatprep.subr.mxu0 0.0
        %1377 = vmatpush1.msra.mxu0 0.0
        %1378 = vmatprep.subr.mxu0 0.0
        %1379 = vmatpush1.msra.mxu0 0.0
        %1380 = vmatprep.subr.mxu0 0.0
        %1381 = vmatpush1.msra.mxu0 0.0
        %1382 = vmatprep.subr.mxu0 0.0
        %1383 = vmatpush1.msra.mxu0 0.0
        %1384 = vmatprep.subr.mxu0 0.0
        %1385 = vmatpush1.msra.mxu0 0.0
        %1386 = vmatprep.subr.mxu0 0.0
        %1387 = vmatpush1.msra.mxu0 0.0
        %1388 = vmatprep.mubr.f32.mxu0 0.0
        %1389 = vmatmul.mubr.f32.gmra.mrb[0].mxu0 %v1322
        %v1390 = vpop.f32.mrb[0].mxu0
        %v1391 = vadd.f32 0.0, %v1390
        %v1392 = vpop.f32.mrb[0].mxu0
        %1393 = vdwg.mxu0
        %1394 = vrot.lane.b32.xlu0 %v807, 32
        %v1395 = vpop.permute.xlu0 %1394
        %1396 = vrot.lane.b32.xlu0 %v809, 32
        %v1397 = vpop.permute.xlu0 %1396
        %v1398 = vsel %vm895, %v1395, 0
        %v1400 = vsel %vm895, %v1397, 0
        %1402 = vmatprep.subr.mxu0 0.0
        %1403 = vmatpush1.xpose.msra.mxu0 %v1400
        %1404 = vmatprep.subr.mxu0 0.0
        %1405 = vmatpush1.xpose.msra.mxu0 0.0
        %1406 = vmatprep.subr.mxu0 0.0
        %1407 = vmatpush1.xpose.msra.mxu0 0.0
        %1408 = vmatprep.subr.mxu0 0.0
        %1409 = vmatpush1.xpose.msra.mxu0 0.0
        %1410 = vmatprep.subr.mxu0 0.0
        %1411 = vmatpush1.xpose.msra.mxu0 0.0
        %1412 = vmatprep.subr.mxu0 0.0
        %1413 = vmatpush1.xpose.msra.mxu0 0.0
        %1414 = vmatprep.subr.mxu0 0.0
        %1415 = vmatpush1.xpose.msra.mxu0 0.0
        %1416 = vmatprep.subr.mxu0 0.0
        %1417 = vmatpush1.xpose.msra.mxu0 0.0
        %1418 = vmatprep.subr.mxu0 0.0
        %1419 = vmatpush1.xpose.msra.mxu0 0.0
        %1420 = vmatprep.subr.mxu0 0.0
        %1421 = vmatpush1.xpose.msra.mxu0 0.0
        %1422 = vmatprep.subr.mxu0 0.0
        %1423 = vmatpush1.xpose.msra.mxu0 0.0
        %1424 = vmatprep.subr.mxu0 0.0
        %1425 = vmatpush1.xpose.msra.mxu0 0.0
        %1426 = vmatprep.subr.mxu0 0.0
        %1427 = vmatpush1.xpose.msra.mxu0 0.0
        %1428 = vmatprep.subr.mxu0 0.0
        %1429 = vmatpush1.xpose.msra.mxu0 0.0
        %1430 = vmatprep.subr.mxu0 0.0
        %1431 = vmatpush1.xpose.msra.mxu0 0.0
        %1432 = vmatprep.subr.mxu0 0.0
        %1433 = vmatpush1.xpose.msra.mxu0 0.0
        %1434 = vmatprep.subr.mxu0 0.0
        %1435 = vmatpush1.xpose.msra.mxu0 0.0
        %1436 = vmatprep.subr.mxu0 0.0
        %1437 = vmatpush1.xpose.msra.mxu0 0.0
        %1438 = vmatprep.subr.mxu0 0.0
        %1439 = vmatpush1.xpose.msra.mxu0 0.0
        %1440 = vmatprep.subr.mxu0 0.0
        %1441 = vmatpush1.xpose.msra.mxu0 0.0
        %1442 = vmatprep.subr.mxu0 0.0
        %1443 = vmatpush1.xpose.msra.mxu0 0.0
        %1444 = vmatprep.subr.mxu0 0.0
        %1445 = vmatpush1.xpose.msra.mxu0 0.0
        %1446 = vmatprep.subr.mxu0 0.0
        %1447 = vmatpush1.xpose.msra.mxu0 0.0
        %1448 = vmatprep.subr.mxu0 0.0
        %1449 = vmatpush1.xpose.msra.mxu0 0.0
        %1450 = vmatprep.subr.mxu0 0.0
        %1451 = vmatpush1.xpose.msra.mxu0 0.0
        %1452 = vmatprep.subr.mxu0 0.0
        %1453 = vmatpush1.xpose.msra.mxu0 0.0
        %1454 = vmatprep.subr.mxu0 0.0
        %1455 = vmatpush1.xpose.msra.mxu0 0.0
        %1456 = vmatprep.subr.mxu0 0.0
        %1457 = vmatpush1.xpose.msra.mxu0 0.0
        %1458 = vmatprep.subr.mxu0 0.0
        %1459 = vmatpush1.xpose.msra.mxu0 0.0
        %1460 = vmatprep.subr.mxu0 0.0
        %1461 = vmatpush1.xpose.msra.mxu0 0.0
        %1462 = vmatprep.subr.mxu0 0.0
        %1463 = vmatpush1.xpose.msra.mxu0 0.0
        %1464 = vmatprep.subr.mxu0 0.0
        %1465 = vmatpush1.xpose.msra.mxu0 0.0
        %1466 = vmatprep.mubr.f32.mxu0 0.0
        %1467 = vmatmul.mubr.f32.gmra.mrb[0].mxu0 %v1398
        %v1468 = vpop.f32.mrb[0].mxu0
        %v1469 = vadd.f32 0.0, %v1468
        %v1470 = vpop.f32.mrb[0].mxu0
        %1471 = vdwg.mxu0
        %v1472 = vmul.f32 %v1469, 0.17677669
        %v1473 = vsel %vm894, %v1472, -1e+30
        %v1474 = vsel %vm974, %v1473, -inf
        %1475 = vmax.xlane.f32.xlu0 %v1474
        %v1476 = vpop.xlane.xlu0 %1475
        %v1477 = vsub.f32 %v1473, %v1476
        %v1478 = vmul.f32 %v1477, 1.442695
        %v1479 = vpow.pop %v1478
        %v1480 = vsel %vm974, %v1479, 0.0
        %1481 = vadd.xlane.f32.xlu0 %v1480
        %v1482 = vpop.xlane.xlu0 %1481
        %v1483 = vrcp.pop %v1482
        %v1484 = vmul.f32 %v1479, %v1483
        %1485 = vrot.lane.b32.xlu0 %v884, 32
        %v1486 = vpop.permute.xlu0 %1485
        %v1489 = vsel %vm974, %v1484, 0
        %1491 = vmatprep.subr.mxu0 0.0
        %1492 = vmatpush1.msra.mxu0 %v1486
        %1493 = vmatprep.subr.mxu0 0.0
        %1494 = vmatpush1.msra.mxu0 0.0
        %1495 = vmatprep.subr.mxu0 0.0
        %1496 = vmatpush1.msra.mxu0 0.0
        %1497 = vmatprep.subr.mxu0 0.0
        %1498 = vmatpush1.msra.mxu0 0.0
        %1499 = vmatprep.subr.mxu0 0.0
        %1500 = vmatpush1.msra.mxu0 0.0
        %1501 = vmatprep.subr.mxu0 0.0
        %1502 = vmatpush1.msra.mxu0 0.0
        %1503 = vmatprep.subr.mxu0 0.0
        %1504 = vmatpush1.msra.mxu0 0.0
        %1505 = vmatprep.subr.mxu0 0.0
        %1506 = vmatpush1.msra.mxu0 0.0
        %1507 = vmatprep.subr.mxu0 0.0
        %1508 = vmatpush1.msra.mxu0 0.0
        %1509 = vmatprep.subr.mxu0 0.0
        %1510 = vmatpush1.msra.mxu0 0.0
        %1511 = vmatprep.subr.mxu0 0.0
        %1512 = vmatpush1.msra.mxu0 0.0
        %1513 = vmatprep.subr.mxu0 0.0
        %1514 = vmatpush1.msra.mxu0 0.0
        %1515 = vmatprep.subr.mxu0 0.0
        %1516 = vmatpush1.msra.mxu0 0.0
        %1517 = vmatprep.subr.mxu0 0.0
        %1518 = vmatpush1.msra.mxu0 0.0
        %1519 = vmatprep.subr.mxu0 0.0
        %1520 = vmatpush1.msra.mxu0 0.0
        %1521 = vmatprep.subr.mxu0 0.0
        %1522 = vmatpush1.msra.mxu0 0.0
        %1523 = vmatprep.subr.mxu0 0.0
        %1524 = vmatpush1.msra.mxu0 0.0
        %1525 = vmatprep.subr.mxu0 0.0
        %1526 = vmatpush1.msra.mxu0 0.0
        %1527 = vmatprep.subr.mxu0 0.0
        %1528 = vmatpush1.msra.mxu0 0.0
        %1529 = vmatprep.subr.mxu0 0.0
        %1530 = vmatpush1.msra.mxu0 0.0
        %1531 = vmatprep.subr.mxu0 0.0
        %1532 = vmatpush1.msra.mxu0 0.0
        %1533 = vmatprep.subr.mxu0 0.0
        %1534 = vmatpush1.msra.mxu0 0.0
        %1535 = vmatprep.subr.mxu0 0.0
        %1536 = vmatpush1.msra.mxu0 0.0
        %1537 = vmatprep.subr.mxu0 0.0
        %1538 = vmatpush1.msra.mxu0 0.0
        %1539 = vmatprep.subr.mxu0 0.0
        %1540 = vmatpush1.msra.mxu0 0.0
        %1541 = vmatprep.subr.mxu0 0.0
        %1542 = vmatpush1.msra.mxu0 0.0
        %1543 = vmatprep.subr.mxu0 0.0
        %1544 = vmatpush1.msra.mxu0 0.0
        %1545 = vmatprep.subr.mxu0 0.0
        %1546 = vmatpush1.msra.mxu0 0.0
        %1547 = vmatprep.subr.mxu0 0.0
        %1548 = vmatpush1.msra.mxu0 0.0
        %1549 = vmatprep.subr.mxu0 0.0
        %1550 = vmatpush1.msra.mxu0 0.0
        %1551 = vmatprep.subr.mxu0 0.0
        %1552 = vmatpush1.msra.mxu0 0.0
        %1553 = vmatprep.subr.mxu0 0.0
        %1554 = vmatpush1.msra.mxu0 0.0
        %1555 = vmatprep.mubr.f32.mxu0 0.0
        %1556 = vmatmul.mubr.f32.gmra.mrb[0].mxu0 %v1489
        %v1557 = vpop.f32.mrb[0].mxu0
        %v1558 = vadd.f32 0.0, %v1557
        %v1559 = vpop.f32.mrb[0].mxu0
        %1560 = vdwg.mxu0
        %1562 = vrot.lane.b32.xlu0 %v1224, 32
        %v1563 = vpop.permute.xlu0 %1562
        %1566 = vrot.lane.b32.xlu0 %v1391, 64
        %v1567 = vpop.permute.xlu0 %1566
        %1570 = vrot.lane.b32.xlu0 %v1558, 96
        %v1571 = vpop.permute.xlu0 %1570
        %v1573 = vsel %vm895, %v1056, %v1563
        %vm1574 = vcmask 523264
        %v1575 = vsel %vm1574, %v1573, %v1567
        %vm1576 = vcmask 785408
        %v1577 = vsel %vm1576, %v1575, %v1571
        %v1579 = vsel %vm895, %v813, 0
        %v1582 = vsel %vm895, %v815, 0
        %1584 = vmatprep.subr.mxu0 0.0
        %1585 = vmatpush1.xpose.msra.mxu0 %v1582
        %1586 = vmatprep.subr.mxu0 0.0
        %1587 = vmatpush1.xpose.msra.mxu0 0.0
        %1588 = vmatprep.subr.mxu0 0.0
        %1589 = vmatpush1.xpose.msra.mxu0 0.0
        %1590 = vmatprep.subr.mxu0 0.0
        %1591 = vmatpush1.xpose.msra.mxu0 0.0
        %1592 = vmatprep.subr.mxu0 0.0
        %1593 = vmatpush1.xpose.msra.mxu0 0.0
        %1594 = vmatprep.subr.mxu0 0.0
        %1595 = vmatpush1.xpose.msra.mxu0 0.0
        %1596 = vmatprep.subr.mxu0 0.0
        %1597 = vmatpush1.xpose.msra.mxu0 0.0
        %1598 = vmatprep.subr.mxu0 0.0
        %1599 = vmatpush1.xpose.msra.mxu0 0.0
        %1600 = vmatprep.subr.mxu0 0.0
        %1601 = vmatpush1.xpose.msra.mxu0 0.0
        %1602 = vmatprep.subr.mxu0 0.0
        %1603 = vmatpush1.xpose.msra.mxu0 0.0
        %1604 = vmatprep.subr.mxu0 0.0
        %1605 = vmatpush1.xpose.msra.mxu0 0.0
        %1606 = vmatprep.subr.mxu0 0.0
        %1607 = vmatpush1.xpose.msra.mxu0 0.0
        %1608 = vmatprep.subr.mxu0 0.0
        %1609 = vmatpush1.xpose.msra.mxu0 0.0
        %1610 = vmatprep.subr.mxu0 0.0
        %1611 = vmatpush1.xpose.msra.mxu0 0.0
        %1612 = vmatprep.subr.mxu0 0.0
        %1613 = vmatpush1.xpose.msra.mxu0 0.0
        %1614 = vmatprep.subr.mxu0 0.0
        %1615 = vmatpush1.xpose.msra.mxu0 0.0
        %1616 = vmatprep.subr.mxu0 0.0
        %1617 = vmatpush1.xpose.msra.mxu0 0.0
        %1618 = vmatprep.subr.mxu0 0.0
        %1619 = vmatpush1.xpose.msra.mxu0 0.0
        %1620 = vmatprep.subr.mxu0 0.0
        %1621 = vmatpush1.xpose.msra.mxu0 0.0
        %1622 = vmatprep.subr.mxu0 0.0
        %1623 = vmatpush1.xpose.msra.mxu0 0.0
        %1624 = vmatprep.subr.mxu0 0.0
        %1625 = vmatpush1.xpose.msra.mxu0 0.0
        %1626 = vmatprep.subr.mxu0 0.0
        %1627 = vmatpush1.xpose.msra.mxu0 0.0
        %1628 = vmatprep.subr.mxu0 0.0
        %1629 = vmatpush1.xpose.msra.mxu0 0.0
        %1630 = vmatprep.subr.mxu0 0.0
        %1631 = vmatpush1.xpose.msra.mxu0 0.0
        %1632 = vmatprep.subr.mxu0 0.0
        %1633 = vmatpush1.xpose.msra.mxu0 0.0
        %1634 = vmatprep.subr.mxu0 0.0
        %1635 = vmatpush1.xpose.msra.mxu0 0.0
        %1636 = vmatprep.subr.mxu0 0.0
        %1637 = vmatpush1.xpose.msra.mxu0 0.0
        %1638 = vmatprep.subr.mxu0 0.0
        %1639 = vmatpush1.xpose.msra.mxu0 0.0
        %1640 = vmatprep.subr.mxu0 0.0
        %1641 = vmatpush1.xpose.msra.mxu0 0.0
        %1642 = vmatprep.subr.mxu0 0.0
        %1643 = vmatpush1.xpose.msra.mxu0 0.0
        %1644 = vmatprep.subr.mxu0 0.0
        %1645 = vmatpush1.xpose.msra.mxu0 0.0
        %1646 = vmatprep.subr.mxu0 0.0
        %1647 = vmatpush1.xpose.msra.mxu0 0.0
        %1648 = vmatprep.mubr.f32.mxu0 0.0
        %1649 = vmatmul.mubr.f32.gmra.mrb[0].mxu0 %v1579
        %v1650 = vpop.f32.mrb[0].mxu0
        %v1651 = vadd.f32 0.0, %v1650
        %v1652 = vpop.f32.mrb[0].mxu0
        %1653 = vdwg.mxu0
        %v1654 = vmul.f32 %v1651, 0.17677669
        %v1655 = vsel %vm894, %v1654, -1e+30
        %v1656 = vsel %vm974, %v1655, -inf
        %1657 = vmax.xlane.f32.xlu0 %v1656
        %v1658 = vpop.xlane.xlu0 %1657
        %v1659 = vsub.f32 %v1655, %v1658
        %v1660 = vmul.f32 %v1659, 1.442695
        %v1661 = vpow.pop %v1660
        %v1662 = vsel %vm974, %v1661, 0.0
        %1663 = vadd.xlane.f32.xlu0 %v1662
        %v1664 = vpop.xlane.xlu0 %1663
        %v1665 = vrcp.pop %v1664
        %v1666 = vmul.f32 %v1661, %v1665
        %v1668 = vsel %vm974, %v1666, 0
        %1670 = vmatprep.subr.mxu0 0.0
        %1671 = vmatpush1.msra.mxu0 %v889
        %1672 = vmatprep.subr.mxu0 0.0
        %1673 = vmatpush1.msra.mxu0 0.0
        %1674 = vmatprep.subr.mxu0 0.0
        %1675 = vmatpush1.msra.mxu0 0.0
        %1676 = vmatprep.subr.mxu0 0.0
        %1677 = vmatpush1.msra.mxu0 0.0
        %1678 = vmatprep.subr.mxu0 0.0
        %1679 = vmatpush1.msra.mxu0 0.0
        %1680 = vmatprep.subr.mxu0 0.0
        %1681 = vmatpush1.msra.mxu0 0.0
        %1682 = vmatprep.subr.mxu0 0.0
        %1683 = vmatpush1.msra.mxu0 0.0
        %1684 = vmatprep.subr.mxu0 0.0
        %1685 = vmatpush1.msra.mxu0 0.0
        %1686 = vmatprep.subr.mxu0 0.0
        %1687 = vmatpush1.msra.mxu0 0.0
        %1688 = vmatprep.subr.mxu0 0.0
        %1689 = vmatpush1.msra.mxu0 0.0
        %1690 = vmatprep.subr.mxu0 0.0
        %1691 = vmatpush1.msra.mxu0 0.0
        %1692 = vmatprep.subr.mxu0 0.0
        %1693 = vmatpush1.msra.mxu0 0.0
        %1694 = vmatprep.subr.mxu0 0.0
        %1695 = vmatpush1.msra.mxu0 0.0
        %1696 = vmatprep.subr.mxu0 0.0
        %1697 = vmatpush1.msra.mxu0 0.0
        %1698 = vmatprep.subr.mxu0 0.0
        %1699 = vmatpush1.msra.mxu0 0.0
        %1700 = vmatprep.subr.mxu0 0.0
        %1701 = vmatpush1.msra.mxu0 0.0
        %1702 = vmatprep.subr.mxu0 0.0
        %1703 = vmatpush1.msra.mxu0 0.0
        %1704 = vmatprep.subr.mxu0 0.0
        %1705 = vmatpush1.msra.mxu0 0.0
        %1706 = vmatprep.subr.mxu0 0.0
        %1707 = vmatpush1.msra.mxu0 0.0
        %1708 = vmatprep.subr.mxu0 0.0
        %1709 = vmatpush1.msra.mxu0 0.0
        %1710 = vmatprep.subr.mxu0 0.0
        %1711 = vmatpush1.msra.mxu0 0.0
        %1712 = vmatprep.subr.mxu0 0.0
        %1713 = vmatpush1.msra.mxu0 0.0
        %1714 = vmatprep.subr.mxu0 0.0
        %1715 = vmatpush1.msra.mxu0 0.0
        %1716 = vmatprep.subr.mxu0 0.0
        %1717 = vmatpush1.msra.mxu0 0.0
        %1718 = vmatprep.subr.mxu0 0.0
        %1719 = vmatpush1.msra.mxu0 0.0
        %1720 = vmatprep.subr.mxu0 0.0
        %1721 = vmatpush1.msra.mxu0 0.0
        %1722 = vmatprep.subr.mxu0 0.0
        %1723 = vmatpush1.msra.mxu0 0.0
        %1724 = vmatprep.subr.mxu0 0.0
        %1725 = vmatpush1.msra.mxu0 0.0
        %1726 = vmatprep.subr.mxu0 0.0
        %1727 = vmatpush1.msra.mxu0 0.0
        %1728 = vmatprep.subr.mxu0 0.0
        %1729 = vmatpush1.msra.mxu0 0.0
        %1730 = vmatprep.subr.mxu0 0.0
        %1731 = vmatpush1.msra.mxu0 0.0
        %1732 = vmatprep.subr.mxu0 0.0
        %1733 = vmatpush1.msra.mxu0 0.0
        %1734 = vmatprep.mubr.f32.mxu0 0.0
        %1735 = vmatmul.mubr.f32.gmra.mrb[0].mxu0 %v1668
        %v1736 = vpop.f32.mrb[0].mxu0
        %v1737 = vadd.f32 0.0, %v1736
        %v1738 = vpop.f32.mrb[0].mxu0
        %1739 = vdwg.mxu0
        %1740 = vrot.lane.b32.xlu0 %v813, 96
        %v1741 = vpop.permute.xlu0 %1740
        %1742 = vrot.lane.b32.xlu0 %v815, 96
        %v1743 = vpop.permute.xlu0 %1742
        %v1744 = vsel %vm895, %v1741, 0
        %v1746 = vsel %vm895, %v1743, 0
        %1748 = vmatprep.subr.mxu0 0.0
        %1749 = vmatpush1.xpose.msra.mxu0 %v1746
        %1750 = vmatprep.subr.mxu0 0.0
        %1751 = vmatpush1.xpose.msra.mxu0 0.0
        %1752 = vmatprep.subr.mxu0 0.0
        %1753 = vmatpush1.xpose.msra.mxu0 0.0
        %1754 = vmatprep.subr.mxu0 0.0
        %1755 = vmatpush1.xpose.msra.mxu0 0.0
        %1756 = vmatprep.subr.mxu0 0.0
        %1757 = vmatpush1.xpose.msra.mxu0 0.0
        %1758 = vmatprep.subr.mxu0 0.0
        %1759 = vmatpush1.xpose.msra.mxu0 0.0
        %1760 = vmatprep.subr.mxu0 0.0
        %1761 = vmatpush1.xpose.msra.mxu0 0.0
        %1762 = vmatprep.subr.mxu0 0.0
        %1763 = vmatpush1.xpose.msra.mxu0 0.0
        %1764 = vmatprep.subr.mxu0 0.0
        %1765 = vmatpush1.xpose.msra.mxu0 0.0
        %1766 = vmatprep.subr.mxu0 0.0
        %1767 = vmatpush1.xpose.msra.mxu0 0.0
        %1768 = vmatprep.subr.mxu0 0.0
        %1769 = vmatpush1.xpose.msra.mxu0 0.0
        %1770 = vmatprep.subr.mxu0 0.0
        %1771 = vmatpush1.xpose.msra.mxu0 0.0
        %1772 = vmatprep.subr.mxu0 0.0
        %1773 = vmatpush1.xpose.msra.mxu0 0.0
        %1774 = vmatprep.subr.mxu0 0.0
        %1775 = vmatpush1.xpose.msra.mxu0 0.0
        %1776 = vmatprep.subr.mxu0 0.0
        %1777 = vmatpush1.xpose.msra.mxu0 0.0
        %1778 = vmatprep.subr.mxu0 0.0
        %1779 = vmatpush1.xpose.msra.mxu0 0.0
        %1780 = vmatprep.subr.mxu0 0.0
        %1781 = vmatpush1.xpose.msra.mxu0 0.0
        %1782 = vmatprep.subr.mxu0 0.0
        %1783 = vmatpush1.xpose.msra.mxu0 0.0
        %1784 = vmatprep.subr.mxu0 0.0
        %1785 = vmatpush1.xpose.msra.mxu0 0.0
        %1786 = vmatprep.subr.mxu0 0.0
        %1787 = vmatpush1.xpose.msra.mxu0 0.0
        %1788 = vmatprep.subr.mxu0 0.0
        %1789 = vmatpush1.xpose.msra.mxu0 0.0
        %1790 = vmatprep.subr.mxu0 0.0
        %1791 = vmatpush1.xpose.msra.mxu0 0.0
        %1792 = vmatprep.subr.mxu0 0.0
        %1793 = vmatpush1.xpose.msra.mxu0 0.0
        %1794 = vmatprep.subr.mxu0 0.0
        %1795 = vmatpush1.xpose.msra.mxu0 0.0
        %1796 = vmatprep.subr.mxu0 0.0
        %1797 = vmatpush1.xpose.msra.mxu0 0.0
        %1798 = vmatprep.subr.mxu0 0.0
        %1799 = vmatpush1.xpose.msra.mxu0 0.0
        %1800 = vmatprep.subr.mxu0 0.0
        %1801 = vmatpush1.xpose.msra.mxu0 0.0
        %1802 = vmatprep.subr.mxu0 0.0
        %1803 = vmatpush1.xpose.msra.mxu0 0.0
        %1804 = vmatprep.subr.mxu0 0.0
        %1805 = vmatpush1.xpose.msra.mxu0 0.0
        %1806 = vmatprep.subr.mxu0 0.0
        %1807 = vmatpush1.xpose.msra.mxu0 0.0
        %1808 = vmatprep.subr.mxu0 0.0
        %1809 = vmatpush1.xpose.msra.mxu0 0.0
        %1810 = vmatprep.subr.mxu0 0.0
        %1811 = vmatpush1.xpose.msra.mxu0 0.0
        %1812 = vmatprep.mubr.f32.mxu0 0.0
        %1813 = vmatmul.mubr.f32.gmra.mrb[0].mxu0 %v1744
        %v1814 = vpop.f32.mrb[0].mxu0
        %v1815 = vadd.f32 0.0, %v1814
        %v1816 = vpop.f32.mrb[0].mxu0
        %1817 = vdwg.mxu0
        %v1818 = vmul.f32 %v1815, 0.17677669
        %v1819 = vsel %vm894, %v1818, -1e+30
        %v1820 = vsel %vm974, %v1819, -inf
        %1821 = vmax.xlane.f32.xlu0 %v1820
        %v1822 = vpop.xlane.xlu0 %1821
        %v1823 = vsub.f32 %v1819, %v1822
        %v1824 = vmul.f32 %v1823, 1.442695
        %v1825 = vpow.pop %v1824
        %v1826 = vsel %vm974, %v1825, 0.0
        %1827 = vadd.xlane.f32.xlu0 %v1826
        %v1828 = vpop.xlane.xlu0 %1827
        %v1829 = vrcp.pop %v1828
        %v1830 = vmul.f32 %v1825, %v1829
        %1832 = vrot.lane.b32.xlu0 %v889, 96
        %v1833 = vpop.permute.xlu0 %1832
        %v1836 = vsel %vm974, %v1830, 0
        %1838 = vmatprep.subr.mxu0 0.0
        %1839 = vmatpush1.msra.mxu0 %v1833
        %1840 = vmatprep.subr.mxu0 0.0
        %1841 = vmatpush1.msra.mxu0 0.0
        %1842 = vmatprep.subr.mxu0 0.0
        %1843 = vmatpush1.msra.mxu0 0.0
        %1844 = vmatprep.subr.mxu0 0.0
        %1845 = vmatpush1.msra.mxu0 0.0
        %1846 = vmatprep.subr.mxu0 0.0
        %1847 = vmatpush1.msra.mxu0 0.0
        %1848 = vmatprep.subr.mxu0 0.0
        %1849 = vmatpush1.msra.mxu0 0.0
        %1850 = vmatprep.subr.mxu0 0.0
        %1851 = vmatpush1.msra.mxu0 0.0
        %1852 = vmatprep.subr.mxu0 0.0
        %1853 = vmatpush1.msra.mxu0 0.0
        %1854 = vmatprep.subr.mxu0 0.0
        %1855 = vmatpush1.msra.mxu0 0.0
        %1856 = vmatprep.subr.mxu0 0.0
        %1857 = vmatpush1.msra.mxu0 0.0
        %1858 = vmatprep.subr.mxu0 0.0
        %1859 = vmatpush1.msra.mxu0 0.0
        %1860 = vmatprep.subr.mxu0 0.0
        %1861 = vmatpush1.msra.mxu0 0.0
        %1862 = vmatprep.subr.mxu0 0.0
        %1863 = vmatpush1.msra.mxu0 0.0
        %1864 = vmatprep.subr.mxu0 0.0
        %1865 = vmatpush1.msra.mxu0 0.0
        %1866 = vmatprep.subr.mxu0 0.0
        %1867 = vmatpush1.msra.mxu0 0.0
        %1868 = vmatprep.subr.mxu0 0.0
        %1869 = vmatpush1.msra.mxu0 0.0
        %1870 = vmatprep.subr.mxu0 0.0
        %1871 = vmatpush1.msra.mxu0 0.0
        %1872 = vmatprep.subr.mxu0 0.0
        %1873 = vmatpush1.msra.mxu0 0.0
        %1874 = vmatprep.subr.mxu0 0.0
        %1875 = vmatpush1.msra.mxu0 0.0
        %1876 = vmatprep.subr.mxu0 0.0
        %1877 = vmatpush1.msra.mxu0 0.0
        %1878 = vmatprep.subr.mxu0 0.0
        %1879 = vmatpush1.msra.mxu0 0.0
        %1880 = vmatprep.subr.mxu0 0.0
        %1881 = vmatpush1.msra.mxu0 0.0
        %1882 = vmatprep.subr.mxu0 0.0
        %1883 = vmatpush1.msra.mxu0 0.0
        %1884 = vmatprep.subr.mxu0 0.0
        %1885 = vmatpush1.msra.mxu0 0.0
        %1886 = vmatprep.subr.mxu0 0.0
        %1887 = vmatpush1.msra.mxu0 0.0
        %1888 = vmatprep.subr.mxu0 0.0
        %1889 = vmatpush1.msra.mxu0 0.0
        %1890 = vmatprep.subr.mxu0 0.0
        %1891 = vmatpush1.msra.mxu0 0.0
        %1892 = vmatprep.subr.mxu0 0.0
        %1893 = vmatpush1.msra.mxu0 0.0
        %1894 = vmatprep.subr.mxu0 0.0
        %1895 = vmatpush1.msra.mxu0 0.0
        %1896 = vmatprep.subr.mxu0 0.0
        %1897 = vmatpush1.msra.mxu0 0.0
        %1898 = vmatprep.subr.mxu0 0.0
        %1899 = vmatpush1.msra.mxu0 0.0
        %1900 = vmatprep.subr.mxu0 0.0
        %1901 = vmatpush1.msra.mxu0 0.0
        %1902 = vmatprep.mubr.f32.mxu0 0.0
        %1903 = vmatmul.mubr.f32.gmra.mrb[0].mxu0 %v1836
        %v1904 = vpop.f32.mrb[0].mxu0
        %v1905 = vadd.f32 0.0, %v1904
        %v1906 = vpop.f32.mrb[0].mxu0
        %1907 = vdwg.mxu0
        %1908 = vrot.lane.b32.xlu0 %v813, 64
        %v1909 = vpop.permute.xlu0 %1908
        %1910 = vrot.lane.b32.xlu0 %v815, 64
        %v1911 = vpop.permute.xlu0 %1910
        %v1912 = vsel %vm895, %v1909, 0
        %v1914 = vsel %vm895, %v1911, 0
        %1916 = vmatprep.subr.mxu0 0.0
        %1917 = vmatpush1.xpose.msra.mxu0 %v1914
        %1918 = vmatprep.subr.mxu0 0.0
        %1919 = vmatpush1.xpose.msra.mxu0 0.0
        %1920 = vmatprep.subr.mxu0 0.0
        %1921 = vmatpush1.xpose.msra.mxu0 0.0
        %1922 = vmatprep.subr.mxu0 0.0
        %1923 = vmatpush1.xpose.msra.mxu0 0.0
        %1924 = vmatprep.subr.mxu0 0.0
        %1925 = vmatpush1.xpose.msra.mxu0 0.0
        %1926 = vmatprep.subr.mxu0 0.0
        %1927 = vmatpush1.xpose.msra.mxu0 0.0
        %1928 = vmatprep.subr.mxu0 0.0
        %1929 = vmatpush1.xpose.msra.mxu0 0.0
        %1930 = vmatprep.subr.mxu0 0.0
        %1931 = vmatpush1.xpose.msra.mxu0 0.0
        %1932 = vmatprep.subr.mxu0 0.0
        %1933 = vmatpush1.xpose.msra.mxu0 0.0
        %1934 = vmatprep.subr.mxu0 0.0
        %1935 = vmatpush1.xpose.msra.mxu0 0.0
        %1936 = vmatprep.subr.mxu0 0.0
        %1937 = vmatpush1.xpose.msra.mxu0 0.0
        %1938 = vmatprep.subr.mxu0 0.0
        %1939 = vmatpush1.xpose.msra.mxu0 0.0
        %1940 = vmatprep.subr.mxu0 0.0
        %1941 = vmatpush1.xpose.msra.mxu0 0.0
        %1942 = vmatprep.subr.mxu0 0.0
        %1943 = vmatpush1.xpose.msra.mxu0 0.0
        %1944 = vmatprep.subr.mxu0 0.0
        %1945 = vmatpush1.xpose.msra.mxu0 0.0
        %1946 = vmatprep.subr.mxu0 0.0
        %1947 = vmatpush1.xpose.msra.mxu0 0.0
        %1948 = vmatprep.subr.mxu0 0.0
        %1949 = vmatpush1.xpose.msra.mxu0 0.0
        %1950 = vmatprep.subr.mxu0 0.0
        %1951 = vmatpush1.xpose.msra.mxu0 0.0
        %1952 = vmatprep.subr.mxu0 0.0
        %1953 = vmatpush1.xpose.msra.mxu0 0.0
        %1954 = vmatprep.subr.mxu0 0.0
        %1955 = vmatpush1.xpose.msra.mxu0 0.0
        %1956 = vmatprep.subr.mxu0 0.0
        %1957 = vmatpush1.xpose.msra.mxu0 0.0
        %1958 = vmatprep.subr.mxu0 0.0
        %1959 = vmatpush1.xpose.msra.mxu0 0.0
        %1960 = vmatprep.subr.mxu0 0.0
        %1961 = vmatpush1.xpose.msra.mxu0 0.0
        %1962 = vmatprep.subr.mxu0 0.0
        %1963 = vmatpush1.xpose.msra.mxu0 0.0
        %1964 = vmatprep.subr.mxu0 0.0
        %1965 = vmatpush1.xpose.msra.mxu0 0.0
        %1966 = vmatprep.subr.mxu0 0.0
        %1967 = vmatpush1.xpose.msra.mxu0 0.0
        %1968 = vmatprep.subr.mxu0 0.0
        %1969 = vmatpush1.xpose.msra.mxu0 0.0
        %1970 = vmatprep.subr.mxu0 0.0
        %1971 = vmatpush1.xpose.msra.mxu0 0.0
        %1972 = vmatprep.subr.mxu0 0.0
        %1973 = vmatpush1.xpose.msra.mxu0 0.0
        %1974 = vmatprep.subr.mxu0 0.0
        %1975 = vmatpush1.xpose.msra.mxu0 0.0
        %1976 = vmatprep.subr.mxu0 0.0
        %1977 = vmatpush1.xpose.msra.mxu0 0.0
        %1978 = vmatprep.subr.mxu0 0.0
        %1979 = vmatpush1.xpose.msra.mxu0 0.0
        %1980 = vmatprep.mubr.f32.mxu0 0.0
        %1981 = vmatmul.mubr.f32.gmra.mrb[0].mxu0 %v1912
        %v1982 = vpop.f32.mrb[0].mxu0
        %v1983 = vadd.f32 0.0, %v1982
        %v1984 = vpop.f32.mrb[0].mxu0
        %1985 = vdwg.mxu0
        %v1986 = vmul.f32 %v1983, 0.17677669
        %v1987 = vsel %vm894, %v1986, -1e+30
        %v1988 = vsel %vm974, %v1987, -inf
        %1989 = vmax.xlane.f32.xlu0 %v1988
        %v1990 = vpop.xlane.xlu0 %1989
        %v1991 = vsub.f32 %v1987, %v1990
        %v1992 = vmul.f32 %v1991, 1.442695
        %v1993 = vpow.pop %v1992
        %v1994 = vsel %vm974, %v1993, 0.0
        %1995 = vadd.xlane.f32.xlu0 %v1994
        %v1996 = vpop.xlane.xlu0 %1995
        %v1997 = vrcp.pop %v1996
        %v1998 = vmul.f32 %v1993, %v1997
        %1999 = vrot.lane.b32.xlu0 %v889, 64
        %v2000 = vpop.permute.xlu0 %1999
        %v2003 = vsel %vm974, %v1998, 0
        %2005 = vmatprep.subr.mxu0 0.0
        %2006 = vmatpush1.msra.mxu0 %v2000
        %2007 = vmatprep.subr.mxu0 0.0
        %2008 = vmatpush1.msra.mxu0 0.0
        %2009 = vmatprep.subr.mxu0 0.0
        %2010 = vmatpush1.msra.mxu0 0.0
        %2011 = vmatprep.subr.mxu0 0.0
        %2012 = vmatpush1.msra.mxu0 0.0
        %2013 = vmatprep.subr.mxu0 0.0
        %2014 = vmatpush1.msra.mxu0 0.0
        %2015 = vmatprep.subr.mxu0 0.0
        %2016 = vmatpush1.msra.mxu0 0.0
        %2017 = vmatprep.subr.mxu0 0.0
        %2018 = vmatpush1.msra.mxu0 0.0
        %2019 = vmatprep.subr.mxu0 0.0
        %2020 = vmatpush1.msra.mxu0 0.0
        %2021 = vmatprep.subr.mxu0 0.0
        %2022 = vmatpush1.msra.mxu0 0.0
        %2023 = vmatprep.subr.mxu0 0.0
        %2024 = vmatpush1.msra.mxu0 0.0
        %2025 = vmatprep.subr.mxu0 0.0
        %2026 = vmatpush1.msra.mxu0 0.0
        %2027 = vmatprep.subr.mxu0 0.0
        %2028 = vmatpush1.msra.mxu0 0.0
        %2029 = vmatprep.subr.mxu0 0.0
        %2030 = vmatpush1.msra.mxu0 0.0
        %2031 = vmatprep.subr.mxu0 0.0
        %2032 = vmatpush1.msra.mxu0 0.0
        %2033 = vmatprep.subr.mxu0 0.0
        %2034 = vmatpush1.msra.mxu0 0.0
        %2035 = vmatprep.subr.mxu0 0.0
        %2036 = vmatpush1.msra.mxu0 0.0
        %2037 = vmatprep.subr.mxu0 0.0
        %2038 = vmatpush1.msra.mxu0 0.0
        %2039 = vmatprep.subr.mxu0 0.0
        %2040 = vmatpush1.msra.mxu0 0.0
        %2041 = vmatprep.subr.mxu0 0.0
        %2042 = vmatpush1.msra.mxu0 0.0
        %2043 = vmatprep.subr.mxu0 0.0
        %2044 = vmatpush1.msra.mxu0 0.0
        %2045 = vmatprep.subr.mxu0 0.0
        %2046 = vmatpush1.msra.mxu0 0.0
        %2047 = vmatprep.subr.mxu0 0.0
        %2048 = vmatpush1.msra.mxu0 0.0
        %2049 = vmatprep.subr.mxu0 0.0
        %2050 = vmatpush1.msra.mxu0 0.0
        %2051 = vmatprep.subr.mxu0 0.0
        %2052 = vmatpush1.msra.mxu0 0.0
        %2053 = vmatprep.subr.mxu0 0.0
        %2054 = vmatpush1.msra.mxu0 0.0
        %2055 = vmatprep.subr.mxu0 0.0
        %2056 = vmatpush1.msra.mxu0 0.0
        %2057 = vmatprep.subr.mxu0 0.0
        %2058 = vmatpush1.msra.mxu0 0.0
        %2059 = vmatprep.subr.mxu0 0.0
        %2060 = vmatpush1.msra.mxu0 0.0
        %2061 = vmatprep.subr.mxu0 0.0
        %2062 = vmatpush1.msra.mxu0 0.0
        %2063 = vmatprep.subr.mxu0 0.0
        %2064 = vmatpush1.msra.mxu0 0.0
        %2065 = vmatprep.subr.mxu0 0.0
        %2066 = vmatpush1.msra.mxu0 0.0
        %2067 = vmatprep.subr.mxu0 0.0
        %2068 = vmatpush1.msra.mxu0 0.0
        %2069 = vmatprep.mubr.f32.mxu0 0.0
        %2070 = vmatmul.mubr.f32.gmra.mrb[0].mxu0 %v2003
        %v2071 = vpop.f32.mrb[0].mxu0
        %v2072 = vadd.f32 0.0, %v2071
        %v2073 = vpop.f32.mrb[0].mxu0
        %2074 = vdwg.mxu0
        %2075 = vrot.lane.b32.xlu0 %v813, 32
        %v2076 = vpop.permute.xlu0 %2075
        %2077 = vrot.lane.b32.xlu0 %v815, 32
        %v2078 = vpop.permute.xlu0 %2077
        %v2079 = vsel %vm895, %v2076, 0
        %v2081 = vsel %vm895, %v2078, 0
        %2083 = vmatprep.subr.mxu0 0.0
        %2084 = vmatpush1.xpose.msra.mxu0 %v2081
        %2085 = vmatprep.subr.mxu0 0.0
        %2086 = vmatpush1.xpose.msra.mxu0 0.0
        %2087 = vmatprep.subr.mxu0 0.0
        %2088 = vmatpush1.xpose.msra.mxu0 0.0
        %2089 = vmatprep.subr.mxu0 0.0
        %2090 = vmatpush1.xpose.msra.mxu0 0.0
        %2091 = vmatprep.subr.mxu0 0.0
        %2092 = vmatpush1.xpose.msra.mxu0 0.0
        %2093 = vmatprep.subr.mxu0 0.0
        %2094 = vmatpush1.xpose.msra.mxu0 0.0
        %2095 = vmatprep.subr.mxu0 0.0
        %2096 = vmatpush1.xpose.msra.mxu0 0.0
        %2097 = vmatprep.subr.mxu0 0.0
        %2098 = vmatpush1.xpose.msra.mxu0 0.0
        %2099 = vmatprep.subr.mxu0 0.0
        %2100 = vmatpush1.xpose.msra.mxu0 0.0
        %2101 = vmatprep.subr.mxu0 0.0
        %2102 = vmatpush1.xpose.msra.mxu0 0.0
        %2103 = vmatprep.subr.mxu0 0.0
        %2104 = vmatpush1.xpose.msra.mxu0 0.0
        %2105 = vmatprep.subr.mxu0 0.0
        %2106 = vmatpush1.xpose.msra.mxu0 0.0
        %2107 = vmatprep.subr.mxu0 0.0
        %2108 = vmatpush1.xpose.msra.mxu0 0.0
        %2109 = vmatprep.subr.mxu0 0.0
        %2110 = vmatpush1.xpose.msra.mxu0 0.0
        %2111 = vmatprep.subr.mxu0 0.0
        %2112 = vmatpush1.xpose.msra.mxu0 0.0
        %2113 = vmatprep.subr.mxu0 0.0
        %2114 = vmatpush1.xpose.msra.mxu0 0.0
        %2115 = vmatprep.subr.mxu0 0.0
        %2116 = vmatpush1.xpose.msra.mxu0 0.0
        %2117 = vmatprep.subr.mxu0 0.0
        %2118 = vmatpush1.xpose.msra.mxu0 0.0
        %2119 = vmatprep.subr.mxu0 0.0
        %2120 = vmatpush1.xpose.msra.mxu0 0.0
        %2121 = vmatprep.subr.mxu0 0.0
        %2122 = vmatpush1.xpose.msra.mxu0 0.0
        %2123 = vmatprep.subr.mxu0 0.0
        %2124 = vmatpush1.xpose.msra.mxu0 0.0
        %2125 = vmatprep.subr.mxu0 0.0
        %2126 = vmatpush1.xpose.msra.mxu0 0.0
        %2127 = vmatprep.subr.mxu0 0.0
        %2128 = vmatpush1.xpose.msra.mxu0 0.0
        %2129 = vmatprep.subr.mxu0 0.0
        %2130 = vmatpush1.xpose.msra.mxu0 0.0
        %2131 = vmatprep.subr.mxu0 0.0
        %2132 = vmatpush1.xpose.msra.mxu0 0.0
        %2133 = vmatprep.subr.mxu0 0.0
        %2134 = vmatpush1.xpose.msra.mxu0 0.0
        %2135 = vmatprep.subr.mxu0 0.0
        %2136 = vmatpush1.xpose.msra.mxu0 0.0
        %2137 = vmatprep.subr.mxu0 0.0
        %2138 = vmatpush1.xpose.msra.mxu0 0.0
        %2139 = vmatprep.subr.mxu0 0.0
        %2140 = vmatpush1.xpose.msra.mxu0 0.0
        %2141 = vmatprep.subr.mxu0 0.0
        %2142 = vmatpush1.xpose.msra.mxu0 0.0
        %2143 = vmatprep.subr.mxu0 0.0
        %2144 = vmatpush1.xpose.msra.mxu0 0.0
        %2145 = vmatprep.subr.mxu0 0.0
        %2146 = vmatpush1.xpose.msra.mxu0 0.0
        %2147 = vmatprep.mubr.f32.mxu0 0.0
        %2148 = vmatmul.mubr.f32.gmra.mrb[0].mxu0 %v2079
        %v2149 = vpop.f32.mrb[0].mxu0
        %v2150 = vadd.f32 0.0, %v2149
        %v2151 = vpop.f32.mrb[0].mxu0
        %2152 = vdwg.mxu0
        %v2153 = vmul.f32 %v2150, 0.17677669
        %v2154 = vsel %vm894, %v2153, -1e+30
        %v2155 = vsel %vm974, %v2154, -inf
        %2156 = vmax.xlane.f32.xlu0 %v2155
        %v2157 = vpop.xlane.xlu0 %2156
        %v2158 = vsub.f32 %v2154, %v2157
        %v2159 = vmul.f32 %v2158, 1.442695
        %v2160 = vpow.pop %v2159
        %v2161 = vsel %vm974, %v2160, 0.0
        %2162 = vadd.xlane.f32.xlu0 %v2161
        %v2163 = vpop.xlane.xlu0 %2162
        %v2164 = vrcp.pop %v2163
        %v2165 = vmul.f32 %v2160, %v2164
        %2166 = vrot.lane.b32.xlu0 %v889, 32
        %v2167 = vpop.permute.xlu0 %2166
        %v2170 = vsel %vm974, %v2165, 0
        %2172 = vmatprep.subr.mxu0 0.0
        %2173 = vmatpush1.msra.mxu0 %v2167
        %2174 = vmatprep.subr.mxu0 0.0
        %2175 = vmatpush1.msra.mxu0 0.0
        %2176 = vmatprep.subr.mxu0 0.0
        %2177 = vmatpush1.msra.mxu0 0.0
        %2178 = vmatprep.subr.mxu0 0.0
        %2179 = vmatpush1.msra.mxu0 0.0
        %2180 = vmatprep.subr.mxu0 0.0
        %2181 = vmatpush1.msra.mxu0 0.0
        %2182 = vmatprep.subr.mxu0 0.0
        %2183 = vmatpush1.msra.mxu0 0.0
        %2184 = vmatprep.subr.mxu0 0.0
        %2185 = vmatpush1.msra.mxu0 0.0
        %2186 = vmatprep.subr.mxu0 0.0
        %2187 = vmatpush1.msra.mxu0 0.0
        %2188 = vmatprep.subr.mxu0 0.0
        %2189 = vmatpush1.msra.mxu0 0.0
        %2190 = vmatprep.subr.mxu0 0.0
        %2191 = vmatpush1.msra.mxu0 0.0
        %2192 = vmatprep.subr.mxu0 0.0
        %2193 = vmatpush1.msra.mxu0 0.0
        %2194 = vmatprep.subr.mxu0 0.0
        %2195 = vmatpush1.msra.mxu0 0.0
        %2196 = vmatprep.subr.mxu0 0.0
        %2197 = vmatpush1.msra.mxu0 0.0
        %2198 = vmatprep.subr.mxu0 0.0
        %2199 = vmatpush1.msra.mxu0 0.0
        %2200 = vmatprep.subr.mxu0 0.0
        %2201 = vmatpush1.msra.mxu0 0.0
        %2202 = vmatprep.subr.mxu0 0.0
        %2203 = vmatpush1.msra.mxu0 0.0
        %2204 = vmatprep.subr.mxu0 0.0
        %2205 = vmatpush1.msra.mxu0 0.0
        %2206 = vmatprep.subr.mxu0 0.0
        %2207 = vmatpush1.msra.mxu0 0.0
        %2208 = vmatprep.subr.mxu0 0.0
        %2209 = vmatpush1.msra.mxu0 0.0
        %2210 = vmatprep.subr.mxu0 0.0
        %2211 = vmatpush1.msra.mxu0 0.0
        %2212 = vmatprep.subr.mxu0 0.0
        %2213 = vmatpush1.msra.mxu0 0.0
        %2214 = vmatprep.subr.mxu0 0.0
        %2215 = vmatpush1.msra.mxu0 0.0
        %2216 = vmatprep.subr.mxu0 0.0
        %2217 = vmatpush1.msra.mxu0 0.0
        %2218 = vmatprep.subr.mxu0 0.0
        %2219 = vmatpush1.msra.mxu0 0.0
        %2220 = vmatprep.subr.mxu0 0.0
        %2221 = vmatpush1.msra.mxu0 0.0
        %2222 = vmatprep.subr.mxu0 0.0
        %2223 = vmatpush1.msra.mxu0 0.0
        %2224 = vmatprep.subr.mxu0 0.0
        %2225 = vmatpush1.msra.mxu0 0.0
        %2226 = vmatprep.subr.mxu0 0.0
        %2227 = vmatpush1.msra.mxu0 0.0
        %2228 = vmatprep.subr.mxu0 0.0
        %2229 = vmatpush1.msra.mxu0 0.0
        %2230 = vmatprep.subr.mxu0 0.0
        %2231 = vmatpush1.msra.mxu0 0.0
        %2232 = vmatprep.subr.mxu0 0.0
        %2233 = vmatpush1.msra.mxu0 0.0
        %2234 = vmatprep.subr.mxu0 0.0
        %2235 = vmatpush1.msra.mxu0 0.0
        %2236 = vmatprep.mubr.f32.mxu0 0.0
        %2237 = vmatmul.mubr.f32.gmra.mrb[0].mxu0 %v2170
        %v2238 = vpop.f32.mrb[0].mxu0
        %v2239 = vadd.f32 0.0, %v2238
        %v2240 = vpop.f32.mrb[0].mxu0
        %2241 = vdwg.mxu0
        %2243 = vrot.lane.b32.xlu0 %v1905, 32
        %v2244 = vpop.permute.xlu0 %2243
        %2247 = vrot.lane.b32.xlu0 %v2072, 64
        %v2248 = vpop.permute.xlu0 %2247
        %2251 = vrot.lane.b32.xlu0 %v2239, 96
        %v2252 = vpop.permute.xlu0 %2251
        %v2254 = vsel %vm895, %v1737, %v2244
        %v2255 = vsel %vm1574, %v2254, %v2248
        %v2256 = vsel %vm1576, %v2255, %v2252
        %v2257 = vld [vmem:[%s597] sm:$0xff]
        %v2258 = vld [vmem:[%s597 + $0x8] sm:$0xff]
        %v2259 = vld [vmem:[%s597 + $0x10] sm:$0xff]
        %v2260 = vld [vmem:[%s597 + $0x18] sm:$0xff]
        %v2261 = vld [vmem:[%s597 + $0x20] sm:$0xff]
        %v2262 = vld [vmem:[%s597 + $0x28] sm:$0xff]
        %v2263 = vld [vmem:[%s597 + $0x30] sm:$0xff]
        %v2264 = vld [vmem:[%s597 + $0x38] sm:$0xff]
        %v2265 = vld [vmem:[%s597 + $0x40] sm:$0xff]
        %v2266 = vld [vmem:[%s597 + $0x48] sm:$0xff]
        %v2267 = vld [vmem:[%s597 + $0x50] sm:$0xff]
        %v2268 = vld [vmem:[%s597 + $0x58] sm:$0xff]
        %v2269 = vld [vmem:[%s597 + $0x60] sm:$0xff]
        %v2270 = vld [vmem:[%s597 + $0x68] sm:$0xff]
        %v2271 = vld [vmem:[%s597 + $0x70] sm:$0xff]
        %v2272 = vld [vmem:[%s597 + $0x78] sm:$0xff]
        %v2273 = vld [vmem:[%s600] sm:$0x1]
        %v2275 = vlaneseq
        %v2276 = vshrl.u32 %v2275, 7
        %v2277 = vsub.s32 0, %v2276
        %v2278 = vrot.slane %v2273, %v2277
        %2280 = vmatprep.subr.mxu0 0.0
        %2281 = vmatpush1.msra.mxu0 %v2257
        %2282 = vmatprep.subr.mxu0 0.0
        %2283 = vmatpush1.msra.mxu0 %v2258
        %2284 = vmatprep.subr.mxu0 0.0
        %2285 = vmatpush1.msra.mxu0 %v2259
        %2286 = vmatprep.subr.mxu0 0.0
        %2287 = vmatpush1.msra.mxu0 %v2260
        %2288 = vmatprep.subr.mxu0 0.0
        %2289 = vmatpush1.msra.mxu0 %v2261
        %2290 = vmatprep.subr.mxu0 0.0
        %2291 = vmatpush1.msra.mxu0 %v2262
        %2292 = vmatprep.subr.mxu0 0.0
        %2293 = vmatpush1.msra.mxu0 %v2263
        %2294 = vmatprep.subr.mxu0 0.0
        %2295 = vmatpush1.msra.mxu0 %v2264
        %2296 = vmatprep.subr.mxu0 0.0
        %2297 = vmatpush1.msra.mxu0 %v2265
        %2298 = vmatprep.subr.mxu0 0.0
        %2299 = vmatpush1.msra.mxu0 %v2266
        %2300 = vmatprep.subr.mxu0 0.0
        %2301 = vmatpush1.msra.mxu0 %v2267
        %2302 = vmatprep.subr.mxu0 0.0
        %2303 = vmatpush1.msra.mxu0 %v2268
        %2304 = vmatprep.subr.mxu0 0.0
        %2305 = vmatpush1.msra.mxu0 %v2269
        %2306 = vmatprep.subr.mxu0 0.0
        %2307 = vmatpush1.msra.mxu0 %v2270
        %2308 = vmatprep.subr.mxu0 0.0
        %2309 = vmatpush1.msra.mxu0 %v2271
        %2310 = vmatprep.subr.mxu0 0.0
        %2311 = vmatpush1.msra.mxu0 %v2272
        %2312 = vmatprep.subr.mxu0 0.0
        %2313 = vmatpush1.msra.mxu0 0.0
        %2314 = vmatprep.subr.mxu0 0.0
        %2315 = vmatpush1.msra.mxu0 0.0
        %2316 = vmatprep.subr.mxu0 0.0
        %2317 = vmatpush1.msra.mxu0 0.0
        %2318 = vmatprep.subr.mxu0 0.0
        %2319 = vmatpush1.msra.mxu0 0.0
        %2320 = vmatprep.subr.mxu0 0.0
        %2321 = vmatpush1.msra.mxu0 0.0
        %2322 = vmatprep.subr.mxu0 0.0
        %2323 = vmatpush1.msra.mxu0 0.0
        %2324 = vmatprep.subr.mxu0 0.0
        %2325 = vmatpush1.msra.mxu0 0.0
        %2326 = vmatprep.subr.mxu0 0.0
        %2327 = vmatpush1.msra.mxu0 0.0
        %2328 = vmatprep.subr.mxu0 0.0
        %2329 = vmatpush1.msra.mxu0 0.0
        %2330 = vmatprep.subr.mxu0 0.0
        %2331 = vmatpush1.msra.mxu0 0.0
        %2332 = vmatprep.subr.mxu0 0.0
        %2333 = vmatpush1.msra.mxu0 0.0
        %2334 = vmatprep.subr.mxu0 0.0
        %2335 = vmatpush1.msra.mxu0 0.0
        %2336 = vmatprep.subr.mxu0 0.0
        %2337 = vmatpush1.msra.mxu0 0.0
        %2338 = vmatprep.subr.mxu0 0.0
        %2339 = vmatpush1.msra.mxu0 0.0
        %2340 = vmatprep.subr.mxu0 0.0
        %2341 = vmatpush1.msra.mxu0 0.0
        %2342 = vmatprep.subr.mxu0 0.0
        %2343 = vmatpush1.msra.mxu0 0.0
        %2344 = vmatprep.mubr.f32.mxu0 0.0
        %2345 = vmatmul.mubr.f32.gmra.mrb[0].mxu0 %v1577
        %v2346 = vpop.f32.mrb[0].mxu0
        %v2347 = vadd.f32 %v2278, %v2346
        %v2348 = vpop.f32.mrb[0].mxu0
        %2349 = vmatprep.mubr.f32.mxu0 0.0
        %2350 = vmatmul.mubr.f32.gmra.mrb[0].mxu0 %v2256
        %v2351 = vpop.f32.mrb[0].mxu0
        %v2352 = vadd.f32 %v2278, %v2351
        %v2353 = vpop.f32.mrb[0].mxu0
        %2354 = vdwg.mxu0
        %v2355 = vadd.f32 %v632, %v2347
        %v2356 = vadd.f32 %v633, %v2352
        %v2357 = vld [vmem:[%s603] sm:$0x1]
        %v2358 = vld [vmem:[%s606] sm:$0x1]
        %2359 = vadd.xlane.f32.xlu0 %v2355
        %v2360 = vpop.xlane.xlu0 %2359
        %2361 = vadd.xlane.f32.xlu0 %v2356
        %v2362 = vpop.xlane.xlu0 %2361
        %v2363 = vmul.f32 %v2360, %v640
        %v2364 = vmul.f32 %v2362, %v640
        %v2365 = vsub.f32 %v2355, %v2363
        %v2366 = vsub.f32 %v2356, %v2364
        %v2367 = vmul.f32 %v2365, %v2365
        %v2368 = vmul.f32 %v2366, %v2366
        %2369 = vadd.xlane.f32.xlu0 %v2367
        %v2370 = vpop.xlane.xlu0 %2369
        %2371 = vadd.xlane.f32.xlu0 %v2368
        %v2372 = vpop.xlane.xlu0 %2371
        %v2373 = vmul.f32 %v2370, %v640
        %v2374 = vmul.f32 %v2372, %v640
        %v2375 = vadd.f32 %v2373, 1e-12
        %v2376 = vadd.f32 %v2374, 1e-12
        %v2377 = vrsqrt.pop %v2375
        %v2378 = vrsqrt.pop %v2376
        %v2379 = vmul.f32 %v2365, %v2377
        %v2380 = vmul.f32 %v2366, %v2378
        %v2382 = vlaneseq
        %v2383 = vshrl.u32 %v2382, 7
        %v2384 = vsub.s32 0, %v2383
        %v2385 = vrot.slane %v2357, %v2384
        %v2387 = vmul.f32 %v2379, %v2385
        %v2388 = vmul.f32 %v2380, %v2385
        %v2390 = vlaneseq
        %v2391 = vshrl.u32 %v2390, 7
        %v2392 = vsub.s32 0, %v2391
        %v2393 = vrot.slane %v2358, %v2392
        %v2395 = vadd.f32 %v2387, %v2393
        %v2396 = vadd.f32 %v2388, %v2393
        %v2397 = vld [vmem:[%s611] sm:$0xff]
        %v2398 = vld [vmem:[%s611 + $0x8] sm:$0xff]
        %v2399 = vld [vmem:[%s611 + $0x10] sm:$0xff]
        %v2400 = vld [vmem:[%s611 + $0x18] sm:$0xff]
        %v2401 = vld [vmem:[%s611 + $0x20] sm:$0xff]
        %v2402 = vld [vmem:[%s611 + $0x28] sm:$0xff]
        %v2403 = vld [vmem:[%s611 + $0x30] sm:$0xff]
        %v2404 = vld [vmem:[%s611 + $0x38] sm:$0xff]
        %v2405 = vld [vmem:[%s611 + $0x40] sm:$0xff]
        %v2406 = vld [vmem:[%s611 + $0x48] sm:$0xff]
        %v2407 = vld [vmem:[%s611 + $0x50] sm:$0xff]
        %v2408 = vld [vmem:[%s611 + $0x58] sm:$0xff]
        %v2409 = vld [vmem:[%s611 + $0x60] sm:$0xff]
        %v2410 = vld [vmem:[%s611 + $0x68] sm:$0xff]
        %v2411 = vld [vmem:[%s611 + $0x70] sm:$0xff]
        %v2412 = vld [vmem:[%s611 + $0x78] sm:$0xff]
        %v2413 = vld [vmem:[%s611 + $0x80] sm:$0xff]
        %v2414 = vld [vmem:[%s611 + $0x88] sm:$0xff]
        %v2415 = vld [vmem:[%s611 + $0x90] sm:$0xff]
        %v2416 = vld [vmem:[%s611 + $0x98] sm:$0xff]
        %v2417 = vld [vmem:[%s611 + $0xa0] sm:$0xff]
        %v2418 = vld [vmem:[%s611 + $0xa8] sm:$0xff]
        %v2419 = vld [vmem:[%s611 + $0xb0] sm:$0xff]
        %v2420 = vld [vmem:[%s611 + $0xb8] sm:$0xff]
        %v2421 = vld [vmem:[%s611 + $0xc0] sm:$0xff]
        %v2422 = vld [vmem:[%s611 + $0xc8] sm:$0xff]
        %v2423 = vld [vmem:[%s611 + $0xd0] sm:$0xff]
        %v2424 = vld [vmem:[%s611 + $0xd8] sm:$0xff]
        %v2425 = vld [vmem:[%s611 + $0xe0] sm:$0xff]
        %v2426 = vld [vmem:[%s611 + $0xe8] sm:$0xff]
        %v2427 = vld [vmem:[%s611 + $0xf0] sm:$0xff]
        %v2428 = vld [vmem:[%s611 + $0xf8] sm:$0xff]
        %v2429 = vld [vmem:[%s611 + $0x100] sm:$0xff]
        %v2430 = vld [vmem:[%s611 + $0x108] sm:$0xff]
        %v2431 = vld [vmem:[%s611 + $0x110] sm:$0xff]
        %v2432 = vld [vmem:[%s611 + $0x118] sm:$0xff]
        %v2433 = vld [vmem:[%s611 + $0x120] sm:$0xff]
        %v2434 = vld [vmem:[%s611 + $0x128] sm:$0xff]
        %v2435 = vld [vmem:[%s611 + $0x130] sm:$0xff]
        %v2436 = vld [vmem:[%s611 + $0x138] sm:$0xff]
        %v2437 = vld [vmem:[%s611 + $0x140] sm:$0xff]
        %v2438 = vld [vmem:[%s611 + $0x148] sm:$0xff]
        %v2439 = vld [vmem:[%s611 + $0x150] sm:$0xff]
        %v2440 = vld [vmem:[%s611 + $0x158] sm:$0xff]
        %v2441 = vld [vmem:[%s611 + $0x160] sm:$0xff]
        %v2442 = vld [vmem:[%s611 + $0x168] sm:$0xff]
        %v2443 = vld [vmem:[%s611 + $0x170] sm:$0xff]
        %v2444 = vld [vmem:[%s611 + $0x178] sm:$0xff]
        %v2445 = vld [vmem:[%s611 + $0x180] sm:$0xff]
        %v2446 = vld [vmem:[%s611 + $0x188] sm:$0xff]
        %v2447 = vld [vmem:[%s611 + $0x190] sm:$0xff]
        %v2448 = vld [vmem:[%s611 + $0x198] sm:$0xff]
        %v2449 = vld [vmem:[%s611 + $0x1a0] sm:$0xff]
        %v2450 = vld [vmem:[%s611 + $0x1a8] sm:$0xff]
        %v2451 = vld [vmem:[%s611 + $0x1b0] sm:$0xff]
        %v2452 = vld [vmem:[%s611 + $0x1b8] sm:$0xff]
        %v2453 = vld [vmem:[%s611 + $0x1c0] sm:$0xff]
        %v2454 = vld [vmem:[%s611 + $0x1c8] sm:$0xff]
        %v2455 = vld [vmem:[%s611 + $0x1d0] sm:$0xff]
        %v2456 = vld [vmem:[%s611 + $0x1d8] sm:$0xff]
        %v2457 = vld [vmem:[%s611 + $0x1e0] sm:$0xff]
        %v2458 = vld [vmem:[%s611 + $0x1e8] sm:$0xff]
        %v2459 = vld [vmem:[%s611 + $0x1f0] sm:$0xff]
        %v2460 = vld [vmem:[%s611 + $0x1f8] sm:$0xff]
        %v2461 = vld [vmem:[%s615] sm:$0xf]
        %v2463 = vlaneseq
        %v2464 = vshrl.u32 %v2463, 7
        %v2465 = vsub.s32 0, %v2464
        %v2466 = vrot.slane %v2461, %v2465
        %v2467 = vlaneseq
        %v2468 = vshrl.u32 %v2467, 7
        %v2469 = vsub.s32 1, %v2468
        %v2470 = vrot.slane %v2461, %v2469
        %v2471 = vlaneseq
        %v2472 = vshrl.u32 %v2471, 7
        %v2473 = vsub.s32 2, %v2472
        %v2474 = vrot.slane %v2461, %v2473
        %v2475 = vlaneseq
        %v2476 = vshrl.u32 %v2475, 7
        %v2477 = vsub.s32 3, %v2476
        %v2478 = vrot.slane %v2461, %v2477
        %2483 = vmatprep.subr.mxu0 %v2398
        %2484 = vmatpush1.msra.mxu0 %v2397
        %2485 = vmatprep.subr.mxu0 %v2402
        %2486 = vmatpush1.msra.mxu0 %v2401
        %2487 = vmatprep.subr.mxu0 %v2406
        %2488 = vmatpush1.msra.mxu0 %v2405
        %2489 = vmatprep.subr.mxu0 %v2410
        %2490 = vmatpush1.msra.mxu0 %v2409
        %2491 = vmatprep.subr.mxu0 %v2414
        %2492 = vmatpush1.msra.mxu0 %v2413
        %2493 = vmatprep.subr.mxu0 %v2418
        %2494 = vmatpush1.msra.mxu0 %v2417
        %2495 = vmatprep.subr.mxu0 %v2422
        %2496 = vmatpush1.msra.mxu0 %v2421
        %2497 = vmatprep.subr.mxu0 %v2426
        %2498 = vmatpush1.msra.mxu0 %v2425
        %2499 = vmatprep.subr.mxu0 %v2430
        %2500 = vmatpush1.msra.mxu0 %v2429
        %2501 = vmatprep.subr.mxu0 %v2434
        %2502 = vmatpush1.msra.mxu0 %v2433
        %2503 = vmatprep.subr.mxu0 %v2438
        %2504 = vmatpush1.msra.mxu0 %v2437
        %2505 = vmatprep.subr.mxu0 %v2442
        %2506 = vmatpush1.msra.mxu0 %v2441
        %2507 = vmatprep.subr.mxu0 %v2446
        %2508 = vmatpush1.msra.mxu0 %v2445
        %2509 = vmatprep.subr.mxu0 %v2450
        %2510 = vmatpush1.msra.mxu0 %v2449
        %2511 = vmatprep.subr.mxu0 %v2454
        %2512 = vmatpush1.msra.mxu0 %v2453
        %2513 = vmatprep.subr.mxu0 %v2458
        %2514 = vmatpush1.msra.mxu0 %v2457
        %2515 = vmatprep.subr.mxu0 0.0
        %2516 = vmatpush1.msra.mxu0 0.0
        %2517 = vmatprep.subr.mxu0 0.0
        %2518 = vmatpush1.msra.mxu0 0.0
        %2519 = vmatprep.subr.mxu0 0.0
        %2520 = vmatpush1.msra.mxu0 0.0
        %2521 = vmatprep.subr.mxu0 0.0
        %2522 = vmatpush1.msra.mxu0 0.0
        %2523 = vmatprep.subr.mxu0 0.0
        %2524 = vmatpush1.msra.mxu0 0.0
        %2525 = vmatprep.subr.mxu0 0.0
        %2526 = vmatpush1.msra.mxu0 0.0
        %2527 = vmatprep.subr.mxu0 0.0
        %2528 = vmatpush1.msra.mxu0 0.0
        %2529 = vmatprep.subr.mxu0 0.0
        %2530 = vmatpush1.msra.mxu0 0.0
        %2531 = vmatprep.subr.mxu0 0.0
        %2532 = vmatpush1.msra.mxu0 0.0
        %2533 = vmatprep.subr.mxu0 0.0
        %2534 = vmatpush1.msra.mxu0 0.0
        %2535 = vmatprep.subr.mxu0 0.0
        %2536 = vmatpush1.msra.mxu0 0.0
        %2537 = vmatprep.subr.mxu0 0.0
        %2538 = vmatpush1.msra.mxu0 0.0
        %2539 = vmatprep.subr.mxu0 0.0
        %2540 = vmatpush1.msra.mxu0 0.0
        %2541 = vmatprep.subr.mxu0 0.0
        %2542 = vmatpush1.msra.mxu0 0.0
        %2543 = vmatprep.subr.mxu0 0.0
        %2544 = vmatpush1.msra.mxu0 0.0
        %2545 = vmatprep.subr.mxu0 0.0
        %2546 = vmatpush1.msra.mxu0 0.0
        %2547 = vmatprep.mubr.f32.mxu0 0.0
        %2548 = vmatmul.mubr.f32.gmra.mrb[0].mxu0 %v2395
        %v2549 = vpop.f32.mrb[0].mxu0
        %v2550 = vadd.f32 %v2466, %v2549
        %v2551 = vpop.f32.mrb[0].mxu0
        %v2552 = vadd.f32 %v2470, %v2551
        %2553 = vmatprep.mubr.f32.mxu0 0.0
        %2554 = vmatmul.mubr.f32.gmra.mrb[0].mxu0 %v2396
        %v2555 = vpop.f32.mrb[0].mxu0
        %v2556 = vadd.f32 %v2466, %v2555
        %v2557 = vpop.f32.mrb[0].mxu0
        %v2558 = vadd.f32 %v2470, %v2557
        %2559 = vdwg.mxu0
        %2560 = vmatprep.subr.mxu0 %v2400
        %2561 = vmatpush1.msra.mxu0 %v2399
        %2562 = vmatprep.subr.mxu0 %v2404
        %2563 = vmatpush1.msra.mxu0 %v2403
        %2564 = vmatprep.subr.mxu0 %v2408
        %2565 = vmatpush1.msra.mxu0 %v2407
        %2566 = vmatprep.subr.mxu0 %v2412
        %2567 = vmatpush1.msra.mxu0 %v2411
        %2568 = vmatprep.subr.mxu0 %v2416
        %2569 = vmatpush1.msra.mxu0 %v2415
        %2570 = vmatprep.subr.mxu0 %v2420
        %2571 = vmatpush1.msra.mxu0 %v2419
        %2572 = vmatprep.subr.mxu0 %v2424
        %2573 = vmatpush1.msra.mxu0 %v2423
        %2574 = vmatprep.subr.mxu0 %v2428
        %2575 = vmatpush1.msra.mxu0 %v2427
        %2576 = vmatprep.subr.mxu0 %v2432
        %2577 = vmatpush1.msra.mxu0 %v2431
        %2578 = vmatprep.subr.mxu0 %v2436
        %2579 = vmatpush1.msra.mxu0 %v2435
        %2580 = vmatprep.subr.mxu0 %v2440
        %2581 = vmatpush1.msra.mxu0 %v2439
        %2582 = vmatprep.subr.mxu0 %v2444
        %2583 = vmatpush1.msra.mxu0 %v2443
        %2584 = vmatprep.subr.mxu0 %v2448
        %2585 = vmatpush1.msra.mxu0 %v2447
        %2586 = vmatprep.subr.mxu0 %v2452
        %2587 = vmatpush1.msra.mxu0 %v2451
        %2588 = vmatprep.subr.mxu0 %v2456
        %2589 = vmatpush1.msra.mxu0 %v2455
        %2590 = vmatprep.subr.mxu0 %v2460
        %2591 = vmatpush1.msra.mxu0 %v2459
        %2592 = vmatprep.subr.mxu0 0.0
        %2593 = vmatpush1.msra.mxu0 0.0
        %2594 = vmatprep.subr.mxu0 0.0
        %2595 = vmatpush1.msra.mxu0 0.0
        %2596 = vmatprep.subr.mxu0 0.0
        %2597 = vmatpush1.msra.mxu0 0.0
        %2598 = vmatprep.subr.mxu0 0.0
        %2599 = vmatpush1.msra.mxu0 0.0
        %2600 = vmatprep.subr.mxu0 0.0
        %2601 = vmatpush1.msra.mxu0 0.0
        %2602 = vmatprep.subr.mxu0 0.0
        %2603 = vmatpush1.msra.mxu0 0.0
        %2604 = vmatprep.subr.mxu0 0.0
        %2605 = vmatpush1.msra.mxu0 0.0
        %2606 = vmatprep.subr.mxu0 0.0
        %2607 = vmatpush1.msra.mxu0 0.0
        %2608 = vmatprep.subr.mxu0 0.0
        %2609 = vmatpush1.msra.mxu0 0.0
        %2610 = vmatprep.subr.mxu0 0.0
        %2611 = vmatpush1.msra.mxu0 0.0
        %2612 = vmatprep.subr.mxu0 0.0
        %2613 = vmatpush1.msra.mxu0 0.0
        %2614 = vmatprep.subr.mxu0 0.0
        %2615 = vmatpush1.msra.mxu0 0.0
        %2616 = vmatprep.subr.mxu0 0.0
        %2617 = vmatpush1.msra.mxu0 0.0
        %2618 = vmatprep.subr.mxu0 0.0
        %2619 = vmatpush1.msra.mxu0 0.0
        %2620 = vmatprep.subr.mxu0 0.0
        %2621 = vmatpush1.msra.mxu0 0.0
        %2622 = vmatprep.subr.mxu0 0.0
        %2623 = vmatpush1.msra.mxu0 0.0
        %2624 = vmatprep.mubr.f32.mxu0 0.0
        %2625 = vmatmul.mubr.f32.gmra.mrb[0].mxu0 %v2395
        %v2626 = vpop.f32.mrb[0].mxu0
        %v2627 = vadd.f32 %v2474, %v2626
        %v2628 = vpop.f32.mrb[0].mxu0
        %v2629 = vadd.f32 %v2478, %v2628
        %2630 = vmatprep.mubr.f32.mxu0 0.0
        %2631 = vmatmul.mubr.f32.gmra.mrb[0].mxu0 %v2396
        %v2632 = vpop.f32.mrb[0].mxu0
        %v2633 = vadd.f32 %v2474, %v2632
        %v2634 = vpop.f32.mrb[0].mxu0
        %v2635 = vadd.f32 %v2478, %v2634
        %2636 = vdwg.mxu0
        %v2637 = vmul.f32 %v2550, %v2550
        %v2638 = vmul.f32 %v2552, %v2552
        %v2639 = vmul.f32 %v2627, %v2627
        %v2640 = vmul.f32 %v2629, %v2629
        %v2641 = vmul.f32 %v2556, %v2556
        %v2642 = vmul.f32 %v2558, %v2558
        %v2643 = vmul.f32 %v2633, %v2633
        %v2644 = vmul.f32 %v2635, %v2635
        %v2645 = vmul.f32 %v2550, %v2637
        %v2646 = vmul.f32 %v2552, %v2638
        %v2647 = vmul.f32 %v2627, %v2639
        %v2648 = vmul.f32 %v2629, %v2640
        %v2649 = vmul.f32 %v2556, %v2641
        %v2650 = vmul.f32 %v2558, %v2642
        %v2651 = vmul.f32 %v2633, %v2643
        %v2652 = vmul.f32 %v2635, %v2644
        %v2653 = vmul.f32 %v2645, 0.044715
        %v2654 = vmul.f32 %v2646, 0.044715
        %v2655 = vmul.f32 %v2647, 0.044715
        %v2656 = vmul.f32 %v2648, 0.044715
        %v2657 = vmul.f32 %v2649, 0.044715
        %v2658 = vmul.f32 %v2650, 0.044715
        %v2659 = vmul.f32 %v2651, 0.044715
        %v2660 = vmul.f32 %v2652, 0.044715
        %v2661 = vadd.f32 %v2550, %v2653
        %v2662 = vadd.f32 %v2552, %v2654
        %v2663 = vadd.f32 %v2627, %v2655
        %v2664 = vadd.f32 %v2629, %v2656
        %v2665 = vadd.f32 %v2556, %v2657
        %v2666 = vadd.f32 %v2558, %v2658
        %v2667 = vadd.f32 %v2633, %v2659
        %v2668 = vadd.f32 %v2635, %v2660
        %v2669 = vmul.f32 %v2661, 0.7978846
        %v2670 = vmul.f32 %v2662, 0.7978846
        %v2671 = vmul.f32 %v2663, 0.7978846
        %v2672 = vmul.f32 %v2664, 0.7978846
        %v2673 = vmul.f32 %v2665, 0.7978846
        %v2674 = vmul.f32 %v2666, 0.7978846
        %v2675 = vmul.f32 %v2667, 0.7978846
        %v2676 = vmul.f32 %v2668, 0.7978846
        %v2677 = vtanh.pop %v2669
        %v2678 = vtanh.pop %v2670
        %v2679 = vtanh.pop %v2671
        %v2680 = vtanh.pop %v2672
        %v2681 = vtanh.pop %v2673
        %v2682 = vtanh.pop %v2674
        %v2683 = vtanh.pop %v2675
        %v2684 = vtanh.pop %v2676
        %v2685 = vadd.f32 %v2677, 1.0
        %v2686 = vadd.f32 %v2678, 1.0
        %v2687 = vadd.f32 %v2679, 1.0
        %v2688 = vadd.f32 %v2680, 1.0
        %v2689 = vadd.f32 %v2681, 1.0
        %v2690 = vadd.f32 %v2682, 1.0
        %v2691 = vadd.f32 %v2683, 1.0
        %v2692 = vadd.f32 %v2684, 1.0
        %v2693 = vmul.f32 %v2685, 0.5
        %v2694 = vmul.f32 %v2686, 0.5
        %v2695 = vmul.f32 %v2687, 0.5
        %v2696 = vmul.f32 %v2688, 0.5
        %v2697 = vmul.f32 %v2689, 0.5
        %v2698 = vmul.f32 %v2690, 0.5
        %v2699 = vmul.f32 %v2691, 0.5
        %v2700 = vmul.f32 %v2692, 0.5
        %v2701 = vmul.f32 %v2550, %v2693
        %v2702 = vmul.f32 %v2552, %v2694
        %v2703 = vmul.f32 %v2627, %v2695
        %v2704 = vmul.f32 %v2629, %v2696
        %v2705 = vmul.f32 %v2556, %v2697
        %v2706 = vmul.f32 %v2558, %v2698
        %v2707 = vmul.f32 %v2633, %v2699
        %v2708 = vmul.f32 %v2635, %v2700
        %v2709 = vld [vmem:[%s620] sm:$0xff]
        %v2710 = vld [vmem:[%s620 + $0x8] sm:$0xff]
        %v2711 = vld [vmem:[%s620 + $0x10] sm:$0xff]
        %v2712 = vld [vmem:[%s620 + $0x18] sm:$0xff]
        %v2713 = vld [vmem:[%s620 + $0x20] sm:$0xff]
        %v2714 = vld [vmem:[%s620 + $0x28] sm:$0xff]
        %v2715 = vld [vmem:[%s620 + $0x30] sm:$0xff]
        %v2716 = vld [vmem:[%s620 + $0x38] sm:$0xff]
        %v2717 = vld [vmem:[%s620 + $0x40] sm:$0xff]
        %v2718 = vld [vmem:[%s620 + $0x48] sm:$0xff]
        %v2719 = vld [vmem:[%s620 + $0x50] sm:$0xff]
        %v2720 = vld [vmem:[%s620 + $0x58] sm:$0xff]
        %v2721 = vld [vmem:[%s620 + $0x60] sm:$0xff]
        %v2722 = vld [vmem:[%s620 + $0x68] sm:$0xff]
        %v2723 = vld [vmem:[%s620 + $0x70] sm:$0xff]
        %v2724 = vld [vmem:[%s620 + $0x78] sm:$0xff]
        %v2725 = vld [vmem:[%s620 + $0x80] sm:$0xff]
        %v2726 = vld [vmem:[%s620 + $0x88] sm:$0xff]
        %v2727 = vld [vmem:[%s620 + $0x90] sm:$0xff]
        %v2728 = vld [vmem:[%s620 + $0x98] sm:$0xff]
        %v2729 = vld [vmem:[%s620 + $0xa0] sm:$0xff]
        %v2730 = vld [vmem:[%s620 + $0xa8] sm:$0xff]
        %v2731 = vld [vmem:[%s620 + $0xb0] sm:$0xff]
        %v2732 = vld [vmem:[%s620 + $0xb8] sm:$0xff]
        %v2733 = vld [vmem:[%s620 + $0xc0] sm:$0xff]
        %v2734 = vld [vmem:[%s620 + $0xc8] sm:$0xff]
        %v2735 = vld [vmem:[%s620 + $0xd0] sm:$0xff]
        %v2736 = vld [vmem:[%s620 + $0xd8] sm:$0xff]
        %v2737 = vld [vmem:[%s620 + $0xe0] sm:$0xff]
        %v2738 = vld [vmem:[%s620 + $0xe8] sm:$0xff]
        %v2739 = vld [vmem:[%s620 + $0xf0] sm:$0xff]
        %v2740 = vld [vmem:[%s620 + $0xf8] sm:$0xff]
        %v2741 = vld [vmem:[%s620 + $0x100] sm:$0xff]
        %v2742 = vld [vmem:[%s620 + $0x108] sm:$0xff]
        %v2743 = vld [vmem:[%s620 + $0x110] sm:$0xff]
        %v2744 = vld [vmem:[%s620 + $0x118] sm:$0xff]
        %v2745 = vld [vmem:[%s620 + $0x120] sm:$0xff]
        %v2746 = vld [vmem:[%s620 + $0x128] sm:$0xff]
        %v2747 = vld [vmem:[%s620 + $0x130] sm:$0xff]
        %v2748 = vld [vmem:[%s620 + $0x138] sm:$0xff]
        %v2749 = vld [vmem:[%s620 + $0x140] sm:$0xff]
        %v2750 = vld [vmem:[%s620 + $0x148] sm:$0xff]
        %v2751 = vld [vmem:[%s620 + $0x150] sm:$0xff]
        %v2752 = vld [vmem:[%s620 + $0x158] sm:$0xff]
        %v2753 = vld [vmem:[%s620 + $0x160] sm:$0xff]
        %v2754 = vld [vmem:[%s620 + $0x168] sm:$0xff]
        %v2755 = vld [vmem:[%s620 + $0x170] sm:$0xff]
        %v2756 = vld [vmem:[%s620 + $0x178] sm:$0xff]
        %v2757 = vld [vmem:[%s620 + $0x180] sm:$0xff]
        %v2758 = vld [vmem:[%s620 + $0x188] sm:$0xff]
        %v2759 = vld [vmem:[%s620 + $0x190] sm:$0xff]
        %v2760 = vld [vmem:[%s620 + $0x198] sm:$0xff]
        %v2761 = vld [vmem:[%s620 + $0x1a0] sm:$0xff]
        %v2762 = vld [vmem:[%s620 + $0x1a8] sm:$0xff]
        %v2763 = vld [vmem:[%s620 + $0x1b0] sm:$0xff]
        %v2764 = vld [vmem:[%s620 + $0x1b8] sm:$0xff]
        %v2765 = vld [vmem:[%s620 + $0x1c0] sm:$0xff]
        %v2766 = vld [vmem:[%s620 + $0x1c8] sm:$0xff]
        %v2767 = vld [vmem:[%s620 + $0x1d0] sm:$0xff]
        %v2768 = vld [vmem:[%s620 + $0x1d8] sm:$0xff]
        %v2769 = vld [vmem:[%s620 + $0x1e0] sm:$0xff]
        %v2770 = vld [vmem:[%s620 + $0x1e8] sm:$0xff]
        %v2771 = vld [vmem:[%s620 + $0x1f0] sm:$0xff]
        %v2772 = vld [vmem:[%s620 + $0x1f8] sm:$0xff]
        %v2773 = vld [vmem:[%s623] sm:$0x1]
        %v2775 = vlaneseq
        %v2776 = vshrl.u32 %v2775, 7
        %v2777 = vsub.s32 0, %v2776
        %v2778 = vrot.slane %v2773, %v2777
        %2780 = vmatprep.subr.mxu0 0.0
        %2781 = vmatpush1.msra.mxu0 %v2709
        %2782 = vmatprep.subr.mxu0 0.0
        %2783 = vmatpush1.msra.mxu0 %v2710
        %2784 = vmatprep.subr.mxu0 0.0
        %2785 = vmatpush1.msra.mxu0 %v2711
        %2786 = vmatprep.subr.mxu0 0.0
        %2787 = vmatpush1.msra.mxu0 %v2712
        %2788 = vmatprep.subr.mxu0 0.0
        %2789 = vmatpush1.msra.mxu0 %v2713
        %2790 = vmatprep.subr.mxu0 0.0
        %2791 = vmatpush1.msra.mxu0 %v2714
        %2792 = vmatprep.subr.mxu0 0.0
        %2793 = vmatpush1.msra.mxu0 %v2715
        %2794 = vmatprep.subr.mxu0 0.0
        %2795 = vmatpush1.msra.mxu0 %v2716
        %2796 = vmatprep.subr.mxu0 0.0
        %2797 = vmatpush1.msra.mxu0 %v2717
        %2798 = vmatprep.subr.mxu0 0.0
        %2799 = vmatpush1.msra.mxu0 %v2718
        %2800 = vmatprep.subr.mxu0 0.0
        %2801 = vmatpush1.msra.mxu0 %v2719
        %2802 = vmatprep.subr.mxu0 0.0
        %2803 = vmatpush1.msra.mxu0 %v2720
        %2804 = vmatprep.subr.mxu0 0.0
        %2805 = vmatpush1.msra.mxu0 %v2721
        %2806 = vmatprep.subr.mxu0 0.0
        %2807 = vmatpush1.msra.mxu0 %v2722
        %2808 = vmatprep.subr.mxu0 0.0
        %2809 = vmatpush1.msra.mxu0 %v2723
        %2810 = vmatprep.subr.mxu0 0.0
        %2811 = vmatpush1.msra.mxu0 %v2724
        %2812 = vmatprep.subr.mxu0 0.0
        %2813 = vmatpush1.msra.mxu0 %v2725
        %2814 = vmatprep.subr.mxu0 0.0
        %2815 = vmatpush1.msra.mxu0 %v2726
        %2816 = vmatprep.subr.mxu0 0.0
        %2817 = vmatpush1.msra.mxu0 %v2727
        %2818 = vmatprep.subr.mxu0 0.0
        %2819 = vmatpush1.msra.mxu0 %v2728
        %2820 = vmatprep.subr.mxu0 0.0
        %2821 = vmatpush1.msra.mxu0 %v2729
        %2822 = vmatprep.subr.mxu0 0.0
        %2823 = vmatpush1.msra.mxu0 %v2730
        %2824 = vmatprep.subr.mxu0 0.0
        %2825 = vmatpush1.msra.mxu0 %v2731
        %2826 = vmatprep.subr.mxu0 0.0
        %2827 = vmatpush1.msra.mxu0 %v2732
        %2828 = vmatprep.subr.mxu0 0.0
        %2829 = vmatpush1.msra.mxu0 %v2733
        %2830 = vmatprep.subr.mxu0 0.0
        %2831 = vmatpush1.msra.mxu0 %v2734
        %2832 = vmatprep.subr.mxu0 0.0
        %2833 = vmatpush1.msra.mxu0 %v2735
        %2834 = vmatprep.subr.mxu0 0.0
        %2835 = vmatpush1.msra.mxu0 %v2736
        %2836 = vmatprep.subr.mxu0 0.0
        %2837 = vmatpush1.msra.mxu0 %v2737
        %2838 = vmatprep.subr.mxu0 0.0
        %2839 = vmatpush1.msra.mxu0 %v2738
        %2840 = vmatprep.subr.mxu0 0.0
        %2841 = vmatpush1.msra.mxu0 %v2739
        %2842 = vmatprep.subr.mxu0 0.0
        %2843 = vmatpush1.msra.mxu0 %v2740
        %2844 = vmatprep.mubr.f32.mxu0 %v2702
        %2845 = vmatmul.mubr.f32.gmra.mrb[0].mxu0 %v2701
        %v2846 = vpop.f32.mrb[0].mxu0
        %v2847 = vadd.f32 %v2778, %v2846
        %v2848 = vpop.f32.mrb[0].mxu0
        %2849 = vmatprep.mubr.f32.mxu0 %v2706
        %2850 = vmatmul.mubr.f32.gmra.mrb[0].mxu0 %v2705
        %v2851 = vpop.f32.mrb[0].mxu0
        %v2852 = vadd.f32 %v2778, %v2851
        %v2853 = vpop.f32.mrb[0].mxu0
        %2854 = vdwg.mxu0
        %2855 = vmatprep.subr.mxu0 0.0
        %2856 = vmatpush1.msra.mxu0 %v2741
        %2857 = vmatprep.subr.mxu0 0.0
        %2858 = vmatpush1.msra.mxu0 %v2742
        %2859 = vmatprep.subr.mxu0 0.0
        %2860 = vmatpush1.msra.mxu0 %v2743
        %2861 = vmatprep.subr.mxu0 0.0
        %2862 = vmatpush1.msra.mxu0 %v2744
        %2863 = vmatprep.subr.mxu0 0.0
        %2864 = vmatpush1.msra.mxu0 %v2745
        %2865 = vmatprep.subr.mxu0 0.0
        %2866 = vmatpush1.msra.mxu0 %v2746
        %2867 = vmatprep.subr.mxu0 0.0
        %2868 = vmatpush1.msra.mxu0 %v2747
        %2869 = vmatprep.subr.mxu0 0.0
        %2870 = vmatpush1.msra.mxu0 %v2748
        %2871 = vmatprep.subr.mxu0 0.0
        %2872 = vmatpush1.msra.mxu0 %v2749
        %2873 = vmatprep.subr.mxu0 0.0
        %2874 = vmatpush1.msra.mxu0 %v2750
        %2875 = vmatprep.subr.mxu0 0.0
        %2876 = vmatpush1.msra.mxu0 %v2751
        %2877 = vmatprep.subr.mxu0 0.0
        %2878 = vmatpush1.msra.mxu0 %v2752
        %2879 = vmatprep.subr.mxu0 0.0
        %2880 = vmatpush1.msra.mxu0 %v2753
        %2881 = vmatprep.subr.mxu0 0.0
        %2882 = vmatpush1.msra.mxu0 %v2754
        %2883 = vmatprep.subr.mxu0 0.0
        %2884 = vmatpush1.msra.mxu0 %v2755
        %2885 = vmatprep.subr.mxu0 0.0
        %2886 = vmatpush1.msra.mxu0 %v2756
        %2887 = vmatprep.subr.mxu0 0.0
        %2888 = vmatpush1.msra.mxu0 %v2757
        %2889 = vmatprep.subr.mxu0 0.0
        %2890 = vmatpush1.msra.mxu0 %v2758
        %2891 = vmatprep.subr.mxu0 0.0
        %2892 = vmatpush1.msra.mxu0 %v2759
        %2893 = vmatprep.subr.mxu0 0.0
        %2894 = vmatpush1.msra.mxu0 %v2760
        %2895 = vmatprep.subr.mxu0 0.0
        %2896 = vmatpush1.msra.mxu0 %v2761
        %2897 = vmatprep.subr.mxu0 0.0
        %2898 = vmatpush1.msra.mxu0 %v2762
        %2899 = vmatprep.subr.mxu0 0.0
        %2900 = vmatpush1.msra.mxu0 %v2763
        %2901 = vmatprep.subr.mxu0 0.0
        %2902 = vmatpush1.msra.mxu0 %v2764
        %2903 = vmatprep.subr.mxu0 0.0
        %2904 = vmatpush1.msra.mxu0 %v2765
        %2905 = vmatprep.subr.mxu0 0.0
        %2906 = vmatpush1.msra.mxu0 %v2766
        %2907 = vmatprep.subr.mxu0 0.0
        %2908 = vmatpush1.msra.mxu0 %v2767
        %2909 = vmatprep.subr.mxu0 0.0
        %2910 = vmatpush1.msra.mxu0 %v2768
        %2911 = vmatprep.subr.mxu0 0.0
        %2912 = vmatpush1.msra.mxu0 %v2769
        %2913 = vmatprep.subr.mxu0 0.0
        %2914 = vmatpush1.msra.mxu0 %v2770
        %2915 = vmatprep.subr.mxu0 0.0
        %2916 = vmatpush1.msra.mxu0 %v2771
        %2917 = vmatprep.subr.mxu0 0.0
        %2918 = vmatpush1.msra.mxu0 %v2772
        %2919 = vmatprep.mubr.f32.mxu0 %v2704
        %2920 = vmatmul.mubr.f32.gmra.mrb[0].mxu0 %v2703
        %v2921 = vpop.f32.mrb[0].mxu0
        %v2922 = vadd.f32 %v2847, %v2921
        %v2923 = vpop.f32.mrb[0].mxu0
        %2924 = vmatprep.mubr.f32.mxu0 %v2708
        %2925 = vmatmul.mubr.f32.gmra.mrb[0].mxu0 %v2707
        %v2926 = vpop.f32.mrb[0].mxu0
        %v2927 = vadd.f32 %v2852, %v2926
        %v2928 = vpop.f32.mrb[0].mxu0
        %2929 = vdwg.mxu0
        %v2930 = vadd.f32 %v2355, %v2922
        %v2931 = vadd.f32 %v2356, %v2927
        %2932 = vst [vmem:[%s13] sm:$0xff] %v2930
        %2933 = vst [vmem:[%s13 + $0x8] sm:$0xff] %v2931
        // Predicated region
        $region81: #{vit_forward.4} parent=71 // pred_check
          %p2934 = pneg %p373
        $region82: #{vit_forward.4} parent=71 // pred_check_branch
          %2936 = sbr.rel (%p2934) target = $region84
        $region83: #{vit_forward.4} parent=71 // pred_region
          _
        $region84: #{vit_forward.4} parent=71 // pred_fallthru
          _
        // Predicated region
        $region85: #{vit_forward.4} parent=71 // pred_check
          %p2937 = pneg %p373
        $region86: #{vit_forward.4} parent=71 // pred_check_branch
          %2939 = sbr.rel (%p2937) target = $region88
        $region87: #{vit_forward.4} parent=71 // pred_region
          _
        $region88: #{vit_forward.4} parent=71 // pred_fallthru
          _
      $region72: #{vit_forward.4} parent=5 // pred_fallthru
        _
      %p2940 = scmp.le.s32.totalorder 2, %s22
      // Predicated region
      $region89: #{vit_forward.4} parent=5 // pred_check
        %p2941 = pneg %p2940
      $region90: #{vit_forward.4} parent=5 // pred_check_branch
        %2943 = sbr.rel (%p2941) target = $region92
      $region91: #{vit_forward.4} parent=5 // pred_region
        %s2944 = ssub.s32 %s22, 2
      $region92: #{vit_forward.4} parent=5 // pred_fallthru
        _
    $region6: #{vit_forward.4} parent=1 // loop_footer
      %s26 = sadd.s32 1, %s22
    $region7: #{vit_forward.4} parent=1 // loop_footer_branch
      %21 = sbr.rel target = $region3
    $region8: #{vit_forward.4} parent=1 // loop_exit
      _
    %2945 = vsyncpa [#allocation3], 1
    %s2946 = scalar_lea.sflag [#allocation3], 1
    %2947 = vsyncpa %s2946, 1

</llo_original>
